<compile_context>
chip_gen: v7x
topology: tpu7x:2x2x1
jax: 0.10.0
libtpu: 0.0.40
codegen_flags: <defaults>
</compile_context>

<pallas_src>
import math
import numpy as np
import jax
import jax.numpy as jnp
from jax import lax
from jax.experimental import pallas as pl
from jax.experimental.pallas import tpu as pltpu


# ---------------------------------------------------------------------------
# VMEM limit (generation-aware)
# ---------------------------------------------------------------------------
def _vmem_limit_bytes():
    """Leave headroom on v7x (64 MiB physical VMEM), go large on v5e/v6e (128 MiB)."""
    cap = 128 * 1024 * 1024
    try:
        cap = int(pltpu.get_tpu_info().vmem_capacity_bytes)
    except Exception:
        pass
    if cap >= 128 * 1024 * 1024:
        return 96 * 1024 * 1024
    return int(cap * 0.6)   # ~38 MiB on v7x


# ---------------------------------------------------------------------------
# Kernel
# ---------------------------------------------------------------------------
def _make_fused_lstm_kernel(T, B, layer_sizes, use_layer_norm, unroll):
    """Fused multi-layer LSTM (wavefront over time).

    Ref order (must match fused_lstm_stack):
      inputs : x2d (T*B, D) bf16,
               per layer l: w_ih (H_{l-1},4H_l) bf16, b (1,4H_l) f32,
                            w_hh (H_l,4H_l) bf16, h0 (B,H_l), c0 (B,H_l),
                            [gamma (1,H_l), beta (1,H_l)]      (only if LN)
      outputs: y (T,B,H_last), then (hn_l (B,H_l), cn_l (B,H_l)) per layer
      scratch: gx0 (T*B, 4H0) bf16
    """
    L = len(layer_sizes)

    def kernel(*refs):
        idx = 0
        x_ref = refs[idx]; idx += 1
        layer_refs = []
        for l in range(L):
            d = {}
            d["w_ih"], d["b"], d["w_hh"], d["h0"], d["c0"] = refs[idx:idx + 5]
            idx += 5
            if use_layer_norm:
                d["gamma"], d["beta"] = refs[idx], refs[idx + 1]
                idx += 2
            layer_refs.append(d)
        y_ref = refs[idx]; idx += 1
        hn_refs, cn_refs = [], []
        for _ in range(L):
            hn_refs.append(refs[idx]); cn_refs.append(refs[idx + 1]); idx += 2
        gx0_ref = refs[idx]; idx += 1

        # ---- Phase 1: layer-0 input projection as ONE big MXU GEMM (M = T*B).
        # Off the recurrent critical path; stored bf16 to halve its VMEM footprint.
        l0 = layer_refs[0]
        gx0_ref[...] = (jnp.dot(x_ref[...], l0["w_ih"][...],
                                preferred_element_type=jnp.float32)
                        + l0["b"][...]).astype(gx0_ref.dtype)

        # ---- Phase 2: wavefront recurrence — one time loop, all layers advance per
        # iteration; h/c live in vregs via the fori_loop carry, no inter-layer scratch.
        def step(t, carry):
            hs, cs = carry
            new_hs, new_cs = [], []
            x_t = None
            for l in range(L):
                H = layer_sizes[l]
                H3 = 3 * H
                lr = layer_refs[l]
                h = hs[l]
                c = cs[l]
                # Weights read from VMEM refs inside the loop body (no vreg pinning).
                # TODO(synk): weight-stationary MXU (pltpu.matmul_push_rhs/acc_lhs/pop)
                #             + MRB accumulation of gx on v7x.
                if l == 0:
                    gates = (gx0_ref[pl.ds(t * B, B), :].astype(jnp.float32)
                             + jnp.dot(h.astype(jnp.bfloat16), lr["w_hh"][...],
                                       preferred_element_type=jnp.float32))
                else:
                    # h@W_hh is independent of layer l-1's fresh output -> overlaps.
                    gates = (jnp.dot(x_t.astype(jnp.bfloat16), lr["w_ih"][...],
                                     preferred_element_type=jnp.float32)
                             + jnp.dot(h.astype(jnp.bfloat16), lr["w_hh"][...],
                                       preferred_element_type=jnp.float32)
                             + lr["b"][...])
                # gate order [i, f, o, g]: single sigmoid + single tanh per step
                sig = jax.nn.sigmoid(gates[:, :H3])
                i_g = sig[:, 0:H]
                f_g = sig[:, H:2 * H]
                o_g = sig[:, 2 * H:H3]
                g_g = jnp.tanh(gates[:, H3:])
                c_new = f_g * c + i_g * g_g
                h_new = o_g * jnp.tanh(c_new)
                new_hs.append(h_new)
                new_cs.append(c_new)
                out_l = h_new
                if use_layer_norm:
                    mean = jnp.mean(h_new, axis=-1, keepdims=True)
                    var = jnp.mean(jnp.square(h_new - mean), axis=-1, keepdims=True)
                    out_l = ((h_new - mean) * lax.rsqrt(var + 1e-5)
                             * lr["gamma"][...] + lr["beta"][...])
                x_t = out_l
            # TODO(synk): coalesce this per-step masked (B, H<128) store across the
            #             unroll factor for v5e's single vector-store slot.
            y_ref[t] = x_t.astype(y_ref.dtype)
            return tuple(new_hs), tuple(new_cs)

        h0 = tuple(layer_refs[l]["h0"][...].astype(jnp.float32) for l in range(L))
        c0 = tuple(layer_refs[l]["c0"][...].astype(jnp.float32) for l in range(L))
        hs, cs = lax.fori_loop(0, T, step, (h0, c0), unroll=unroll)
        for l in range(L):
            hn_refs[l][...] = hs[l].astype(hn_refs[l].dtype)
            cn_refs[l][...] = cs[l].astype(cn_refs[l].dtype)

    return kernel


def fused_lstm_stack(x2d, kparams, h0s, c0s, ln_params, layer_sizes, T, B, out_dtype):
    """One pallas_call running the whole LSTM layer stack.

    x2d: (T*B, D) bf16 (time-major rows).
    Returns (y (T,B,H_last), hn_0, cn_0, ..., hn_{L-1}, cn_{L-1}).
    """
    L = len(layer_sizes)
    use_ln = ln_params is not None

    inputs = [x2d]
    for l in range(L):
        kp = kparams[l]
        inputs += [kp["w_ih_r"], kp["b_r"], kp["w_hh_r"], h0s[l], c0s[l]]
        if use_ln:
            gamma, beta = ln_params[l]
            inputs += [gamma.reshape(1, -1), beta.reshape(1, -1)]

    out_shapes = [jax.ShapeDtypeStruct((T, B, layer_sizes[-1]), out_dtype)]
    for h in layer_sizes:
        out_shapes += [jax.ShapeDtypeStruct((B, h), out_dtype),
                       jax.ShapeDtypeStruct((B, h), out_dtype)]

    # Only remaining large VMEM resident: layer-0 gate inputs, stored bf16.
    scratch = [pltpu.VMEM((T * B, 4 * layer_sizes[0]), jnp.bfloat16)]

    unroll = True if T <= 32 else 4
    kernel = _make_fused_lstm_kernel(T, B, tuple(layer_sizes), use_ln, unroll)
    vmem = pl.BlockSpec(memory_space=pltpu.MemorySpace.VMEM)

    return pl.pallas_call(
        kernel,
        out_shape=tuple(out_shapes),
        in_specs=[vmem] * len(inputs),
        out_specs=tuple(vmem for _ in out_shapes),
        scratch_shapes=scratch,
        compiler_params=pltpu.CompilerParams(vmem_limit_bytes=_vmem_limit_bytes()),
    )(*inputs)


# ---------------------------------------------------------------------------
# Module wrapper
# ---------------------------------------------------------------------------
def _reorder_ifgo_to_ifog(w, h):
    """Reorder PyTorch LSTM gate blocks [i, f, g, o] -> [i, f, o, g] along axis 0."""
    return jnp.concatenate([w[:2 * h], w[3 * h:], w[2 * h:3 * h]], axis=0)


class MultiLayerLSTMPallas:
    """JAX/Pallas port of MultiLayerLSTM's forward pass (batch-first input)."""

    def __init__(self, input_size, layer_sizes=(64, 64), dropout=0.5,
                 use_layer_norm=False, key=None):
        # NOTE: dropout is a forward no-op for single-layer nn.LSTM (parity only).
        self.input_size = input_size
        self.layer_sizes = list(layer_sizes)
        self.dropout = dropout
        self.use_layer_norm = use_layer_norm
        self.params = []     # PyTorch gate order (reference path)
        self.kparams = []    # reordered [i,f,o,g], bf16 weights (kernel path)
        self.ln_params = []  # (gamma, beta) per layer

        if key is None:
            key = jax.random.PRNGKey(0)
        d_in = input_size
        for h in self.layer_sizes:
            key, k1, k2, k3, k4 = jax.random.split(key, 5)
            bound = 1.0 / math.sqrt(h)   # nn.LSTM default init U(-1/sqrt(H), 1/sqrt(H))
            w_ih = jax.random.uniform(k1, (4 * h, d_in), jnp.float32, -bound, bound)
            w_hh = jax.random.uniform(k2, (4 * h, h), jnp.float32, -bound, bound)
            b_ih = jax.random.uniform(k3, (4 * h,), jnp.float32, -bound, bound)
            b_hh = jax.random.uniform(k4, (4 * h,), jnp.float32, -bound, bound)
            b_sum = b_ih + b_hh
            # reference params (original [i,f,g,o] order, f32)
            self.params.append(dict(
                w_ih_t=jnp.asarray(w_ih.T),                 # (D, 4H)
                w_hh_t=jnp.asarray(w_hh.T),                 # (H, 4H)
                b=jnp.asarray(b_sum[None, :]),              # (1, 4H)
            ))
            # kernel params (reordered [i,f,o,g]; bf16 matmul operands)
            self.kparams.append(dict(
                w_ih_r=_reorder_ifgo_to_ifog(w_ih, h).T.astype(jnp.bfloat16),  # (D, 4H)
                w_hh_r=_reorder_ifgo_to_ifog(w_hh, h).T.astype(jnp.bfloat16),  # (H, 4H)
                b_r=_reorder_ifgo_to_ifog(b_sum, h)[None, :],                  # (1, 4H) f32
            ))
            self.ln_params.append((jnp.ones((h,), jnp.float32),
                                   jnp.zeros((h,), jnp.float32)))
            d_in = h

    def create_hiddens(self, batch_size=1):
        return [(jnp.zeros((1, batch_size, h), jnp.float32),
                 jnp.zeros((1, batch_size, h), jnp.float32))
                for h in self.layer_sizes]

    def __call__(self, x, hiddens=None):
        """x: (B, T, input_size). Returns (y (B,T,H_last), [(h_n, c_n), ...])."""
        B = x.shape[0]
        if hiddens is None:
            hiddens = self.create_hiddens(B)
        x_tbd = jnp.transpose(x, (1, 0, 2))             # (T, B, D)
        T = x_tbd.shape[0]
        x2d = x_tbd.reshape(T * B, self.input_size).astype(jnp.bfloat16)

        h0s = [h[0] for (h, _) in hiddens]
        c0s = [c[0] for (_, c) in hiddens]
        outs = fused_lstm_stack(
            x2d, self.kparams, h0s, c0s,
            self.ln_params if self.use_layer_norm else None,
            self.layer_sizes, T, B, x.dtype)

        y_tbd = outs[0]
        new_hiddens = []
        for l in range(len(self.layer_sizes)):
            hn, cn = outs[1 + 2 * l], outs[2 + 2 * l]
            new_hiddens.append((hn[None], cn[None]))
        return jnp.transpose(y_tbd, (1, 0, 2)), new_hiddens

    # Pure-JAX reference (lax.scan, f32, original gate order) for validation.
    def reference_forward(self, x, hiddens=None):
        B = x.shape[0]
        if hiddens is None:
            hiddens = self.create_hiddens(B)
        new_hiddens = []
        x_tbd = jnp.transpose(x, (1, 0, 2))
        for p, (gamma, beta), (h0, c0) in zip(self.params, self.ln_params, hiddens):
            H = p["w_hh_t"].shape[0]

            def cell(carry, x_t, p=p, H=H):
                h, c = carry
                gates = x_t @ p["w_ih_t"] + h @ p["w_hh_t"] + p["b"]
                i = jax.nn.sigmoid(gates[:, 0 * H:1 * H])
                f = jax.nn.sigmoid(gates[:, 1 * H:2 * H])
                g = jnp.tanh(gates[:, 2 * H:3 * H])
                o = jax.nn.sigmoid(gates[:, 3 * H:4 * H])
                c_new = f * c + i * g
                h_new = o * jnp.tanh(c_new)
                return (h_new, c_new), h_new

            (hn, cn), y_tbd = lax.scan(cell, (h0[0], c0[0]), x_tbd)
            if self.use_layer_norm:
                mean = jnp.mean(y_tbd, axis=-1, keepdims=True)
                var = jnp.mean((y_tbd - mean) ** 2, axis=-1, keepdims=True)
                y_tbd = (y_tbd - mean) * lax.rsqrt(var + 1e-5) * gamma + beta
            new_hiddens.append((hn[None], cn[None]))
            x_tbd = y_tbd
        return jnp.transpose(x_tbd, (1, 0, 2)), new_hiddens


if __name__ == "__main__":
    key = jax.random.PRNGKey(0)
    k_x, k_p = jax.random.split(key)

    B, T, D = 2, 8, 16
    layer_sizes = [64, 64]   # module default

    x = jax.random.normal(k_x, (B, T, D), dtype=jnp.float32)
    model = MultiLayerLSTMPallas(D, layer_sizes=layer_sizes, dropout=0.5,
                                 use_layer_norm=False, key=k_p)

    y, new_hiddens = model(x)
    jax.block_until_ready(y)

    # correctness check against pure-JAX f32 reference
    # (kernel uses bf16 MXU operands / bf16 gx0 scratch -> small expected divergence)
    y_ref, hiddens_ref = model.reference_forward(x)
    np.testing.assert_allclose(np.asarray(y), np.asarray(y_ref), rtol=4e-2, atol=4e-2)
    for (hn, cn), (hn_r, cn_r) in zip(new_hiddens, hiddens_ref):
        np.testing.assert_allclose(np.asarray(hn), np.asarray(hn_r), rtol=4e-2, atol=4e-2)
        np.testing.assert_allclose(np.asarray(cn), np.asarray(cn_r), rtol=4e-2, atol=4e-2)

    print("KERNEL_OK")
</pallas_src>

<mosaic_0001>
module attributes {stable_mosaic.version = 11 : i64} {
  func.func @kernel(%arg0: memref<16x16xbf16, #tpu.memory_space<vmem>>, %arg1: memref<16x256xbf16, #tpu.memory_space<vmem>>, %arg2: memref<1x256xf32, #tpu.memory_space<vmem>>, %arg3: memref<64x256xbf16, #tpu.memory_space<vmem>>, %arg4: memref<2x64xf32, #tpu.memory_space<vmem>>, %arg5: memref<2x64xf32, #tpu.memory_space<vmem>>, %arg6: memref<64x256xbf16, #tpu.memory_space<vmem>>, %arg7: memref<1x256xf32, #tpu.memory_space<vmem>>, %arg8: memref<64x256xbf16, #tpu.memory_space<vmem>>, %arg9: memref<2x64xf32, #tpu.memory_space<vmem>>, %arg10: memref<2x64xf32, #tpu.memory_space<vmem>>, %arg11: memref<8x2x64xf32, #tpu.memory_space<vmem>>, %arg12: memref<2x64xf32, #tpu.memory_space<vmem>>, %arg13: memref<2x64xf32, #tpu.memory_space<vmem>>, %arg14: memref<2x64xf32, #tpu.memory_space<vmem>>, %arg15: memref<2x64xf32, #tpu.memory_space<vmem>>, %arg16: memref<16x256xbf16, #tpu.memory_space<vmem>>) attributes {dimension_semantics = [], scalar_prefetch = 0 : i64, scratch_operands = 1 : i64, tpu.core_type = #tpu.core_type<tc>} {
    %c0 = arith.constant 0 : index
    %c0_0 = arith.constant 0 : index
    %0 = vector.load %arg0[%c0, %c0_0] : memref<16x16xbf16, #tpu.memory_space<vmem>>, vector<16x16xbf16>
    %c0_1 = arith.constant 0 : index
    %c0_2 = arith.constant 0 : index
    %1 = vector.load %arg1[%c0_1, %c0_2] : memref<16x256xbf16, #tpu.memory_space<vmem>>, vector<16x256xbf16>
    %cst = arith.constant dense<0.000000e+00> : vector<16x256xf32>
    %2 = tpu.matmul %0, %1, %cst {dimension_numbers = #tpu.dot_dimension_numbers<[1], [0], [0], [1], [0, 0, 1, 1], [], []>} : vector<16x16xbf16>, vector<16x256xbf16>, vector<16x256xf32> -> vector<16x256xf32>
    %c0_3 = arith.constant 0 : index
    %c0_4 = arith.constant 0 : index
    %3 = vector.load %arg2[%c0_3, %c0_4] : memref<1x256xf32, #tpu.memory_space<vmem>>, vector<1x256xf32>
    %4 = vector.broadcast %3 : vector<1x256xf32> to vector<16x256xf32>
    %5 = arith.addf %2, %4 : vector<16x256xf32>
    %6 = arith.truncf %5 : vector<16x256xf32> to vector<16x256xbf16>
    %c0_5 = arith.constant 0 : index
    %c0_6 = arith.constant 0 : index
    %7 = vector.load %arg16[%c0_5, %c0_6] : memref<16x256xbf16, #tpu.memory_space<vmem>>, vector<16x256xbf16>
    tpu.vector_store %arg16[%c0_5, %c0_6], %6 {strides = array<i32>} : memref<16x256xbf16, #tpu.memory_space<vmem>>, vector<16x256xbf16>,
    %c0_7 = arith.constant 0 : index
    %c0_8 = arith.constant 0 : index
    %8 = vector.load %arg4[%c0_7, %c0_8] : memref<2x64xf32, #tpu.memory_space<vmem>>, vector<2x64xf32>
    %c0_9 = arith.constant 0 : index
    %c0_10 = arith.constant 0 : index
    %9 = vector.load %arg9[%c0_9, %c0_10] : memref<2x64xf32, #tpu.memory_space<vmem>>, vector<2x64xf32>
    %c0_11 = arith.constant 0 : index
    %c0_12 = arith.constant 0 : index
    %10 = vector.load %arg5[%c0_11, %c0_12] : memref<2x64xf32, #tpu.memory_space<vmem>>, vector<2x64xf32>
    %c0_13 = arith.constant 0 : index
    %c0_14 = arith.constant 0 : index
    %11 = vector.load %arg10[%c0_13, %c0_14] : memref<2x64xf32, #tpu.memory_space<vmem>>, vector<2x64xf32>
    %c0_i32 = arith.constant 0 : i32
    %c2_i32 = arith.constant 2 : i32
    %12 = arith.muli %c0_i32, %c2_i32 : i32
    %13 = arith.index_cast %12 : i32 to index
    %c0_15 = arith.constant 0 : index
    %14 = vector.load %arg16[%13, %c0_15] : memref<16x256xbf16, #tpu.memory_space<vmem>>, vector<2x256xbf16>
    %15 = arith.extf %14 : vector<2x256xbf16> to vector<2x256xf32>
    %16 = arith.truncf %8 : vector<2x64xf32> to vector<2x64xbf16>
    %c0_16 = arith.constant 0 : index
    %c0_17 = arith.constant 0 : index
    %17 = vector.load %arg3[%c0_16, %c0_17] : memref<64x256xbf16, #tpu.memory_space<vmem>>, vector<64x256xbf16>
    %cst_18 = arith.constant dense<0.000000e+00> : vector<2x256xf32>
    %18 = tpu.matmul %16, %17, %cst_18 {dimension_numbers = #tpu.dot_dimension_numbers<[1], [0], [0], [1], [0, 0, 1, 1], [], []>} : vector<2x64xbf16>, vector<64x256xbf16>, vector<2x256xf32> -> vector<2x256xf32>
    %19 = arith.addf %15, %18 : vector<2x256xf32>
    %20 = vector.extract_strided_slice %19 {offsets = [0, 0], sizes = [2, 192], strides = [1, 1]} : vector<2x256xf32> to vector<2x192xf32>
    %21 = arith.negf %20 : vector<2x192xf32>
    %22 = math.exp %21 : vector<2x192xf32>
    %cst_19 = arith.constant 1.000000e+00 : f32
    %23 = vector.broadcast %cst_19 : f32 to vector<2x192xf32>
    %24 = arith.addf %23, %22 : vector<2x192xf32>
    %25 = arith.divf %23, %24 : vector<2x192xf32>
    %26 = vector.extract_strided_slice %25 {offsets = [0, 0], sizes = [2, 64], strides = [1, 1]} : vector<2x192xf32> to vector<2x64xf32>
    %27 = vector.extract_strided_slice %25 {offsets = [0, 64], sizes = [2, 64], strides = [1, 1]} : vector<2x192xf32> to vector<2x64xf32>
    %28 = vector.extract_strided_slice %25 {offsets = [0, 128], sizes = [2, 64], strides = [1, 1]} : vector<2x192xf32> to vector<2x64xf32>
    %29 = vector.extract_strided_slice %19 {offsets = [0, 192], sizes = [2, 64], strides = [1, 1]} : vector<2x256xf32> to vector<2x64xf32>
    %30 = math.tanh %29 : vector<2x64xf32>
    %31 = arith.mulf %27, %10 : vector<2x64xf32>
    %32 = arith.mulf %26, %30 : vector<2x64xf32>
    %33 = arith.addf %31, %32 : vector<2x64xf32>
    %34 = math.tanh %33 : vector<2x64xf32>
    %35 = arith.mulf %28, %34 : vector<2x64xf32>
    %36 = arith.truncf %35 : vector<2x64xf32> to vector<2x64xbf16>
    %c0_20 = arith.constant 0 : index
    %c0_21 = arith.constant 0 : index
    %37 = vector.load %arg6[%c0_20, %c0_21] : memref<64x256xbf16, #tpu.memory_space<vmem>>, vector<64x256xbf16>
    %cst_22 = arith.constant dense<0.000000e+00> : vector<2x256xf32>
    %38 = tpu.matmul %36, %37, %cst_22 {dimension_numbers = #tpu.dot_dimension_numbers<[1], [0], [0], [1], [0, 0, 1, 1], [], []>} : vector<2x64xbf16>, vector<64x256xbf16>, vector<2x256xf32> -> vector<2x256xf32>
    %39 = arith.truncf %9 : vector<2x64xf32> to vector<2x64xbf16>
    %c0_23 = arith.constant 0 : index
    %c0_24 = arith.constant 0 : index
    %40 = vector.load %arg8[%c0_23, %c0_24] : memref<64x256xbf16, #tpu.memory_space<vmem>>, vector<64x256xbf16>
    %cst_25 = arith.constant dense<0.000000e+00> : vector<2x256xf32>
    %41 = tpu.matmul %39, %40, %cst_25 {dimension_numbers = #tpu.dot_dimension_numbers<[1], [0], [0], [1], [0, 0, 1, 1], [], []>} : vector<2x64xbf16>, vector<64x256xbf16>, vector<2x256xf32> -> vector<2x256xf32>
    %42 = arith.addf %38, %41 : vector<2x256xf32>
    %c0_26 = arith.constant 0 : index
    %c0_27 = arith.constant 0 : index
    %43 = vector.load %arg7[%c0_26, %c0_27] : memref<1x256xf32, #tpu.memory_space<vmem>>, vector<1x256xf32>
    %44 = vector.broadcast %43 : vector<1x256xf32> to vector<2x256xf32>
    %45 = arith.addf %42, %44 : vector<2x256xf32>
    %46 = vector.extract_strided_slice %45 {offsets = [0, 0], sizes = [2, 192], strides = [1, 1]} : vector<2x256xf32> to vector<2x192xf32>
    %47 = arith.negf %46 : vector<2x192xf32>
    %48 = math.exp %47 : vector<2x192xf32>
    %cst_28 = arith.constant 1.000000e+00 : f32
    %49 = vector.broadcast %cst_28 : f32 to vector<2x192xf32>
    %50 = arith.addf %49, %48 : vector<2x192xf32>
    %51 = arith.divf %49, %50 : vector<2x192xf32>
    %52 = vector.extract_strided_slice %51 {offsets = [0, 0], sizes = [2, 64], strides = [1, 1]} : vector<2x192xf32> to vector<2x64xf32>
    %53 = vector.extract_strided_slice %51 {offsets = [0, 64], sizes = [2, 64], strides = [1, 1]} : vector<2x192xf32> to vector<2x64xf32>
    %54 = vector.extract_strided_slice %51 {offsets = [0, 128], sizes = [2, 64], strides = [1, 1]} : vector<2x192xf32> to vector<2x64xf32>
    %55 = vector.extract_strided_slice %45 {offsets = [0, 192], sizes = [2, 64], strides = [1, 1]} : vector<2x256xf32> to vector<2x64xf32>
    %56 = math.tanh %55 : vector<2x64xf32>
    %57 = arith.mulf %53, %11 : vector<2x64xf32>
    %58 = arith.mulf %52, %56 : vector<2x64xf32>
    %59 = arith.addf %57, %58 : vector<2x64xf32>
    %60 = math.tanh %59 : vector<2x64xf32>
    %61 = arith.mulf %54, %60 : vector<2x64xf32>
    %62 = arith.index_cast %c0_i32 : i32 to index
    %c0_29 = arith.constant 0 : index
    %c0_30 = arith.constant 0 : index
    %63 = vector.load %arg11[%62, %c0_29, %c0_30] : memref<8x2x64xf32, #tpu.memory_space<vmem>>, vector<1x2x64xf32>
    %64 = vector.shape_cast %63 : vector<1x2x64xf32> to vector<2x64xf32>
    %65 = vector.shape_cast %61 : vector<2x64xf32> to vector<1x2x64xf32>
    tpu.vector_store %arg11[%62, %c0_29, %c0_30], %65 {strides = array<i32>} : memref<8x2x64xf32, #tpu.memory_space<vmem>>, vector<1x2x64xf32>,
    %c1_i32 = arith.constant 1 : i32
    %c2_i32_31 = arith.constant 2 : i32
    %66 = arith.muli %c1_i32, %c2_i32_31 : i32
    %67 = arith.index_cast %66 : i32 to index
    %c0_32 = arith.constant 0 : index
    %68 = vector.load %arg16[%67, %c0_32] : memref<16x256xbf16, #tpu.memory_space<vmem>>, vector<2x256xbf16>
    %69 = arith.extf %68 : vector<2x256xbf16> to vector<2x256xf32>
    %70 = arith.truncf %35 : vector<2x64xf32> to vector<2x64xbf16>
    %c0_33 = arith.constant 0 : index
    %c0_34 = arith.constant 0 : index
    %71 = vector.load %arg3[%c0_33, %c0_34] : memref<64x256xbf16, #tpu.memory_space<vmem>>, vector<64x256xbf16>
    %cst_35 = arith.constant dense<0.000000e+00> : vector<2x256xf32>
    %72 = tpu.matmul %70, %71, %cst_35 {dimension_numbers = #tpu.dot_dimension_numbers<[1], [0], [0], [1], [0, 0, 1, 1], [], []>} : vector<2x64xbf16>, vector<64x256xbf16>, vector<2x256xf32> -> vector<2x256xf32>
    %73 = arith.addf %69, %72 : vector<2x256xf32>
    %74 = vector.extract_strided_slice %73 {offsets = [0, 0], sizes = [2, 192], strides = [1, 1]} : vector<2x256xf32> to vector<2x192xf32>
    %75 = arith.negf %74 : vector<2x192xf32>
    %76 = math.exp %75 : vector<2x192xf32>
    %cst_36 = arith.constant 1.000000e+00 : f32
    %77 = vector.broadcast %cst_36 : f32 to vector<2x192xf32>
    %78 = arith.addf %77, %76 : vector<2x192xf32>
    %79 = arith.divf %77, %78 : vector<2x192xf32>
    %80 = vector.extract_strided_slice %79 {offsets = [0, 0], sizes = [2, 64], strides = [1, 1]} : vector<2x192xf32> to vector<2x64xf32>
    %81 = vector.extract_strided_slice %79 {offsets = [0, 64], sizes = [2, 64], strides = [1, 1]} : vector<2x192xf32> to vector<2x64xf32>
    %82 = vector.extract_strided_slice %79 {offsets = [0, 128], sizes = [2, 64], strides = [1, 1]} : vector<2x192xf32> to vector<2x64xf32>
    %83 = vector.extract_strided_slice %73 {offsets = [0, 192], sizes = [2, 64], strides = [1, 1]} : vector<2x256xf32> to vector<2x64xf32>
    %84 = math.tanh %83 : vector<2x64xf32>
    %85 = arith.mulf %81, %33 : vector<2x64xf32>
    %86 = arith.mulf %80, %84 : vector<2x64xf32>
    %87 = arith.addf %85, %86 : vector<2x64xf32>
    %88 = math.tanh %87 : vector<2x64xf32>
    %89 = arith.mulf %82, %88 : vector<2x64xf32>
    %90 = arith.truncf %89 : vector<2x64xf32> to vector<2x64xbf16>
    %c0_37 = arith.constant 0 : index
    %c0_38 = arith.constant 0 : index
    %91 = vector.load %arg6[%c0_37, %c0_38] : memref<64x256xbf16, #tpu.memory_space<vmem>>, vector<64x256xbf16>
    %cst_39 = arith.constant dense<0.000000e+00> : vector<2x256xf32>
    %92 = tpu.matmul %90, %91, %cst_39 {dimension_numbers = #tpu.dot_dimension_numbers<[1], [0], [0], [1], [0, 0, 1, 1], [], []>} : vector<2x64xbf16>, vector<64x256xbf16>, vector<2x256xf32> -> vector<2x256xf32>
    %93 = arith.truncf %61 : vector<2x64xf32> to vector<2x64xbf16>
    %c0_40 = arith.constant 0 : index
    %c0_41 = arith.constant 0 : index
    %94 = vector.load %arg8[%c0_40, %c0_41] : memref<64x256xbf16, #tpu.memory_space<vmem>>, vector<64x256xbf16>
    %cst_42 = arith.constant dense<0.000000e+00> : vector<2x256xf32>
    %95 = tpu.matmul %93, %94, %cst_42 {dimension_numbers = #tpu.dot_dimension_numbers<[1], [0], [0], [1], [0, 0, 1, 1], [], []>} : vector<2x64xbf16>, vector<64x256xbf16>, vector<2x256xf32> -> vector<2x256xf32>
    %96 = arith.addf %92, %95 : vector<2x256xf32>
    %c0_43 = arith.constant 0 : index
    %c0_44 = arith.constant 0 : index
    %97 = vector.load %arg7[%c0_43, %c0_44] : memref<1x256xf32, #tpu.memory_space<vmem>>, vector<1x256xf32>
    %98 = vector.broadcast %97 : vector<1x256xf32> to vector<2x256xf32>
    %99 = arith.addf %96, %98 : vector<2x256xf32>
    %100 = vector.extract_strided_slice %99 {offsets = [0, 0], sizes = [2, 192], strides = [1, 1]} : vector<2x256xf32> to vector<2x192xf32>
    %101 = arith.negf %100 : vector<2x192xf32>
    %102 = math.exp %101 : vector<2x192xf32>
    %cst_45 = arith.constant 1.000000e+00 : f32
    %103 = vector.broadcast %cst_45 : f32 to vector<2x192xf32>
    %104 = arith.addf %103, %102 : vector<2x192xf32>
    %105 = arith.divf %103, %104 : vector<2x192xf32>
    %106 = vector.extract_strided_slice %105 {offsets = [0, 0], sizes = [2, 64], strides = [1, 1]} : vector<2x192xf32> to vector<2x64xf32>
    %107 = vector.extract_strided_slice %105 {offsets = [0, 64], sizes = [2, 64], strides = [1, 1]} : vector<2x192xf32> to vector<2x64xf32>
    %108 = vector.extract_strided_slice %105 {offsets = [0, 128], sizes = [2, 64], strides = [1, 1]} : vector<2x192xf32> to vector<2x64xf32>
    %109 = vector.extract_strided_slice %99 {offsets = [0, 192], sizes = [2, 64], strides = [1, 1]} : vector<2x256xf32> to vector<2x64xf32>
    %110 = math.tanh %109 : vector<2x64xf32>
    %111 = arith.mulf %107, %59 : vector<2x64xf32>
    %112 = arith.mulf %106, %110 : vector<2x64xf32>
    %113 = arith.addf %111, %112 : vector<2x64xf32>
    %114 = math.tanh %113 : vector<2x64xf32>
    %115 = arith.mulf %108, %114 : vector<2x64xf32>
    %116 = arith.index_cast %c1_i32 : i32 to index
    %c0_46 = arith.constant 0 : index
    %c0_47 = arith.constant 0 : index
    %117 = vector.load %arg11[%116, %c0_46, %c0_47] : memref<8x2x64xf32, #tpu.memory_space<vmem>>, vector<1x2x64xf32>
    %118 = vector.shape_cast %117 : vector<1x2x64xf32> to vector<2x64xf32>
    %119 = vector.shape_cast %115 : vector<2x64xf32> to vector<1x2x64xf32>
    tpu.vector_store %arg11[%116, %c0_46, %c0_47], %119 {strides = array<i32>} : memref<8x2x64xf32, #tpu.memory_space<vmem>>, vector<1x2x64xf32>,
    %c2_i32_48 = arith.constant 2 : i32
    %c2_i32_49 = arith.constant 2 : i32
    %120 = arith.muli %c2_i32_48, %c2_i32_49 : i32
    %121 = arith.index_cast %120 : i32 to index
    %c0_50 = arith.constant 0 : index
    %122 = vector.load %arg16[%121, %c0_50] : memref<16x256xbf16, #tpu.memory_space<vmem>>, vector<2x256xbf16>
    %123 = arith.extf %122 : vector<2x256xbf16> to vector<2x256xf32>
    %124 = arith.truncf %89 : vector<2x64xf32> to vector<2x64xbf16>
    %c0_51 = arith.constant 0 : index
    %c0_52 = arith.constant 0 : index
    %125 = vector.load %arg3[%c0_51, %c0_52] : memref<64x256xbf16, #tpu.memory_space<vmem>>, vector<64x256xbf16>
    %cst_53 = arith.constant dense<0.000000e+00> : vector<2x256xf32>
    %126 = tpu.matmul %124, %125, %cst_53 {dimension_numbers = #tpu.dot_dimension_numbers<[1], [0], [0], [1], [0, 0, 1, 1], [], []>} : vector<2x64xbf16>, vector<64x256xbf16>, vector<2x256xf32> -> vector<2x256xf32>
    %127 = arith.addf %123, %126 : vector<2x256xf32>
    %128 = vector.extract_strided_slice %127 {offsets = [0, 0], sizes = [2, 192], strides = [1, 1]} : vector<2x256xf32> to vector<2x192xf32>
    %129 = arith.negf %128 : vector<2x192xf32>
    %130 = math.exp %129 : vector<2x192xf32>
    %cst_54 = arith.constant 1.000000e+00 : f32
    %131 = vector.broadcast %cst_54 : f32 to vector<2x192xf32>
    %132 = arith.addf %131, %130 : vector<2x192xf32>
    %133 = arith.divf %131, %132 : vector<2x192xf32>
    %134 = vector.extract_strided_slice %133 {offsets = [0, 0], sizes = [2, 64], strides = [1, 1]} : vector<2x192xf32> to vector<2x64xf32>
    %135 = vector.extract_strided_slice %133 {offsets = [0, 64], sizes = [2, 64], strides = [1, 1]} : vector<2x192xf32> to vector<2x64xf32>
    %136 = vector.extract_strided_slice %133 {offsets = [0, 128], sizes = [2, 64], strides = [1, 1]} : vector<2x192xf32> to vector<2x64xf32>
    %137 = vector.extract_strided_slice %127 {offsets = [0, 192], sizes = [2, 64], strides = [1, 1]} : vector<2x256xf32> to vector<2x64xf32>
    %138 = math.tanh %137 : vector<2x64xf32>
    %139 = arith.mulf %135, %87 : vector<2x64xf32>
    %140 = arith.mulf %134, %138 : vector<2x64xf32>
    %141 = arith.addf %139, %140 : vector<2x64xf32>
    %142 = math.tanh %141 : vector<2x64xf32>
    %143 = arith.mulf %136, %142 : vector<2x64xf32>
    %144 = arith.truncf %143 : vector<2x64xf32> to vector<2x64xbf16>
    %c0_55 = arith.constant 0 : index
    %c0_56 = arith.constant 0 : index
    %145 = vector.load %arg6[%c0_55, %c0_56] : memref<64x256xbf16, #tpu.memory_space<vmem>>, vector<64x256xbf16>
    %cst_57 = arith.constant dense<0.000000e+00> : vector<2x256xf32>
    %146 = tpu.matmul %144, %145, %cst_57 {dimension_numbers = #tpu.dot_dimension_numbers<[1], [0], [0], [1], [0, 0, 1, 1], [], []>} : vector<2x64xbf16>, vector<64x256xbf16>, vector<2x256xf32> -> vector<2x256xf32>
    %147 = arith.truncf %115 : vector<2x64xf32> to vector<2x64xbf16>
    %c0_58 = arith.constant 0 : index
    %c0_59 = arith.constant 0 : index
    %148 = vector.load %arg8[%c0_58, %c0_59] : memref<64x256xbf16, #tpu.memory_space<vmem>>, vector<64x256xbf16>
    %cst_60 = arith.constant dense<0.000000e+00> : vector<2x256xf32>
    %149 = tpu.matmul %147, %148, %cst_60 {dimension_numbers = #tpu.dot_dimension_numbers<[1], [0], [0], [1], [0, 0, 1, 1], [], []>} : vector<2x64xbf16>, vector<64x256xbf16>, vector<2x256xf32> -> vector<2x256xf32>
    %150 = arith.addf %146, %149 : vector<2x256xf32>
    %c0_61 = arith.constant 0 : index
    %c0_62 = arith.constant 0 : index
    %151 = vector.load %arg7[%c0_61, %c0_62] : memref<1x256xf32, #tpu.memory_space<vmem>>, vector<1x256xf32>
    %152 = vector.broadcast %151 : vector<1x256xf32> to vector<2x256xf32>
    %153 = arith.addf %150, %152 : vector<2x256xf32>
    %154 = vector.extract_strided_slice %153 {offsets = [0, 0], sizes = [2, 192], strides = [1, 1]} : vector<2x256xf32> to vector<2x192xf32>
    %155 = arith.negf %154 : vector<2x192xf32>
    %156 = math.exp %155 : vector<2x192xf32>
    %cst_63 = arith.constant 1.000000e+00 : f32
    %157 = vector.broadcast %cst_63 : f32 to vector<2x192xf32>
    %158 = arith.addf %157, %156 : vector<2x192xf32>
    %159 = arith.divf %157, %158 : vector<2x192xf32>
    %160 = vector.extract_strided_slice %159 {offsets = [0, 0], sizes = [2, 64], strides = [1, 1]} : vector<2x192xf32> to vector<2x64xf32>
    %161 = vector.extract_strided_slice %159 {offsets = [0, 64], sizes = [2, 64], strides = [1, 1]} : vector<2x192xf32> to vector<2x64xf32>
    %162 = vector.extract_strided_slice %159 {offsets = [0, 128], sizes = [2, 64], strides = [1, 1]} : vector<2x192xf32> to vector<2x64xf32>
    %163 = vector.extract_strided_slice %153 {offsets = [0, 192], sizes = [2, 64], strides = [1, 1]} : vector<2x256xf32> to vector<2x64xf32>
    %164 = math.tanh %163 : vector<2x64xf32>
    %165 = arith.mulf %161, %113 : vector<2x64xf32>
    %166 = arith.mulf %160, %164 : vector<2x64xf32>
    %167 = arith.addf %165, %166 : vector<2x64xf32>
    %168 = math.tanh %167 : vector<2x64xf32>
    %169 = arith.mulf %162, %168 : vector<2x64xf32>
    %170 = arith.index_cast %c2_i32_48 : i32 to index
    %c0_64 = arith.constant 0 : index
    %c0_65 = arith.constant 0 : index
    %171 = vector.load %arg11[%170, %c0_64, %c0_65] : memref<8x2x64xf32, #tpu.memory_space<vmem>>, vector<1x2x64xf32>
    %172 = vector.shape_cast %171 : vector<1x2x64xf32> to vector<2x64xf32>
    %173 = vector.shape_cast %169 : vector<2x64xf32> to vector<1x2x64xf32>
    tpu.vector_store %arg11[%170, %c0_64, %c0_65], %173 {strides = array<i32>} : memref<8x2x64xf32, #tpu.memory_space<vmem>>, vector<1x2x64xf32>,
    %c3_i32 = arith.constant 3 : i32
    %c2_i32_66 = arith.constant 2 : i32
    %174 = arith.muli %c3_i32, %c2_i32_66 : i32
    %175 = arith.index_cast %174 : i32 to index
    %c0_67 = arith.constant 0 : index
    %176 = vector.load %arg16[%175, %c0_67] : memref<16x256xbf16, #tpu.memory_space<vmem>>, vector<2x256xbf16>
    %177 = arith.extf %176 : vector<2x256xbf16> to vector<2x256xf32>
    %178 = arith.truncf %143 : vector<2x64xf32> to vector<2x64xbf16>
    %c0_68 = arith.constant 0 : index
    %c0_69 = arith.constant 0 : index
    %179 = vector.load %arg3[%c0_68, %c0_69] : memref<64x256xbf16, #tpu.memory_space<vmem>>, vector<64x256xbf16>
    %cst_70 = arith.constant dense<0.000000e+00> : vector<2x256xf32>
    %180 = tpu.matmul %178, %179, %cst_70 {dimension_numbers = #tpu.dot_dimension_numbers<[1], [0], [0], [1], [0, 0, 1, 1], [], []>} : vector<2x64xbf16>, vector<64x256xbf16>, vector<2x256xf32> -> vector<2x256xf32>
    %181 = arith.addf %177, %180 : vector<2x256xf32>
    %182 = vector.extract_strided_slice %181 {offsets = [0, 0], sizes = [2, 192], strides = [1, 1]} : vector<2x256xf32> to vector<2x192xf32>
    %183 = arith.negf %182 : vector<2x192xf32>
    %184 = math.exp %183 : vector<2x192xf32>
    %cst_71 = arith.constant 1.000000e+00 : f32
    %185 = vector.broadcast %cst_71 : f32 to vector<2x192xf32>
    %186 = arith.addf %185, %184 : vector<2x192xf32>
    %187 = arith.divf %185, %186 : vector<2x192xf32>
    %188 = vector.extract_strided_slice %187 {offsets = [0, 0], sizes = [2, 64], strides = [1, 1]} : vector<2x192xf32> to vector<2x64xf32>
    %189 = vector.extract_strided_slice %187 {offsets = [0, 64], sizes = [2, 64], strides = [1, 1]} : vector<2x192xf32> to vector<2x64xf32>
    %190 = vector.extract_strided_slice %187 {offsets = [0, 128], sizes = [2, 64], strides = [1, 1]} : vector<2x192xf32> to vector<2x64xf32>
    %191 = vector.extract_strided_slice %181 {offsets = [0, 192], sizes = [2, 64], strides = [1, 1]} : vector<2x256xf32> to vector<2x64xf32>
    %192 = math.tanh %191 : vector<2x64xf32>
    %193 = arith.mulf %189, %141 : vector<2x64xf32>
    %194 = arith.mulf %188, %192 : vector<2x64xf32>
    %195 = arith.addf %193, %194 : vector<2x64xf32>
    %196 = math.tanh %195 : vector<2x64xf32>
    %197 = arith.mulf %190, %196 : vector<2x64xf32>
    %198 = arith.truncf %197 : vector<2x64xf32> to vector<2x64xbf16>
    %c0_72 = arith.constant 0 : index
    %c0_73 = arith.constant 0 : index
    %199 = vector.load %arg6[%c0_72, %c0_73] : memref<64x256xbf16, #tpu.memory_space<vmem>>, vector<64x256xbf16>
    %cst_74 = arith.constant dense<0.000000e+00> : vector<2x256xf32>
    %200 = tpu.matmul %198, %199, %cst_74 {dimension_numbers = #tpu.dot_dimension_numbers<[1], [0], [0], [1], [0, 0, 1, 1], [], []>} : vector<2x64xbf16>, vector<64x256xbf16>, vector<2x256xf32> -> vector<2x256xf32>
    %201 = arith.truncf %169 : vector<2x64xf32> to vector<2x64xbf16>
    %c0_75 = arith.constant 0 : index
    %c0_76 = arith.constant 0 : index
    %202 = vector.load %arg8[%c0_75, %c0_76] : memref<64x256xbf16, #tpu.memory_space<vmem>>, vector<64x256xbf16>
    %cst_77 = arith.constant dense<0.000000e+00> : vector<2x256xf32>
    %203 = tpu.matmul %201, %202, %cst_77 {dimension_numbers = #tpu.dot_dimension_numbers<[1], [0], [0], [1], [0, 0, 1, 1], [], []>} : vector<2x64xbf16>, vector<64x256xbf16>, vector<2x256xf32> -> vector<2x256xf32>
    %204 = arith.addf %200, %203 : vector<2x256xf32>
    %c0_78 = arith.constant 0 : index
    %c0_79 = arith.constant 0 : index
    %205 = vector.load %arg7[%c0_78, %c0_79] : memref<1x256xf32, #tpu.memory_space<vmem>>, vector<1x256xf32>
    %206 = vector.broadcast %205 : vector<1x256xf32> to vector<2x256xf32>
    %207 = arith.addf %204, %206 : vector<2x256xf32>
    %208 = vector.extract_strided_slice %207 {offsets = [0, 0], sizes = [2, 192], strides = [1, 1]} : vector<2x256xf32> to vector<2x192xf32>
    %209 = arith.negf %208 : vector<2x192xf32>
    %210 = math.exp %209 : vector<2x192xf32>
    %cst_80 = arith.constant 1.000000e+00 : f32
    %211 = vector.broadcast %cst_80 : f32 to vector<2x192xf32>
    %212 = arith.addf %211, %210 : vector<2x192xf32>
    %213 = arith.divf %211, %212 : vector<2x192xf32>
    %214 = vector.extract_strided_slice %213 {offsets = [0, 0], sizes = [2, 64], strides = [1, 1]} : vector<2x192xf32> to vector<2x64xf32>
    %215 = vector.extract_strided_slice %213 {offsets = [0, 64], sizes = [2, 64], strides = [1, 1]} : vector<2x192xf32> to vector<2x64xf32>
    %216 = vector.extract_strided_slice %213 {offsets = [0, 128], sizes = [2, 64], strides = [1, 1]} : vector<2x192xf32> to vector<2x64xf32>
    %217 = vector.extract_strided_slice %207 {offsets = [0, 192], sizes = [2, 64], strides = [1, 1]} : vector<2x256xf32> to vector<2x64xf32>
    %218 = math.tanh %217 : vector<2x64xf32>
    %219 = arith.mulf %215, %167 : vector<2x64xf32>
    %220 = arith.mulf %214, %218 : vector<2x64xf32>
    %221 = arith.addf %219, %220 : vector<2x64xf32>
    %222 = math.tanh %221 : vector<2x64xf32>
    %223 = arith.mulf %216, %222 : vector<2x64xf32>
    %224 = arith.index_cast %c3_i32 : i32 to index
    %c0_81 = arith.constant 0 : index
    %c0_82 = arith.constant 0 : index
    %225 = vector.load %arg11[%224, %c0_81, %c0_82] : memref<8x2x64xf32, #tpu.memory_space<vmem>>, vector<1x2x64xf32>
    %226 = vector.shape_cast %225 : vector<1x2x64xf32> to vector<2x64xf32>
    %227 = vector.shape_cast %223 : vector<2x64xf32> to vector<1x2x64xf32>
    tpu.vector_store %arg11[%224, %c0_81, %c0_82], %227 {strides = array<i32>} : memref<8x2x64xf32, #tpu.memory_space<vmem>>, vector<1x2x64xf32>,
    %c4_i32 = arith.constant 4 : i32
    %c2_i32_83 = arith.constant 2 : i32
    %228 = arith.muli %c4_i32, %c2_i32_83 : i32
    %229 = arith.index_cast %228 : i32 to index
    %c0_84 = arith.constant 0 : index
    %230 = vector.load %arg16[%229, %c0_84] : memref<16x256xbf16, #tpu.memory_space<vmem>>, vector<2x256xbf16>
    %231 = arith.extf %230 : vector<2x256xbf16> to vector<2x256xf32>
    %232 = arith.truncf %197 : vector<2x64xf32> to vector<2x64xbf16>
    %c0_85 = arith.constant 0 : index
    %c0_86 = arith.constant 0 : index
    %233 = vector.load %arg3[%c0_85, %c0_86] : memref<64x256xbf16, #tpu.memory_space<vmem>>, vector<64x256xbf16>
    %cst_87 = arith.constant dense<0.000000e+00> : vector<2x256xf32>
    %234 = tpu.matmul %232, %233, %cst_87 {dimension_numbers = #tpu.dot_dimension_numbers<[1], [0], [0], [1], [0, 0, 1, 1], [], []>} : vector<2x64xbf16>, vector<64x256xbf16>, vector<2x256xf32> -> vector<2x256xf32>
    %235 = arith.addf %231, %234 : vector<2x256xf32>
    %236 = vector.extract_strided_slice %235 {offsets = [0, 0], sizes = [2, 192], strides = [1, 1]} : vector<2x256xf32> to vector<2x192xf32>
    %237 = arith.negf %236 : vector<2x192xf32>
    %238 = math.exp %237 : vector<2x192xf32>
    %cst_88 = arith.constant 1.000000e+00 : f32
    %239 = vector.broadcast %cst_88 : f32 to vector<2x192xf32>
    %240 = arith.addf %239, %238 : vector<2x192xf32>
    %241 = arith.divf %239, %240 : vector<2x192xf32>
    %242 = vector.extract_strided_slice %241 {offsets = [0, 0], sizes = [2, 64], strides = [1, 1]} : vector<2x192xf32> to vector<2x64xf32>
    %243 = vector.extract_strided_slice %241 {offsets = [0, 64], sizes = [2, 64], strides = [1, 1]} : vector<2x192xf32> to vector<2x64xf32>
    %244 = vector.extract_strided_slice %241 {offsets = [0, 128], sizes = [2, 64], strides = [1, 1]} : vector<2x192xf32> to vector<2x64xf32>
    %245 = vector.extract_strided_slice %235 {offsets = [0, 192], sizes = [2, 64], strides = [1, 1]} : vector<2x256xf32> to vector<2x64xf32>
    %246 = math.tanh %245 : vector<2x64xf32>
    %247 = arith.mulf %243, %195 : vector<2x64xf32>
    %248 = arith.mulf %242, %246 : vector<2x64xf32>
    %249 = arith.addf %247, %248 : vector<2x64xf32>
    %250 = math.tanh %249 : vector<2x64xf32>
    %251 = arith.mulf %244, %250 : vector<2x64xf32>
    %252 = arith.truncf %251 : vector<2x64xf32> to vector<2x64xbf16>
    %c0_89 = arith.constant 0 : index
    %c0_90 = arith.constant 0 : index
    %253 = vector.load %arg6[%c0_89, %c0_90] : memref<64x256xbf16, #tpu.memory_space<vmem>>, vector<64x256xbf16>
    %cst_91 = arith.constant dense<0.000000e+00> : vector<2x256xf32>
    %254 = tpu.matmul %252, %253, %cst_91 {dimension_numbers = #tpu.dot_dimension_numbers<[1], [0], [0], [1], [0, 0, 1, 1], [], []>} : vector<2x64xbf16>, vector<64x256xbf16>, vector<2x256xf32> -> vector<2x256xf32>
    %255 = arith.truncf %223 : vector<2x64xf32> to vector<2x64xbf16>
    %c0_92 = arith.constant 0 : index
    %c0_93 = arith.constant 0 : index
    %256 = vector.load %arg8[%c0_92, %c0_93] : memref<64x256xbf16, #tpu.memory_space<vmem>>, vector<64x256xbf16>
    %cst_94 = arith.constant dense<0.000000e+00> : vector<2x256xf32>
    %257 = tpu.matmul %255, %256, %cst_94 {dimension_numbers = #tpu.dot_dimension_numbers<[1], [0], [0], [1], [0, 0, 1, 1], [], []>} : vector<2x64xbf16>, vector<64x256xbf16>, vector<2x256xf32> -> vector<2x256xf32>
    %258 = arith.addf %254, %257 : vector<2x256xf32>
    %c0_95 = arith.constant 0 : index
    %c0_96 = arith.constant 0 : index
    %259 = vector.load %arg7[%c0_95, %c0_96] : memref<1x256xf32, #tpu.memory_space<vmem>>, vector<1x256xf32>
    %260 = vector.broadcast %259 : vector<1x256xf32> to vector<2x256xf32>
    %261 = arith.addf %258, %260 : vector<2x256xf32>
    %262 = vector.extract_strided_slice %261 {offsets = [0, 0], sizes = [2, 192], strides = [1, 1]} : vector<2x256xf32> to vector<2x192xf32>
    %263 = arith.negf %262 : vector<2x192xf32>
    %264 = math.exp %263 : vector<2x192xf32>
    %cst_97 = arith.constant 1.000000e+00 : f32
    %265 = vector.broadcast %cst_97 : f32 to vector<2x192xf32>
    %266 = arith.addf %265, %264 : vector<2x192xf32>
    %267 = arith.divf %265, %266 : vector<2x192xf32>
    %268 = vector.extract_strided_slice %267 {offsets = [0, 0], sizes = [2, 64], strides = [1, 1]} : vector<2x192xf32> to vector<2x64xf32>
    %269 = vector.extract_strided_slice %267 {offsets = [0, 64], sizes = [2, 64], strides = [1, 1]} : vector<2x192xf32> to vector<2x64xf32>
    %270 = vector.extract_strided_slice %267 {offsets = [0, 128], sizes = [2, 64], strides = [1, 1]} : vector<2x192xf32> to vector<2x64xf32>
    %271 = vector.extract_strided_slice %261 {offsets = [0, 192], sizes = [2, 64], strides = [1, 1]} : vector<2x256xf32> to vector<2x64xf32>
    %272 = math.tanh %271 : vector<2x64xf32>
    %273 = arith.mulf %269, %221 : vector<2x64xf32>
    %274 = arith.mulf %268, %272 : vector<2x64xf32>
    %275 = arith.addf %273, %274 : vector<2x64xf32>
    %276 = math.tanh %275 : vector<2x64xf32>
    %277 = arith.mulf %270, %276 : vector<2x64xf32>
    %278 = arith.index_cast %c4_i32 : i32 to index
    %c0_98 = arith.constant 0 : index
    %c0_99 = arith.constant 0 : index
    %279 = vector.load %arg11[%278, %c0_98, %c0_99] : memref<8x2x64xf32, #tpu.memory_space<vmem>>, vector<1x2x64xf32>
    %280 = vector.shape_cast %279 : vector<1x2x64xf32> to vector<2x64xf32>
    %281 = vector.shape_cast %277 : vector<2x64xf32> to vector<1x2x64xf32>
    tpu.vector_store %arg11[%278, %c0_98, %c0_99], %281 {strides = array<i32>} : memref<8x2x64xf32, #tpu.memory_space<vmem>>, vector<1x2x64xf32>,
    %c5_i32 = arith.constant 5 : i32
    %c2_i32_100 = arith.constant 2 : i32
    %282 = arith.muli %c5_i32, %c2_i32_100 : i32
    %283 = arith.index_cast %282 : i32 to index
    %c0_101 = arith.constant 0 : index
    %284 = vector.load %arg16[%283, %c0_101] : memref<16x256xbf16, #tpu.memory_space<vmem>>, vector<2x256xbf16>
    %285 = arith.extf %284 : vector<2x256xbf16> to vector<2x256xf32>
    %286 = arith.truncf %251 : vector<2x64xf32> to vector<2x64xbf16>
    %c0_102 = arith.constant 0 : index
    %c0_103 = arith.constant 0 : index
    %287 = vector.load %arg3[%c0_102, %c0_103] : memref<64x256xbf16, #tpu.memory_space<vmem>>, vector<64x256xbf16>
    %cst_104 = arith.constant dense<0.000000e+00> : vector<2x256xf32>
    %288 = tpu.matmul %286, %287, %cst_104 {dimension_numbers = #tpu.dot_dimension_numbers<[1], [0], [0], [1], [0, 0, 1, 1], [], []>} : vector<2x64xbf16>, vector<64x256xbf16>, vector<2x256xf32> -> vector<2x256xf32>
    %289 = arith.addf %285, %288 : vector<2x256xf32>
    %290 = vector.extract_strided_slice %289 {offsets = [0, 0], sizes = [2, 192], strides = [1, 1]} : vector<2x256xf32> to vector<2x192xf32>
    %291 = arith.negf %290 : vector<2x192xf32>
    %292 = math.exp %291 : vector<2x192xf32>
    %cst_105 = arith.constant 1.000000e+00 : f32
    %293 = vector.broadcast %cst_105 : f32 to vector<2x192xf32>
    %294 = arith.addf %293, %292 : vector<2x192xf32>
    %295 = arith.divf %293, %294 : vector<2x192xf32>
    %296 = vector.extract_strided_slice %295 {offsets = [0, 0], sizes = [2, 64], strides = [1, 1]} : vector<2x192xf32> to vector<2x64xf32>
    %297 = vector.extract_strided_slice %295 {offsets = [0, 64], sizes = [2, 64], strides = [1, 1]} : vector<2x192xf32> to vector<2x64xf32>
    %298 = vector.extract_strided_slice %295 {offsets = [0, 128], sizes = [2, 64], strides = [1, 1]} : vector<2x192xf32> to vector<2x64xf32>
    %299 = vector.extract_strided_slice %289 {offsets = [0, 192], sizes = [2, 64], strides = [1, 1]} : vector<2x256xf32> to vector<2x64xf32>
    %300 = math.tanh %299 : vector<2x64xf32>
    %301 = arith.mulf %297, %249 : vector<2x64xf32>
    %302 = arith.mulf %296, %300 : vector<2x64xf32>
    %303 = arith.addf %301, %302 : vector<2x64xf32>
    %304 = math.tanh %303 : vector<2x64xf32>
    %305 = arith.mulf %298, %304 : vector<2x64xf32>
    %306 = arith.truncf %305 : vector<2x64xf32> to vector<2x64xbf16>
    %c0_106 = arith.constant 0 : index
    %c0_107 = arith.constant 0 : index
    %307 = vector.load %arg6[%c0_106, %c0_107] : memref<64x256xbf16, #tpu.memory_space<vmem>>, vector<64x256xbf16>
    %cst_108 = arith.constant dense<0.000000e+00> : vector<2x256xf32>
    %308 = tpu.matmul %306, %307, %cst_108 {dimension_numbers = #tpu.dot_dimension_numbers<[1], [0], [0], [1], [0, 0, 1, 1], [], []>} : vector<2x64xbf16>, vector<64x256xbf16>, vector<2x256xf32> -> vector<2x256xf32>
    %309 = arith.truncf %277 : vector<2x64xf32> to vector<2x64xbf16>
    %c0_109 = arith.constant 0 : index
    %c0_110 = arith.constant 0 : index
    %310 = vector.load %arg8[%c0_109, %c0_110] : memref<64x256xbf16, #tpu.memory_space<vmem>>, vector<64x256xbf16>
    %cst_111 = arith.constant dense<0.000000e+00> : vector<2x256xf32>
    %311 = tpu.matmul %309, %310, %cst_111 {dimension_numbers = #tpu.dot_dimension_numbers<[1], [0], [0], [1], [0, 0, 1, 1], [], []>} : vector<2x64xbf16>, vector<64x256xbf16>, vector<2x256xf32> -> vector<2x256xf32>
    %312 = arith.addf %308, %311 : vector<2x256xf32>
    %c0_112 = arith.constant 0 : index
    %c0_113 = arith.constant 0 : index
    %313 = vector.load %arg7[%c0_112, %c0_113] : memref<1x256xf32, #tpu.memory_space<vmem>>, vector<1x256xf32>
    %314 = vector.broadcast %313 : vector<1x256xf32> to vector<2x256xf32>
    %315 = arith.addf %312, %314 : vector<2x256xf32>
    %316 = vector.extract_strided_slice %315 {offsets = [0, 0], sizes = [2, 192], strides = [1, 1]} : vector<2x256xf32> to vector<2x192xf32>
    %317 = arith.negf %316 : vector<2x192xf32>
    %318 = math.exp %317 : vector<2x192xf32>
    %cst_114 = arith.constant 1.000000e+00 : f32
    %319 = vector.broadcast %cst_114 : f32 to vector<2x192xf32>
    %320 = arith.addf %319, %318 : vector<2x192xf32>
    %321 = arith.divf %319, %320 : vector<2x192xf32>
    %322 = vector.extract_strided_slice %321 {offsets = [0, 0], sizes = [2, 64], strides = [1, 1]} : vector<2x192xf32> to vector<2x64xf32>
    %323 = vector.extract_strided_slice %321 {offsets = [0, 64], sizes = [2, 64], strides = [1, 1]} : vector<2x192xf32> to vector<2x64xf32>
    %324 = vector.extract_strided_slice %321 {offsets = [0, 128], sizes = [2, 64], strides = [1, 1]} : vector<2x192xf32> to vector<2x64xf32>
    %325 = vector.extract_strided_slice %315 {offsets = [0, 192], sizes = [2, 64], strides = [1, 1]} : vector<2x256xf32> to vector<2x64xf32>
    %326 = math.tanh %325 : vector<2x64xf32>
    %327 = arith.mulf %323, %275 : vector<2x64xf32>
    %328 = arith.mulf %322, %326 : vector<2x64xf32>
    %329 = arith.addf %327, %328 : vector<2x64xf32>
    %330 = math.tanh %329 : vector<2x64xf32>
    %331 = arith.mulf %324, %330 : vector<2x64xf32>
    %332 = arith.index_cast %c5_i32 : i32 to index
    %c0_115 = arith.constant 0 : index
    %c0_116 = arith.constant 0 : index
    %333 = vector.load %arg11[%332, %c0_115, %c0_116] : memref<8x2x64xf32, #tpu.memory_space<vmem>>, vector<1x2x64xf32>
    %334 = vector.shape_cast %333 : vector<1x2x64xf32> to vector<2x64xf32>
    %335 = vector.shape_cast %331 : vector<2x64xf32> to vector<1x2x64xf32>
    tpu.vector_store %arg11[%332, %c0_115, %c0_116], %335 {strides = array<i32>} : memref<8x2x64xf32, #tpu.memory_space<vmem>>, vector<1x2x64xf32>,
    %c6_i32 = arith.constant 6 : i32
    %c2_i32_117 = arith.constant 2 : i32
    %336 = arith.muli %c6_i32, %c2_i32_117 : i32
    %337 = arith.index_cast %336 : i32 to index
    %c0_118 = arith.constant 0 : index
    %338 = vector.load %arg16[%337, %c0_118] : memref<16x256xbf16, #tpu.memory_space<vmem>>, vector<2x256xbf16>
    %339 = arith.extf %338 : vector<2x256xbf16> to vector<2x256xf32>
    %340 = arith.truncf %305 : vector<2x64xf32> to vector<2x64xbf16>
    %c0_119 = arith.constant 0 : index
    %c0_120 = arith.constant 0 : index
    %341 = vector.load %arg3[%c0_119, %c0_120] : memref<64x256xbf16, #tpu.memory_space<vmem>>, vector<64x256xbf16>
    %cst_121 = arith.constant dense<0.000000e+00> : vector<2x256xf32>
    %342 = tpu.matmul %340, %341, %cst_121 {dimension_numbers = #tpu.dot_dimension_numbers<[1], [0], [0], [1], [0, 0, 1, 1], [], []>} : vector<2x64xbf16>, vector<64x256xbf16>, vector<2x256xf32> -> vector<2x256xf32>
    %343 = arith.addf %339, %342 : vector<2x256xf32>
    %344 = vector.extract_strided_slice %343 {offsets = [0, 0], sizes = [2, 192], strides = [1, 1]} : vector<2x256xf32> to vector<2x192xf32>
    %345 = arith.negf %344 : vector<2x192xf32>
    %346 = math.exp %345 : vector<2x192xf32>
    %cst_122 = arith.constant 1.000000e+00 : f32
    %347 = vector.broadcast %cst_122 : f32 to vector<2x192xf32>
    %348 = arith.addf %347, %346 : vector<2x192xf32>
    %349 = arith.divf %347, %348 : vector<2x192xf32>
    %350 = vector.extract_strided_slice %349 {offsets = [0, 0], sizes = [2, 64], strides = [1, 1]} : vector<2x192xf32> to vector<2x64xf32>
    %351 = vector.extract_strided_slice %349 {offsets = [0, 64], sizes = [2, 64], strides = [1, 1]} : vector<2x192xf32> to vector<2x64xf32>
    %352 = vector.extract_strided_slice %349 {offsets = [0, 128], sizes = [2, 64], strides = [1, 1]} : vector<2x192xf32> to vector<2x64xf32>
    %353 = vector.extract_strided_slice %343 {offsets = [0, 192], sizes = [2, 64], strides = [1, 1]} : vector<2x256xf32> to vector<2x64xf32>
    %354 = math.tanh %353 : vector<2x64xf32>
    %355 = arith.mulf %351, %303 : vector<2x64xf32>
    %356 = arith.mulf %350, %354 : vector<2x64xf32>
    %357 = arith.addf %355, %356 : vector<2x64xf32>
    %358 = math.tanh %357 : vector<2x64xf32>
    %359 = arith.mulf %352, %358 : vector<2x64xf32>
    %360 = arith.truncf %359 : vector<2x64xf32> to vector<2x64xbf16>
    %c0_123 = arith.constant 0 : index
    %c0_124 = arith.constant 0 : index
    %361 = vector.load %arg6[%c0_123, %c0_124] : memref<64x256xbf16, #tpu.memory_space<vmem>>, vector<64x256xbf16>
    %cst_125 = arith.constant dense<0.000000e+00> : vector<2x256xf32>
    %362 = tpu.matmul %360, %361, %cst_125 {dimension_numbers = #tpu.dot_dimension_numbers<[1], [0], [0], [1], [0, 0, 1, 1], [], []>} : vector<2x64xbf16>, vector<64x256xbf16>, vector<2x256xf32> -> vector<2x256xf32>
    %363 = arith.truncf %331 : vector<2x64xf32> to vector<2x64xbf16>
    %c0_126 = arith.constant 0 : index
    %c0_127 = arith.constant 0 : index
    %364 = vector.load %arg8[%c0_126, %c0_127] : memref<64x256xbf16, #tpu.memory_space<vmem>>, vector<64x256xbf16>
    %cst_128 = arith.constant dense<0.000000e+00> : vector<2x256xf32>
    %365 = tpu.matmul %363, %364, %cst_128 {dimension_numbers = #tpu.dot_dimension_numbers<[1], [0], [0], [1], [0, 0, 1, 1], [], []>} : vector<2x64xbf16>, vector<64x256xbf16>, vector<2x256xf32> -> vector<2x256xf32>
    %366 = arith.addf %362, %365 : vector<2x256xf32>
    %c0_129 = arith.constant 0 : index
    %c0_130 = arith.constant 0 : index
    %367 = vector.load %arg7[%c0_129, %c0_130] : memref<1x256xf32, #tpu.memory_space<vmem>>, vector<1x256xf32>
    %368 = vector.broadcast %367 : vector<1x256xf32> to vector<2x256xf32>
    %369 = arith.addf %366, %368 : vector<2x256xf32>
    %370 = vector.extract_strided_slice %369 {offsets = [0, 0], sizes = [2, 192], strides = [1, 1]} : vector<2x256xf32> to vector<2x192xf32>
    %371 = arith.negf %370 : vector<2x192xf32>
    %372 = math.exp %371 : vector<2x192xf32>
    %cst_131 = arith.constant 1.000000e+00 : f32
    %373 = vector.broadcast %cst_131 : f32 to vector<2x192xf32>
    %374 = arith.addf %373, %372 : vector<2x192xf32>
    %375 = arith.divf %373, %374 : vector<2x192xf32>
    %376 = vector.extract_strided_slice %375 {offsets = [0, 0], sizes = [2, 64], strides = [1, 1]} : vector<2x192xf32> to vector<2x64xf32>
    %377 = vector.extract_strided_slice %375 {offsets = [0, 64], sizes = [2, 64], strides = [1, 1]} : vector<2x192xf32> to vector<2x64xf32>
    %378 = vector.extract_strided_slice %375 {offsets = [0, 128], sizes = [2, 64], strides = [1, 1]} : vector<2x192xf32> to vector<2x64xf32>
    %379 = vector.extract_strided_slice %369 {offsets = [0, 192], sizes = [2, 64], strides = [1, 1]} : vector<2x256xf32> to vector<2x64xf32>
    %380 = math.tanh %379 : vector<2x64xf32>
    %381 = arith.mulf %377, %329 : vector<2x64xf32>
    %382 = arith.mulf %376, %380 : vector<2x64xf32>
    %383 = arith.addf %381, %382 : vector<2x64xf32>
    %384 = math.tanh %383 : vector<2x64xf32>
    %385 = arith.mulf %378, %384 : vector<2x64xf32>
    %386 = arith.index_cast %c6_i32 : i32 to index
    %c0_132 = arith.constant 0 : index
    %c0_133 = arith.constant 0 : index
    %387 = vector.load %arg11[%386, %c0_132, %c0_133] : memref<8x2x64xf32, #tpu.memory_space<vmem>>, vector<1x2x64xf32>
    %388 = vector.shape_cast %387 : vector<1x2x64xf32> to vector<2x64xf32>
    %389 = vector.shape_cast %385 : vector<2x64xf32> to vector<1x2x64xf32>
    tpu.vector_store %arg11[%386, %c0_132, %c0_133], %389 {strides = array<i32>} : memref<8x2x64xf32, #tpu.memory_space<vmem>>, vector<1x2x64xf32>,
    %c7_i32 = arith.constant 7 : i32
    %c2_i32_134 = arith.constant 2 : i32
    %390 = arith.muli %c7_i32, %c2_i32_134 : i32
    %391 = arith.index_cast %390 : i32 to index
    %c0_135 = arith.constant 0 : index
    %392 = vector.load %arg16[%391, %c0_135] : memref<16x256xbf16, #tpu.memory_space<vmem>>, vector<2x256xbf16>
    %393 = arith.extf %392 : vector<2x256xbf16> to vector<2x256xf32>
    %394 = arith.truncf %359 : vector<2x64xf32> to vector<2x64xbf16>
    %c0_136 = arith.constant 0 : index
    %c0_137 = arith.constant 0 : index
    %395 = vector.load %arg3[%c0_136, %c0_137] : memref<64x256xbf16, #tpu.memory_space<vmem>>, vector<64x256xbf16>
    %cst_138 = arith.constant dense<0.000000e+00> : vector<2x256xf32>
    %396 = tpu.matmul %394, %395, %cst_138 {dimension_numbers = #tpu.dot_dimension_numbers<[1], [0], [0], [1], [0, 0, 1, 1], [], []>} : vector<2x64xbf16>, vector<64x256xbf16>, vector<2x256xf32> -> vector<2x256xf32>
    %397 = arith.addf %393, %396 : vector<2x256xf32>
    %398 = vector.extract_strided_slice %397 {offsets = [0, 0], sizes = [2, 192], strides = [1, 1]} : vector<2x256xf32> to vector<2x192xf32>
    %399 = arith.negf %398 : vector<2x192xf32>
    %400 = math.exp %399 : vector<2x192xf32>
    %cst_139 = arith.constant 1.000000e+00 : f32
    %401 = vector.broadcast %cst_139 : f32 to vector<2x192xf32>
    %402 = arith.addf %401, %400 : vector<2x192xf32>
    %403 = arith.divf %401, %402 : vector<2x192xf32>
    %404 = vector.extract_strided_slice %403 {offsets = [0, 0], sizes = [2, 64], strides = [1, 1]} : vector<2x192xf32> to vector<2x64xf32>
    %405 = vector.extract_strided_slice %403 {offsets = [0, 64], sizes = [2, 64], strides = [1, 1]} : vector<2x192xf32> to vector<2x64xf32>
    %406 = vector.extract_strided_slice %403 {offsets = [0, 128], sizes = [2, 64], strides = [1, 1]} : vector<2x192xf32> to vector<2x64xf32>
    %407 = vector.extract_strided_slice %397 {offsets = [0, 192], sizes = [2, 64], strides = [1, 1]} : vector<2x256xf32> to vector<2x64xf32>
    %408 = math.tanh %407 : vector<2x64xf32>
    %409 = arith.mulf %405, %357 : vector<2x64xf32>
    %410 = arith.mulf %404, %408 : vector<2x64xf32>
    %411 = arith.addf %409, %410 : vector<2x64xf32>
    %412 = math.tanh %411 : vector<2x64xf32>
    %413 = arith.mulf %406, %412 : vector<2x64xf32>
    %414 = arith.truncf %413 : vector<2x64xf32> to vector<2x64xbf16>
    %c0_140 = arith.constant 0 : index
    %c0_141 = arith.constant 0 : index
    %415 = vector.load %arg6[%c0_140, %c0_141] : memref<64x256xbf16, #tpu.memory_space<vmem>>, vector<64x256xbf16>
    %cst_142 = arith.constant dense<0.000000e+00> : vector<2x256xf32>
    %416 = tpu.matmul %414, %415, %cst_142 {dimension_numbers = #tpu.dot_dimension_numbers<[1], [0], [0], [1], [0, 0, 1, 1], [], []>} : vector<2x64xbf16>, vector<64x256xbf16>, vector<2x256xf32> -> vector<2x256xf32>
    %417 = arith.truncf %385 : vector<2x64xf32> to vector<2x64xbf16>
    %c0_143 = arith.constant 0 : index
    %c0_144 = arith.constant 0 : index
    %418 = vector.load %arg8[%c0_143, %c0_144] : memref<64x256xbf16, #tpu.memory_space<vmem>>, vector<64x256xbf16>
    %cst_145 = arith.constant dense<0.000000e+00> : vector<2x256xf32>
    %419 = tpu.matmul %417, %418, %cst_145 {dimension_numbers = #tpu.dot_dimension_numbers<[1], [0], [0], [1], [0, 0, 1, 1], [], []>} : vector<2x64xbf16>, vector<64x256xbf16>, vector<2x256xf32> -> vector<2x256xf32>
    %420 = arith.addf %416, %419 : vector<2x256xf32>
    %c0_146 = arith.constant 0 : index
    %c0_147 = arith.constant 0 : index
    %421 = vector.load %arg7[%c0_146, %c0_147] : memref<1x256xf32, #tpu.memory_space<vmem>>, vector<1x256xf32>
    %422 = vector.broadcast %421 : vector<1x256xf32> to vector<2x256xf32>
    %423 = arith.addf %420, %422 : vector<2x256xf32>
    %424 = vector.extract_strided_slice %423 {offsets = [0, 0], sizes = [2, 192], strides = [1, 1]} : vector<2x256xf32> to vector<2x192xf32>
    %425 = arith.negf %424 : vector<2x192xf32>
    %426 = math.exp %425 : vector<2x192xf32>
    %cst_148 = arith.constant 1.000000e+00 : f32
    %427 = vector.broadcast %cst_148 : f32 to vector<2x192xf32>
    %428 = arith.addf %427, %426 : vector<2x192xf32>
    %429 = arith.divf %427, %428 : vector<2x192xf32>
    %430 = vector.extract_strided_slice %429 {offsets = [0, 0], sizes = [2, 64], strides = [1, 1]} : vector<2x192xf32> to vector<2x64xf32>
    %431 = vector.extract_strided_slice %429 {offsets = [0, 64], sizes = [2, 64], strides = [1, 1]} : vector<2x192xf32> to vector<2x64xf32>
    %432 = vector.extract_strided_slice %429 {offsets = [0, 128], sizes = [2, 64], strides = [1, 1]} : vector<2x192xf32> to vector<2x64xf32>
    %433 = vector.extract_strided_slice %423 {offsets = [0, 192], sizes = [2, 64], strides = [1, 1]} : vector<2x256xf32> to vector<2x64xf32>
    %434 = math.tanh %433 : vector<2x64xf32>
    %435 = arith.mulf %431, %383 : vector<2x64xf32>
    %436 = arith.mulf %430, %434 : vector<2x64xf32>
    %437 = arith.addf %435, %436 : vector<2x64xf32>
    %438 = math.tanh %437 : vector<2x64xf32>
    %439 = arith.mulf %432, %438 : vector<2x64xf32>
    %440 = arith.index_cast %c7_i32 : i32 to index
    %c0_149 = arith.constant 0 : index
    %c0_150 = arith.constant 0 : index
    %441 = vector.load %arg11[%440, %c0_149, %c0_150] : memref<8x2x64xf32, #tpu.memory_space<vmem>>, vector<1x2x64xf32>
    %442 = vector.shape_cast %441 : vector<1x2x64xf32> to vector<2x64xf32>
    %443 = vector.shape_cast %439 : vector<2x64xf32> to vector<1x2x64xf32>
    tpu.vector_store %arg11[%440, %c0_149, %c0_150], %443 {strides = array<i32>} : memref<8x2x64xf32, #tpu.memory_space<vmem>>, vector<1x2x64xf32>,
    %c8_i32 = arith.constant 8 : i32
    %c0_151 = arith.constant 0 : index
    %c0_152 = arith.constant 0 : index
    %444 = vector.load %arg12[%c0_151, %c0_152] : memref<2x64xf32, #tpu.memory_space<vmem>>, vector<2x64xf32>
    tpu.vector_store %arg12[%c0_151, %c0_152], %413 {strides = array<i32>} : memref<2x64xf32, #tpu.memory_space<vmem>>, vector<2x64xf32>,
    %c0_153 = arith.constant 0 : index
    %c0_154 = arith.constant 0 : index
    %445 = vector.load %arg13[%c0_153, %c0_154] : memref<2x64xf32, #tpu.memory_space<vmem>>, vector<2x64xf32>
    tpu.vector_store %arg13[%c0_153, %c0_154], %411 {strides = array<i32>} : memref<2x64xf32, #tpu.memory_space<vmem>>, vector<2x64xf32>,
    %c0_155 = arith.constant 0 : index
    %c0_156 = arith.constant 0 : index
    %446 = vector.load %arg14[%c0_155, %c0_156] : memref<2x64xf32, #tpu.memory_space<vmem>>, vector<2x64xf32>
    tpu.vector_store %arg14[%c0_155, %c0_156], %439 {strides = array<i32>} : memref<2x64xf32, #tpu.memory_space<vmem>>, vector<2x64xf32>,
    %c0_157 = arith.constant 0 : index
    %c0_158 = arith.constant 0 : index
    %447 = vector.load %arg15[%c0_157, %c0_158] : memref<2x64xf32, #tpu.memory_space<vmem>>, vector<2x64xf32>
    tpu.vector_store %arg15[%c0_157, %c0_158], %437 {strides = array<i32>} : memref<2x64xf32, #tpu.memory_space<vmem>>, vector<2x64xf32>,
    return
  }
}

</mosaic_0001>

<llo_original>
// kernel: tpu_custom_call.1
$region0: #{tpu_custom_call.1}
  #allocation0 [shape = 'u32[]', space=smem, size = 0x4, offset = 0x4, fixed_abs, tag = 'smem constant byte address 0x4 - core index']
  #allocation1 [shape = 'u32[144,128]{1,0:T(1,128)}', space=vmem, size = 0x12000, scoped, tag = 'internal scratch']
  #allocation2 [shape = 'bf16[16,256]{1,0:T(16,128)(2,1)}', space=vmem, size = 0x2000, scoped, tag = 'scratch operand']
  %s0 = inlined_call_operand.hbm [shape: bf16[16,16], index: 0, kind: input, shape index: {}]
  %s1 = inlined_call_operand.hbm [shape: bf16[16,256], index: 1, kind: input, shape index: {}]
  %s2 = inlined_call_operand.hbm [shape: f32[1,256], index: 2, kind: input, shape index: {}]
  %s3 = inlined_call_operand.hbm [shape: bf16[64,256], index: 3, kind: input, shape index: {}]
  %s4 = inlined_call_operand.hbm [shape: f32[2,64], index: 4, kind: input, shape index: {}]
  %s5 = inlined_call_operand.hbm [shape: f32[2,64], index: 5, kind: input, shape index: {}]
  %s6 = inlined_call_operand.hbm [shape: bf16[64,256], index: 6, kind: input, shape index: {}]
  %s7 = inlined_call_operand.hbm [shape: f32[1,256], index: 7, kind: input, shape index: {}]
  %s8 = inlined_call_operand.hbm [shape: bf16[64,256], index: 8, kind: input, shape index: {}]
  %s9 = inlined_call_operand.hbm [shape: f32[2,64], index: 9, kind: input, shape index: {}]
  %s10 = inlined_call_operand.hbm [shape: f32[2,64], index: 10, kind: input, shape index: {}]
  %s11 = inlined_call_operand.hbm [shape: f32[8,2,64], index: 11, kind: output, shape index: {0}]
  %s12 = inlined_call_operand.hbm [shape: f32[2,64], index: 12, kind: output, shape index: {1}]
  %s13 = inlined_call_operand.hbm [shape: f32[2,64], index: 13, kind: output, shape index: {2}]
  %s14 = inlined_call_operand.hbm [shape: f32[2,64], index: 14, kind: output, shape index: {3}]
  %s15 = inlined_call_operand.hbm [shape: f32[2,64], index: 15, kind: output, shape index: {4}]
  %16 = xla_tuple %s11, %s12, %s13, %s14, %s15
  %s17 = sld [smem:[#allocation0]]
  $region130: #{tpu_custom_call.1} parent=0
    _
  %s19 = ssub.s32 1, %s17
  %s20 = scalar_select 0, %s19, %s17
  $region1: #{tpu_custom_call.1} parent=0
    #allocation3 [shape = 'u8[4096]{0}', space=vmem, size = 0x1000, scoped, tag = 'input window, operand 0, single buffered']
    #allocation4 [shape = 's32[1]{0}', space=sflag, size = 0x4, scoped, tag = 'scoped memory for tpu_custom_call.1']
    #allocation5 [shape = 's32[1]{0}', space=sflag, size = 0x4, scoped, tag = 'scoped memory for tpu_custom_call.1']
    #allocation6 [shape = 'u8[8192]{0}', space=vmem, size = 0x2000, scoped, tag = 'input window, operand 1, single buffered']
    #allocation7 [shape = 's32[1]{0}', space=sflag, size = 0x4, scoped, tag = 'scoped memory for tpu_custom_call.1']
    #allocation8 [shape = 'u8[1024]{0}', space=vmem, size = 0x400, scoped, tag = 'input window, operand 2, single buffered']
    #allocation9 [shape = 'u8[32768]{0}', space=vmem, size = 0x8000, scoped, tag = 'input window, operand 3, single buffered']
    #allocation10 [shape = 's32[1]{0}', space=sflag, size = 0x4, scoped, tag = 'scoped memory for tpu_custom_call.1']
    #allocation11 [shape = 'u8[1024]{0}', space=vmem, size = 0x400, scoped, tag = 'input window, operand 4, single buffered']
    #allocation12 [shape = 'u8[1024]{0}', space=vmem, size = 0x400, scoped, tag = 'input window, operand 5, single buffered']
    #allocation13 [shape = 's32[1]{0}', space=sflag, size = 0x4, scoped, tag = 'scoped memory for tpu_custom_call.1']
    #allocation14 [shape = 'u8[32768]{0}', space=vmem, size = 0x8000, scoped, tag = 'input window, operand 6, single buffered']
    #allocation15 [shape = 'u8[1024]{0}', space=vmem, size = 0x400, scoped, tag = 'input window, operand 7, single buffered']
    #allocation16 [shape = 's32[1]{0}', space=sflag, size = 0x4, scoped, tag = 'scoped memory for tpu_custom_call.1']
    #allocation17 [shape = 'u8[32768]{0}', space=vmem, size = 0x8000, scoped, tag = 'input window, operand 8, single buffered']
    #allocation18 [shape = 'u8[1024]{0}', space=vmem, size = 0x400, scoped, tag = 'input window, operand 9, single buffered']
    #allocation19 [shape = 's32[1]{0}', space=sflag, size = 0x4, scoped, tag = 'scoped memory for tpu_custom_call.1']
    #allocation20 [shape = 'u8[1024]{0}', space=vmem, size = 0x400, scoped, tag = 'input window, operand 10, single buffered']
    #allocation21 [shape = 'u8[8192]{0}', space=vmem, size = 0x2000, scoped, tag = 'output window, operand 0, single buffered']
    #allocation22 [shape = 'u8[1024]{0}', space=vmem, size = 0x400, scoped, tag = 'output window, operand 1, single buffered']
    #allocation23 [shape = 's32[1]{0}', space=sflag, size = 0x4, scoped, tag = 'scoped memory for tpu_custom_call.1']
    #allocation24 [shape = 'u8[1024]{0}', space=vmem, size = 0x400, scoped, tag = 'output window, operand 2, single buffered']
    #allocation25 [shape = 'u8[1024]{0}', space=vmem, size = 0x400, scoped, tag = 'output window, operand 3, single buffered']
    #allocation26 [shape = 's32[1]{0}', space=sflag, size = 0x4, scoped, tag = 'scoped memory for tpu_custom_call.1']
    #allocation27 [shape = 'u8[1024]{0}', space=vmem, size = 0x400, scoped, tag = 'output window, operand 4, single buffered']
    %21 = vsyncpa [#allocation4], 0
    %22 = vsyncpa [#allocation7], 0
    %23 = vsyncpa [#allocation10], 0
    %24 = vsyncpa [#allocation13], 0
    %25 = vsyncpa [#allocation16], 0
    %26 = vsyncpa [#allocation19], 0
    %27 = vsyncpa [#allocation5], 0
    %28 = vsyncpa [#allocation23], 0
    %29 = vsyncpa [#allocation26], 0
    // Predicated region
    $region2: #{tpu_custom_call.1} parent=1 // pred_check
      _
    $region3: #{tpu_custom_call.1} parent=1 // pred_check_branch
      %31 = sbr.rel (0) target = $region5
    $region4: #{tpu_custom_call.1} parent=1 // pred_region
      %s33 = ssub.s32 128, 128
      %34 = vsyncadd [#allocation4], %s33
      %s35 = sshll.u32 [#allocation3], 4
      %s36 = int_to_ptr.vmem [resolvable:$true] %s35
      %41 = dma.hbm_to_vmem [thread:$0]  %s0, 128, %s36, [#allocation4], 64, 64, 4
    $region5: #{tpu_custom_call.1} parent=1 // pred_fallthru
      _
    // Predicated region
    $region6: #{tpu_custom_call.1} parent=1 // pred_check
      _
    $region7: #{tpu_custom_call.1} parent=1 // pred_check_branch
      %43 = sbr.rel (0) target = $region9
    $region8: #{tpu_custom_call.1} parent=1 // pred_region
      %s45 = ssub.s32 256, 256
      %46 = vsyncadd [#allocation7], %s45
      %s47 = sshll.u32 [#allocation6], 4
      %s48 = int_to_ptr.vmem [resolvable:$true] %s47
      %53 = dma.hbm_to_vmem [thread:$0]  %s1, 256, %s48, [#allocation7], 128, 128, 8
    $region9: #{tpu_custom_call.1} parent=1 // pred_fallthru
      _
    // Predicated region
    $region10: #{tpu_custom_call.1} parent=1 // pred_check
      _
    $region11: #{tpu_custom_call.1} parent=1 // pred_check_branch
      %55 = sbr.rel (0) target = $region13
    $region12: #{tpu_custom_call.1} parent=1 // pred_region
      %s57 = ssub.s32 32, 32
      %58 = vsyncadd [#allocation7], %s57
      %s60 = sshll.u32 [#allocation8], 4
      %s61 = int_to_ptr.vmem [resolvable:$true] %s60
      %63 = dma.hbm_to_vmem [thread:$0]  %s2, 32, %s61, [#allocation7]
    $region13: #{tpu_custom_call.1} parent=1 // pred_fallthru
      _
    // Predicated region
    $region14: #{tpu_custom_call.1} parent=1 // pred_check
      _
    $region15: #{tpu_custom_call.1} parent=1 // pred_check_branch
      %65 = sbr.rel (0) target = $region17
    $region16: #{tpu_custom_call.1} parent=1 // pred_region
      %s67 = ssub.s32 1024, 1024
      %68 = vsyncadd [#allocation10], %s67
      %s69 = sshll.u32 [#allocation9], 4
      %s70 = int_to_ptr.vmem [resolvable:$true] %s69
      %75 = dma.hbm_to_vmem [thread:$0]  %s3, 1024, %s70, [#allocation10], 128, 128, 8
    $region17: #{tpu_custom_call.1} parent=1 // pred_fallthru
      _
    // Predicated region
    $region18: #{tpu_custom_call.1} parent=1 // pred_check
      _
    $region19: #{tpu_custom_call.1} parent=1 // pred_check_branch
      %77 = sbr.rel (0) target = $region21
    $region20: #{tpu_custom_call.1} parent=1 // pred_region
      %s79 = ssub.s32 32, 32
      %80 = vsyncadd [#allocation10], %s79
      %s82 = sshll.u32 [#allocation11], 4
      %s83 = int_to_ptr.vmem [resolvable:$true] %s82
      %85 = dma.hbm_to_vmem [thread:$0]  %s4, 32, %s83, [#allocation10]
    $region21: #{tpu_custom_call.1} parent=1 // pred_fallthru
      _
    // Predicated region
    $region22: #{tpu_custom_call.1} parent=1 // pred_check
      _
    $region23: #{tpu_custom_call.1} parent=1 // pred_check_branch
      %87 = sbr.rel (0) target = $region25
    $region24: #{tpu_custom_call.1} parent=1 // pred_region
      %s89 = ssub.s32 32, 32
      %90 = vsyncadd [#allocation13], %s89
      %s92 = sshll.u32 [#allocation12], 4
      %s93 = int_to_ptr.vmem [resolvable:$true] %s92
      %95 = dma.hbm_to_vmem [thread:$0]  %s5, 32, %s93, [#allocation13]
    $region25: #{tpu_custom_call.1} parent=1 // pred_fallthru
      _
    // Predicated region
    $region26: #{tpu_custom_call.1} parent=1 // pred_check
      _
    $region27: #{tpu_custom_call.1} parent=1 // pred_check_branch
      %97 = sbr.rel (0) target = $region29
    $region28: #{tpu_custom_call.1} parent=1 // pred_region
      %s99 = ssub.s32 1024, 1024
      %100 = vsyncadd [#allocation13], %s99
      %s101 = sshll.u32 [#allocation14], 4
      %s102 = int_to_ptr.vmem [resolvable:$true] %s101
      %107 = dma.hbm_to_vmem [thread:$0]  %s6, 1024, %s102, [#allocation13], 128, 128, 8
    $region29: #{tpu_custom_call.1} parent=1 // pred_fallthru
      _
    // Predicated region
    $region30: #{tpu_custom_call.1} parent=1 // pred_check
      _
    $region31: #{tpu_custom_call.1} parent=1 // pred_check_branch
      %109 = sbr.rel (0) target = $region33
    $region32: #{tpu_custom_call.1} parent=1 // pred_region
      %s111 = ssub.s32 32, 32
      %112 = vsyncadd [#allocation16], %s111
      %s114 = sshll.u32 [#allocation15], 4
      %s115 = int_to_ptr.vmem [resolvable:$true] %s114
      %117 = dma.hbm_to_vmem [thread:$0]  %s7, 32, %s115, [#allocation16]
    $region33: #{tpu_custom_call.1} parent=1 // pred_fallthru
      _
    // Predicated region
    $region34: #{tpu_custom_call.1} parent=1 // pred_check
      _
    $region35: #{tpu_custom_call.1} parent=1 // pred_check_branch
      %119 = sbr.rel (0) target = $region37
    $region36: #{tpu_custom_call.1} parent=1 // pred_region
      %s121 = ssub.s32 1024, 1024
      %122 = vsyncadd [#allocation16], %s121
      %s123 = sshll.u32 [#allocation17], 4
      %s124 = int_to_ptr.vmem [resolvable:$true] %s123
      %129 = dma.hbm_to_vmem [thread:$0]  %s8, 1024, %s124, [#allocation16], 128, 128, 8
    $region37: #{tpu_custom_call.1} parent=1 // pred_fallthru
      _
    // Predicated region
    $region38: #{tpu_custom_call.1} parent=1 // pred_check
      _
    $region39: #{tpu_custom_call.1} parent=1 // pred_check_branch
      %131 = sbr.rel (0) target = $region41
    $region40: #{tpu_custom_call.1} parent=1 // pred_region
      %s133 = ssub.s32 32, 32
      %134 = vsyncadd [#allocation19], %s133
      %s136 = sshll.u32 [#allocation18], 4
      %s137 = int_to_ptr.vmem [resolvable:$true] %s136
      %139 = dma.hbm_to_vmem [thread:$0]  %s9, 32, %s137, [#allocation19]
    $region41: #{tpu_custom_call.1} parent=1 // pred_fallthru
      _
    // Predicated region
    $region42: #{tpu_custom_call.1} parent=1 // pred_check
      _
    $region43: #{tpu_custom_call.1} parent=1 // pred_check_branch
      %141 = sbr.rel (0) target = $region45
    $region44: #{tpu_custom_call.1} parent=1 // pred_region
      %s143 = ssub.s32 32, 32
      %144 = vsyncadd [#allocation19], %s143
      %s146 = sshll.u32 [#allocation20], 4
      %s147 = int_to_ptr.vmem [resolvable:$true] %s146
      %149 = dma.hbm_to_vmem [thread:$0]  %s10, 32, %s147, [#allocation19]
    $region45: #{tpu_custom_call.1} parent=1 // pred_fallthru
      _
    // Predicated region
    $region46: #{tpu_custom_call.1} parent=1 // pred_check
      _
    $region47: #{tpu_custom_call.1} parent=1 // pred_check_branch
      %151 = sbr.rel (0) target = $region49
    $region48: #{tpu_custom_call.1} parent=1 // pred_region
      %152 = dma.done [#allocation4], 128
    $region49: #{tpu_custom_call.1} parent=1 // pred_fallthru
      _
    // Predicated region
    $region50: #{tpu_custom_call.1} parent=1 // pred_check
      _
    $region51: #{tpu_custom_call.1} parent=1 // pred_check_branch
      %154 = sbr.rel (0) target = $region53
    $region52: #{tpu_custom_call.1} parent=1 // pred_region
      %155 = dma.done [#allocation7], 256
    $region53: #{tpu_custom_call.1} parent=1 // pred_fallthru
      _
    // Predicated region
    $region54: #{tpu_custom_call.1} parent=1 // pred_check
      _
    $region55: #{tpu_custom_call.1} parent=1 // pred_check_branch
      %157 = sbr.rel (0) target = $region57
    $region56: #{tpu_custom_call.1} parent=1 // pred_region
      %158 = dma.done [#allocation7], 32
    $region57: #{tpu_custom_call.1} parent=1 // pred_fallthru
      _
    // Predicated region
    $region58: #{tpu_custom_call.1} parent=1 // pred_check
      _
    $region59: #{tpu_custom_call.1} parent=1 // pred_check_branch
      %160 = sbr.rel (0) target = $region61
    $region60: #{tpu_custom_call.1} parent=1 // pred_region
      %161 = dma.done [#allocation10], 1024
    $region61: #{tpu_custom_call.1} parent=1 // pred_fallthru
      _
    // Predicated region
    $region62: #{tpu_custom_call.1} parent=1 // pred_check
      _
    $region63: #{tpu_custom_call.1} parent=1 // pred_check_branch
      %163 = sbr.rel (0) target = $region65
    $region64: #{tpu_custom_call.1} parent=1 // pred_region
      %164 = dma.done [#allocation10], 32
    $region65: #{tpu_custom_call.1} parent=1 // pred_fallthru
      _
    // Predicated region
    $region66: #{tpu_custom_call.1} parent=1 // pred_check
      _
    $region67: #{tpu_custom_call.1} parent=1 // pred_check_branch
      %166 = sbr.rel (0) target = $region69
    $region68: #{tpu_custom_call.1} parent=1 // pred_region
      %167 = dma.done [#allocation13], 32
    $region69: #{tpu_custom_call.1} parent=1 // pred_fallthru
      _
    // Predicated region
    $region70: #{tpu_custom_call.1} parent=1 // pred_check
      _
    $region71: #{tpu_custom_call.1} parent=1 // pred_check_branch
      %169 = sbr.rel (0) target = $region73
    $region72: #{tpu_custom_call.1} parent=1 // pred_region
      %170 = dma.done [#allocation13], 1024
    $region73: #{tpu_custom_call.1} parent=1 // pred_fallthru
      _
    // Predicated region
    $region74: #{tpu_custom_call.1} parent=1 // pred_check
      _
    $region75: #{tpu_custom_call.1} parent=1 // pred_check_branch
      %172 = sbr.rel (0) target = $region77
    $region76: #{tpu_custom_call.1} parent=1 // pred_region
      %173 = dma.done [#allocation16], 32
    $region77: #{tpu_custom_call.1} parent=1 // pred_fallthru
      _
    // Predicated region
    $region78: #{tpu_custom_call.1} parent=1 // pred_check
      _
    $region79: #{tpu_custom_call.1} parent=1 // pred_check_branch
      %175 = sbr.rel (0) target = $region81
    $region80: #{tpu_custom_call.1} parent=1 // pred_region
      %176 = dma.done [#allocation16], 1024
    $region81: #{tpu_custom_call.1} parent=1 // pred_fallthru
      _
    // Predicated region
    $region82: #{tpu_custom_call.1} parent=1 // pred_check
      _
    $region83: #{tpu_custom_call.1} parent=1 // pred_check_branch
      %178 = sbr.rel (0) target = $region85
    $region84: #{tpu_custom_call.1} parent=1 // pred_region
      %179 = dma.done [#allocation19], 32
    $region85: #{tpu_custom_call.1} parent=1 // pred_fallthru
      _
    // Predicated region
    $region86: #{tpu_custom_call.1} parent=1 // pred_check
      _
    $region87: #{tpu_custom_call.1} parent=1 // pred_check_branch
      %181 = sbr.rel (0) target = $region89
    $region88: #{tpu_custom_call.1} parent=1 // pred_region
      %182 = dma.done [#allocation19], 32
    $region89: #{tpu_custom_call.1} parent=1 // pred_fallthru
      _
    %v184 = vld [vmem:[#allocation3] sm:$0xf]
    %v185 = vld [vmem:[#allocation3 + $0x4] sm:$0xf]
    %v186 = vld [vmem:[#allocation6] sm:$0xff]
    %v187 = vld [vmem:[#allocation6 + $0x8] sm:$0xff]
    %v188 = vld [vmem:[#allocation8] sm:$0x3]
    %v190 = vlaneseq
    %v191 = vshrl.u32 %v190, 7
    %v192 = vsub.s32 0, %v191
    %v193 = vrot.slane %v188, %v192
    %v194 = vlaneseq
    %v195 = vshrl.u32 %v194, 7
    %v196 = vsub.s32 1, %v195
    %v197 = vrot.slane %v188, %v196
    %v202 = vunpack.c.l.b16 %v184
    %v203 = vunpack.c.l.b16 %v185
    %v204 = vpack.c.b16 %v203, %v202
    %v207 = vunpack.c.l.b16 %v186
    %v208 = vunpack.c.h.b16 %v186
    %v209 = vunpack.c.l.b16 %v187
    %v210 = vunpack.c.h.b16 %v187
    %v211 = vpack.c.b16 %v209, %v207
    %v212 = vpack.c.b16 %v210, %v208
    %vm215 = vcmask 130048
    %v217 = vsel %vm215, %v204, 0
    %219 = vmatprep.subr.bf16.mxu0 %v212
    %220 = vmatpush1.bf16.msra.mxu0 %v211
    %221 = vmatprep.subr.bf16.mxu0 0
    %222 = vmatpush1.bf16.msra.mxu0 0
    %223 = vmatprep.subr.bf16.mxu0 0
    %224 = vmatpush1.bf16.msra.mxu0 0
    %225 = vmatprep.subr.bf16.mxu0 0
    %226 = vmatpush1.bf16.msra.mxu0 0
    %227 = vmatprep.subr.bf16.mxu0 0
    %228 = vmatpush1.bf16.msra.mxu0 0
    %229 = vmatprep.subr.bf16.mxu0 0
    %230 = vmatpush1.bf16.msra.mxu0 0
    %231 = vmatprep.subr.bf16.mxu0 0
    %232 = vmatpush1.bf16.msra.mxu0 0
    %233 = vmatprep.subr.bf16.mxu0 0
    %234 = vmatpush1.bf16.msra.mxu0 0
    %235 = vmatprep.subr.bf16.mxu0 0
    %236 = vmatpush1.bf16.msra.mxu0 0
    %237 = vmatprep.subr.bf16.mxu0 0
    %238 = vmatpush1.bf16.msra.mxu0 0
    %239 = vmatprep.subr.bf16.mxu0 0
    %240 = vmatpush1.bf16.msra.mxu0 0
    %241 = vmatprep.subr.bf16.mxu0 0
    %242 = vmatpush1.bf16.msra.mxu0 0
    %243 = vmatprep.subr.bf16.mxu0 0
    %244 = vmatpush1.bf16.msra.mxu0 0
    %245 = vmatprep.subr.bf16.mxu0 0
    %246 = vmatpush1.bf16.msra.mxu0 0
    %247 = vmatprep.subr.bf16.mxu0 0
    %248 = vmatpush1.bf16.msra.mxu0 0
    %249 = vmatprep.subr.bf16.mxu0 0
    %250 = vmatpush1.bf16.msra.mxu0 0
    %251 = vmatprep.mubr.bf16.mxu0 0
    %252 = vmatmul.mubr.bf16.gmra.mrb[0].mxu0 %v217
    %v253 = vpop.f32.mrb[0].mxu0
    %v254 = vadd.f32 %v193, %v253
    %v255 = vpop.f32.mrb[0].mxu0
    %v256 = vadd.f32 %v197, %v255
    %v257 = vpop.f32.mrb[0].mxu0
    %v258 = vadd.f32 %v193, %v257
    %v259 = vpop.f32.mrb[0].mxu0
    %v260 = vadd.f32 %v197, %v259
    %261 = vdwg.mxu0
    %v262 = vpack.c.bf16 %v258, %v254
    %v263 = vpack.c.bf16 %v260, %v256
    %264 = vst [vmem:[#allocation2] sm:$0xff] %v262
    %265 = vst [vmem:[#allocation2 + $0x8] sm:$0xff] %v263
    %v266 = vld [vmem:[#allocation11] sm:$0x3]
    %v267 = vld [vmem:[#allocation18] sm:$0x3]
    %v268 = vld [vmem:[#allocation12] sm:$0x3]
    %v269 = vld [vmem:[#allocation20] sm:$0x3]
    %v270 = vld [vmem:[#allocation2] sm:$0x1]
    %v271 = vld [vmem:[#allocation2 + $0x8] sm:$0x1]
    %v272 = vunpack.c.l.bf16 %v270
    %v273 = vunpack.c.l.bf16 %v271
    %v274 = vpack.c.bf16 %v266, %v266
    %v275 = vld [vmem:[#allocation9] sm:$0xff]
    %v276 = vld [vmem:[#allocation9 + $0x8] sm:$0xff]
    %v277 = vld [vmem:[#allocation9 + $0x10] sm:$0xff]
    %v278 = vld [vmem:[#allocation9 + $0x18] sm:$0xff]
    %v279 = vld [vmem:[#allocation9 + $0x20] sm:$0xff]
    %v280 = vld [vmem:[#allocation9 + $0x28] sm:$0xff]
    %v281 = vld [vmem:[#allocation9 + $0x30] sm:$0xff]
    %v282 = vld [vmem:[#allocation9 + $0x38] sm:$0xff]
    %v291 = vunpack.c.l.b16 %v275
    %v292 = vunpack.c.h.b16 %v275
    %v293 = vunpack.c.l.b16 %v276
    %v294 = vunpack.c.h.b16 %v276
    %v295 = vunpack.c.l.b16 %v277
    %v296 = vunpack.c.h.b16 %v277
    %v297 = vunpack.c.l.b16 %v278
    %v298 = vunpack.c.h.b16 %v278
    %v299 = vunpack.c.l.b16 %v279
    %v300 = vunpack.c.h.b16 %v279
    %v301 = vunpack.c.l.b16 %v280
    %v302 = vunpack.c.h.b16 %v280
    %v303 = vunpack.c.l.b16 %v281
    %v304 = vunpack.c.h.b16 %v281
    %v305 = vunpack.c.l.b16 %v282
    %v306 = vunpack.c.h.b16 %v282
    %v307 = vpack.c.b16 %v293, %v291
    %v308 = vpack.c.b16 %v294, %v292
    %v309 = vpack.c.b16 %v297, %v295
    %v310 = vpack.c.b16 %v298, %v296
    %v311 = vpack.c.b16 %v301, %v299
    %v312 = vpack.c.b16 %v302, %v300
    %v313 = vpack.c.b16 %v305, %v303
    %v314 = vpack.c.b16 %v306, %v304
    %vm323 = vcmask 523264
    %v325 = vsel %vm323, %v274, 0
    %327 = vmatprep.subr.bf16.mxu0 %v308
    %328 = vmatpush1.bf16.msra.mxu0 %v307
    %329 = vmatprep.subr.bf16.mxu0 %v310
    %330 = vmatpush1.bf16.msra.mxu0 %v309
    %331 = vmatprep.subr.bf16.mxu0 %v312
    %332 = vmatpush1.bf16.msra.mxu0 %v311
    %333 = vmatprep.subr.bf16.mxu0 %v314
    %334 = vmatpush1.bf16.msra.mxu0 %v313
    %335 = vmatprep.subr.bf16.mxu0 0
    %336 = vmatpush1.bf16.msra.mxu0 0
    %337 = vmatprep.subr.bf16.mxu0 0
    %338 = vmatpush1.bf16.msra.mxu0 0
    %339 = vmatprep.subr.bf16.mxu0 0
    %340 = vmatpush1.bf16.msra.mxu0 0
    %341 = vmatprep.subr.bf16.mxu0 0
    %342 = vmatpush1.bf16.msra.mxu0 0
    %343 = vmatprep.subr.bf16.mxu0 0
    %344 = vmatpush1.bf16.msra.mxu0 0
    %345 = vmatprep.subr.bf16.mxu0 0
    %346 = vmatpush1.bf16.msra.mxu0 0
    %347 = vmatprep.subr.bf16.mxu0 0
    %348 = vmatpush1.bf16.msra.mxu0 0
    %349 = vmatprep.subr.bf16.mxu0 0
    %350 = vmatpush1.bf16.msra.mxu0 0
    %351 = vmatprep.subr.bf16.mxu0 0
    %352 = vmatpush1.bf16.msra.mxu0 0
    %353 = vmatprep.subr.bf16.mxu0 0
    %354 = vmatpush1.bf16.msra.mxu0 0
    %355 = vmatprep.subr.bf16.mxu0 0
    %356 = vmatpush1.bf16.msra.mxu0 0
    %357 = vmatprep.subr.bf16.mxu0 0
    %358 = vmatpush1.bf16.msra.mxu0 0
    %359 = vmatprep.mubr.bf16.mxu0 0
    %360 = vmatmul.mubr.bf16.gmra.mrb[0].mxu0 %v325
    %v361 = vpop.f32.mrb[0].mxu0
    %v362 = vadd.f32 0.0, %v361
    %v363 = vpop.f32.mrb[0].mxu0
    %v364 = vadd.f32 0.0, %v363
    %v365 = vpop.f32.mrb[0].mxu0
    %v366 = vpop.f32.mrb[0].mxu0
    %367 = vdwg.mxu0
    %v368 = vadd.f32 %v272, %v362
    %v369 = vadd.f32 %v273, %v364
    %v370 = vxor.u32 %v368, 2147483648
    %v371 = vxor.u32 %v369, 2147483648
    %v372 = vmul.f32 %v370, 1.442695
    %v373 = vpow.pop %v372
    %v374 = vmul.f32 %v371, 1.442695
    %v375 = vpow.pop %v374
    %v376 = vadd.f32 %v373, 1.0
    %v377 = vadd.f32 %v375, 1.0
    %v378 = vrcp.pop %v376
    %v379 = vmul.f32 1.0, %v378
    %v380 = vrcp.pop %v377
    %v381 = vmul.f32 1.0, %v380
    %v382 = vtanh.pop %v369
    %384 = vrot.lane.b32.xlu0 %v268, 64
    %v385 = vpop.permute.xlu0 %384
    %v387 = vmul.f32 %v379, %v385
    %389 = vrot.lane.b32.xlu0 %v382, 64
    %v390 = vpop.permute.xlu0 %389
    %v392 = vmul.f32 %v379, %v390
    %394 = vrot.lane.b32.xlu0 %v392, 64
    %v395 = vpop.permute.xlu0 %394
    %v397 = vadd.f32 %v387, %v395
    %v398 = vtanh.pop %v397
    %400 = vrot.lane.b32.xlu0 %v398, 64
    %v401 = vpop.permute.xlu0 %400
    %v403 = vmul.f32 %v381, %v401
    %v404 = vpack.c.bf16 %v403, %v403
    %v405 = vld [vmem:[#allocation14] sm:$0xff]
    %v406 = vld [vmem:[#allocation14 + $0x8] sm:$0xff]
    %v407 = vld [vmem:[#allocation14 + $0x10] sm:$0xff]
    %v408 = vld [vmem:[#allocation14 + $0x18] sm:$0xff]
    %v409 = vld [vmem:[#allocation14 + $0x20] sm:$0xff]
    %v410 = vld [vmem:[#allocation14 + $0x28] sm:$0xff]
    %v411 = vld [vmem:[#allocation14 + $0x30] sm:$0xff]
    %v412 = vld [vmem:[#allocation14 + $0x38] sm:$0xff]
    %v413 = vpack.c.bf16 %v267, %v267
    %v414 = vld [vmem:[#allocation17] sm:$0xff]
    %v415 = vld [vmem:[#allocation17 + $0x8] sm:$0xff]
    %v416 = vld [vmem:[#allocation17 + $0x10] sm:$0xff]
    %v417 = vld [vmem:[#allocation17 + $0x18] sm:$0xff]
    %v418 = vld [vmem:[#allocation17 + $0x20] sm:$0xff]
    %v419 = vld [vmem:[#allocation17 + $0x28] sm:$0xff]
    %v420 = vld [vmem:[#allocation17 + $0x30] sm:$0xff]
    %v421 = vld [vmem:[#allocation17 + $0x38] sm:$0xff]
    %v430 = vunpack.c.l.b16 %v414
    %v431 = vunpack.c.h.b16 %v414
    %v432 = vunpack.c.l.b16 %v415
    %v433 = vunpack.c.h.b16 %v415
    %v434 = vunpack.c.l.b16 %v416
    %v435 = vunpack.c.h.b16 %v416
    %v436 = vunpack.c.l.b16 %v417
    %v437 = vunpack.c.h.b16 %v417
    %v438 = vunpack.c.l.b16 %v418
    %v439 = vunpack.c.h.b16 %v418
    %v440 = vunpack.c.l.b16 %v419
    %v441 = vunpack.c.h.b16 %v419
    %v442 = vunpack.c.l.b16 %v420
    %v443 = vunpack.c.h.b16 %v420
    %v444 = vunpack.c.l.b16 %v421
    %v445 = vunpack.c.h.b16 %v421
    %v446 = vpack.c.b16 %v432, %v430
    %v447 = vpack.c.b16 %v433, %v431
    %v448 = vpack.c.b16 %v436, %v434
    %v449 = vpack.c.b16 %v437, %v435
    %v450 = vpack.c.b16 %v440, %v438
    %v451 = vpack.c.b16 %v441, %v439
    %v452 = vpack.c.b16 %v444, %v442
    %v453 = vpack.c.b16 %v445, %v443
    %v463 = vsel %vm323, %v413, 0
    %465 = vmatprep.subr.bf16.mxu0 %v447
    %466 = vmatpush1.bf16.msra.mxu0 %v446
    %467 = vmatprep.subr.bf16.mxu0 %v449
    %468 = vmatpush1.bf16.msra.mxu0 %v448
    %469 = vmatprep.subr.bf16.mxu0 %v451
    %470 = vmatpush1.bf16.msra.mxu0 %v450
    %471 = vmatprep.subr.bf16.mxu0 %v453
    %472 = vmatpush1.bf16.msra.mxu0 %v452
    %473 = vmatprep.subr.bf16.mxu0 0
    %474 = vmatpush1.bf16.msra.mxu0 0
    %475 = vmatprep.subr.bf16.mxu0 0
    %476 = vmatpush1.bf16.msra.mxu0 0
    %477 = vmatprep.subr.bf16.mxu0 0
    %478 = vmatpush1.bf16.msra.mxu0 0
    %479 = vmatprep.subr.bf16.mxu0 0
    %480 = vmatpush1.bf16.msra.mxu0 0
    %481 = vmatprep.subr.bf16.mxu0 0
    %482 = vmatpush1.bf16.msra.mxu0 0
    %483 = vmatprep.subr.bf16.mxu0 0
    %484 = vmatpush1.bf16.msra.mxu0 0
    %485 = vmatprep.subr.bf16.mxu0 0
    %486 = vmatpush1.bf16.msra.mxu0 0
    %487 = vmatprep.subr.bf16.mxu0 0
    %488 = vmatpush1.bf16.msra.mxu0 0
    %489 = vmatprep.subr.bf16.mxu0 0
    %490 = vmatpush1.bf16.msra.mxu0 0
    %491 = vmatprep.subr.bf16.mxu0 0
    %492 = vmatpush1.bf16.msra.mxu0 0
    %493 = vmatprep.subr.bf16.mxu0 0
    %494 = vmatpush1.bf16.msra.mxu0 0
    %495 = vmatprep.subr.bf16.mxu0 0
    %496 = vmatpush1.bf16.msra.mxu0 0
    %497 = vmatprep.mubr.bf16.mxu0 0
    %498 = vmatmul.mubr.bf16.gmra.mrb[0].mxu0 %v463
    %v499 = vpop.f32.mrb[0].mxu0
    %v500 = vadd.f32 0.0, %v499
    %v501 = vpop.f32.mrb[0].mxu0
    %v502 = vadd.f32 0.0, %v501
    %v503 = vpop.f32.mrb[0].mxu0
    %v504 = vpop.f32.mrb[0].mxu0
    %505 = vdwg.mxu0
    %v514 = vunpack.c.l.b16 %v405
    %v515 = vunpack.c.h.b16 %v405
    %v516 = vunpack.c.l.b16 %v406
    %v517 = vunpack.c.h.b16 %v406
    %v518 = vunpack.c.l.b16 %v407
    %v519 = vunpack.c.h.b16 %v407
    %v520 = vunpack.c.l.b16 %v408
    %v521 = vunpack.c.h.b16 %v408
    %v522 = vunpack.c.l.b16 %v409
    %v523 = vunpack.c.h.b16 %v409
    %v524 = vunpack.c.l.b16 %v410
    %v525 = vunpack.c.h.b16 %v410
    %v526 = vunpack.c.l.b16 %v411
    %v527 = vunpack.c.h.b16 %v411
    %v528 = vunpack.c.l.b16 %v412
    %v529 = vunpack.c.h.b16 %v412
    %v530 = vpack.c.b16 %v516, %v514
    %v531 = vpack.c.b16 %v517, %v515
    %v532 = vpack.c.b16 %v520, %v518
    %v533 = vpack.c.b16 %v521, %v519
    %v534 = vpack.c.b16 %v524, %v522
    %v535 = vpack.c.b16 %v525, %v523
    %v536 = vpack.c.b16 %v528, %v526
    %v537 = vpack.c.b16 %v529, %v527
    %v547 = vsel %vm323, %v404, 0
    %549 = vmatprep.subr.bf16.mxu0 %v531
    %550 = vmatpush1.bf16.msra.mxu0 %v530
    %551 = vmatprep.subr.bf16.mxu0 %v533
    %552 = vmatpush1.bf16.msra.mxu0 %v532
    %553 = vmatprep.subr.bf16.mxu0 %v535
    %554 = vmatpush1.bf16.msra.mxu0 %v534
    %555 = vmatprep.subr.bf16.mxu0 %v537
    %556 = vmatpush1.bf16.msra.mxu0 %v536
    %557 = vmatprep.subr.bf16.mxu0 0
    %558 = vmatpush1.bf16.msra.mxu0 0
    %559 = vmatprep.subr.bf16.mxu0 0
    %560 = vmatpush1.bf16.msra.mxu0 0
    %561 = vmatprep.subr.bf16.mxu0 0
    %562 = vmatpush1.bf16.msra.mxu0 0
    %563 = vmatprep.subr.bf16.mxu0 0
    %564 = vmatpush1.bf16.msra.mxu0 0
    %565 = vmatprep.subr.bf16.mxu0 0
    %566 = vmatpush1.bf16.msra.mxu0 0
    %567 = vmatprep.subr.bf16.mxu0 0
    %568 = vmatpush1.bf16.msra.mxu0 0
    %569 = vmatprep.subr.bf16.mxu0 0
    %570 = vmatpush1.bf16.msra.mxu0 0
    %571 = vmatprep.subr.bf16.mxu0 0
    %572 = vmatpush1.bf16.msra.mxu0 0
    %573 = vmatprep.subr.bf16.mxu0 0
    %574 = vmatpush1.bf16.msra.mxu0 0
    %575 = vmatprep.subr.bf16.mxu0 0
    %576 = vmatpush1.bf16.msra.mxu0 0
    %577 = vmatprep.subr.bf16.mxu0 0
    %578 = vmatpush1.bf16.msra.mxu0 0
    %579 = vmatprep.subr.bf16.mxu0 0
    %580 = vmatpush1.bf16.msra.mxu0 0
    %581 = vmatprep.mubr.bf16.mxu0 0
    %582 = vmatmul.mubr.bf16.gmra.mrb[0].mxu0 %v547
    %v583 = vpop.f32.mrb[0].mxu0
    %v584 = vadd.f32 %v500, %v583
    %v585 = vpop.f32.mrb[0].mxu0
    %v586 = vadd.f32 %v502, %v585
    %v587 = vpop.f32.mrb[0].mxu0
    %v588 = vpop.f32.mrb[0].mxu0
    %589 = vdwg.mxu0
    %v590 = vld [vmem:[#allocation15] sm:$0x3]
    %v592 = vlaneseq
    %v593 = vshrl.u32 %v592, 7
    %v594 = vsub.s32 0, %v593
    %v595 = vrot.slane %v590, %v594
    %v596 = vlaneseq
    %v597 = vshrl.u32 %v596, 7
    %v598 = vsub.s32 1, %v597
    %v599 = vrot.slane %v590, %v598
    %v602 = vadd.f32 %v584, %v595
    %v603 = vadd.f32 %v586, %v599
    %v604 = vxor.u32 %v602, 2147483648
    %v605 = vxor.u32 %v603, 2147483648
    %v606 = vmul.f32 %v604, 1.442695
    %v607 = vpow.pop %v606
    %v608 = vmul.f32 %v605, 1.442695
    %v609 = vpow.pop %v608
    %v610 = vadd.f32 %v607, 1.0
    %v611 = vadd.f32 %v609, 1.0
    %v612 = vrcp.pop %v610
    %v613 = vmul.f32 1.0, %v612
    %v614 = vrcp.pop %v611
    %v615 = vmul.f32 1.0, %v614
    %v616 = vtanh.pop %v603
    %618 = vrot.lane.b32.xlu0 %v269, 64
    %v619 = vpop.permute.xlu0 %618
    %v621 = vmul.f32 %v613, %v619
    %623 = vrot.lane.b32.xlu0 %v616, 64
    %v624 = vpop.permute.xlu0 %623
    %v626 = vmul.f32 %v613, %v624
    %628 = vrot.lane.b32.xlu0 %v626, 64
    %v629 = vpop.permute.xlu0 %628
    %v631 = vadd.f32 %v621, %v629
    %v632 = vtanh.pop %v631
    %634 = vrot.lane.b32.xlu0 %v632, 64
    %v635 = vpop.permute.xlu0 %634
    %v637 = vmul.f32 %v615, %v635
    %vm638 = vcmask 517120
    %639 = vst.msk [vmem:[#allocation21] sm:$0x3] %vm638, %v637
    %v640 = vld [vmem:[#allocation2] sm:$0x2]
    %v641 = vld [vmem:[#allocation2 + $0x8] sm:$0x2]
    %v642 = vunpack.c.l.bf16 %v640
    %v643 = vunpack.c.l.bf16 %v641
    %v644 = vld [vmem:[#allocation9] sm:$0xff]
    %v645 = vld [vmem:[#allocation9 + $0x8] sm:$0xff]
    %v646 = vld [vmem:[#allocation9 + $0x10] sm:$0xff]
    %v647 = vld [vmem:[#allocation9 + $0x18] sm:$0xff]
    %v648 = vld [vmem:[#allocation9 + $0x20] sm:$0xff]
    %v649 = vld [vmem:[#allocation9 + $0x28] sm:$0xff]
    %v650 = vld [vmem:[#allocation9 + $0x30] sm:$0xff]
    %v651 = vld [vmem:[#allocation9 + $0x38] sm:$0xff]
    %v660 = vunpack.c.l.b16 %v644
    %v661 = vunpack.c.h.b16 %v644
    %v662 = vunpack.c.l.b16 %v645
    %v663 = vunpack.c.h.b16 %v645
    %v664 = vunpack.c.l.b16 %v646
    %v665 = vunpack.c.h.b16 %v646
    %v666 = vunpack.c.l.b16 %v647
    %v667 = vunpack.c.h.b16 %v647
    %v668 = vunpack.c.l.b16 %v648
    %v669 = vunpack.c.h.b16 %v648
    %v670 = vunpack.c.l.b16 %v649
    %v671 = vunpack.c.h.b16 %v649
    %v672 = vunpack.c.l.b16 %v650
    %v673 = vunpack.c.h.b16 %v650
    %v674 = vunpack.c.l.b16 %v651
    %v675 = vunpack.c.h.b16 %v651
    %v676 = vpack.c.b16 %v662, %v660
    %v677 = vpack.c.b16 %v663, %v661
    %v678 = vpack.c.b16 %v666, %v664
    %v679 = vpack.c.b16 %v667, %v665
    %v680 = vpack.c.b16 %v670, %v668
    %v681 = vpack.c.b16 %v671, %v669
    %v682 = vpack.c.b16 %v674, %v672
    %v683 = vpack.c.b16 %v675, %v673
    %692 = vmatprep.subr.bf16.mxu0 %v677
    %693 = vmatpush1.bf16.msra.mxu0 %v676
    %694 = vmatprep.subr.bf16.mxu0 %v679
    %695 = vmatpush1.bf16.msra.mxu0 %v678
    %696 = vmatprep.subr.bf16.mxu0 %v681
    %697 = vmatpush1.bf16.msra.mxu0 %v680
    %698 = vmatprep.subr.bf16.mxu0 %v683
    %699 = vmatpush1.bf16.msra.mxu0 %v682
    %700 = vmatprep.subr.bf16.mxu0 0
    %701 = vmatpush1.bf16.msra.mxu0 0
    %702 = vmatprep.subr.bf16.mxu0 0
    %703 = vmatpush1.bf16.msra.mxu0 0
    %704 = vmatprep.subr.bf16.mxu0 0
    %705 = vmatpush1.bf16.msra.mxu0 0
    %706 = vmatprep.subr.bf16.mxu0 0
    %707 = vmatpush1.bf16.msra.mxu0 0
    %708 = vmatprep.subr.bf16.mxu0 0
    %709 = vmatpush1.bf16.msra.mxu0 0
    %710 = vmatprep.subr.bf16.mxu0 0
    %711 = vmatpush1.bf16.msra.mxu0 0
    %712 = vmatprep.subr.bf16.mxu0 0
    %713 = vmatpush1.bf16.msra.mxu0 0
    %714 = vmatprep.subr.bf16.mxu0 0
    %715 = vmatpush1.bf16.msra.mxu0 0
    %716 = vmatprep.subr.bf16.mxu0 0
    %717 = vmatpush1.bf16.msra.mxu0 0
    %718 = vmatprep.subr.bf16.mxu0 0
    %719 = vmatpush1.bf16.msra.mxu0 0
    %720 = vmatprep.subr.bf16.mxu0 0
    %721 = vmatpush1.bf16.msra.mxu0 0
    %722 = vmatprep.subr.bf16.mxu0 0
    %723 = vmatpush1.bf16.msra.mxu0 0
    %724 = vmatprep.mubr.bf16.mxu0 0
    %725 = vmatmul.mubr.bf16.gmra.mrb[0].mxu0 %v547
    %v726 = vpop.f32.mrb[0].mxu0
    %v727 = vadd.f32 0.0, %v726
    %v728 = vpop.f32.mrb[0].mxu0
    %v729 = vadd.f32 0.0, %v728
    %v730 = vpop.f32.mrb[0].mxu0
    %v731 = vpop.f32.mrb[0].mxu0
    %732 = vdwg.mxu0
    %v735 = vrot.slane %v727, 6
    %v736 = vrot.slane %v729, 6
    %v739 = vadd.f32 %v642, %v735
    %v740 = vadd.f32 %v643, %v736
    %v741 = vxor.u32 %v739, 2147483648
    %v742 = vxor.u32 %v740, 2147483648
    %v743 = vmul.f32 %v741, 1.442695
    %v744 = vpow.pop %v743
    %v745 = vmul.f32 %v742, 1.442695
    %v746 = vpow.pop %v745
    %v747 = vadd.f32 %v744, 1.0
    %v748 = vadd.f32 %v746, 1.0
    %v749 = vrcp.pop %v747
    %v750 = vmul.f32 1.0, %v749
    %v751 = vrcp.pop %v748
    %v752 = vmul.f32 1.0, %v751
    %v753 = vtanh.pop %v740
    %v755 = vrot.slane %v397, 6
    %v757 = vmul.f32 %v750, %v755
    %759 = vrot.lane.b32.xlu0 %v753, 64
    %v760 = vpop.permute.xlu0 %759
    %v762 = vmul.f32 %v750, %v760
    %764 = vrot.lane.b32.xlu0 %v762, 64
    %v765 = vpop.permute.xlu0 %764
    %v767 = vadd.f32 %v757, %v765
    %v768 = vtanh.pop %v767
    %770 = vrot.lane.b32.xlu0 %v768, 64
    %v771 = vpop.permute.xlu0 %770
    %v773 = vmul.f32 %v752, %v771
    %v774 = vpack.c.bf16 %v773, %v773
    %v775 = vld [vmem:[#allocation14] sm:$0xff]
    %v776 = vld [vmem:[#allocation14 + $0x8] sm:$0xff]
    %v777 = vld [vmem:[#allocation14 + $0x10] sm:$0xff]
    %v778 = vld [vmem:[#allocation14 + $0x18] sm:$0xff]
    %v779 = vld [vmem:[#allocation14 + $0x20] sm:$0xff]
    %v780 = vld [vmem:[#allocation14 + $0x28] sm:$0xff]
    %v781 = vld [vmem:[#allocation14 + $0x30] sm:$0xff]
    %v782 = vld [vmem:[#allocation14 + $0x38] sm:$0xff]
    %v783 = vpack.c.bf16 %v637, %v637
    %v784 = vld [vmem:[#allocation17] sm:$0xff]
    %v785 = vld [vmem:[#allocation17 + $0x8] sm:$0xff]
    %v786 = vld [vmem:[#allocation17 + $0x10] sm:$0xff]
    %v787 = vld [vmem:[#allocation17 + $0x18] sm:$0xff]
    %v788 = vld [vmem:[#allocation17 + $0x20] sm:$0xff]
    %v789 = vld [vmem:[#allocation17 + $0x28] sm:$0xff]
    %v790 = vld [vmem:[#allocation17 + $0x30] sm:$0xff]
    %v791 = vld [vmem:[#allocation17 + $0x38] sm:$0xff]
    %v800 = vunpack.c.l.b16 %v784
    %v801 = vunpack.c.h.b16 %v784
    %v802 = vunpack.c.l.b16 %v785
    %v803 = vunpack.c.h.b16 %v785
    %v804 = vunpack.c.l.b16 %v786
    %v805 = vunpack.c.h.b16 %v786
    %v806 = vunpack.c.l.b16 %v787
    %v807 = vunpack.c.h.b16 %v787
    %v808 = vunpack.c.l.b16 %v788
    %v809 = vunpack.c.h.b16 %v788
    %v810 = vunpack.c.l.b16 %v789
    %v811 = vunpack.c.h.b16 %v789
    %v812 = vunpack.c.l.b16 %v790
    %v813 = vunpack.c.h.b16 %v790
    %v814 = vunpack.c.l.b16 %v791
    %v815 = vunpack.c.h.b16 %v791
    %v816 = vpack.c.b16 %v802, %v800
    %v817 = vpack.c.b16 %v803, %v801
    %v818 = vpack.c.b16 %v806, %v804
    %v819 = vpack.c.b16 %v807, %v805
    %v820 = vpack.c.b16 %v810, %v808
    %v821 = vpack.c.b16 %v811, %v809
    %v822 = vpack.c.b16 %v814, %v812
    %v823 = vpack.c.b16 %v815, %v813
    %v833 = vsel %vm323, %v783, 0
    %835 = vmatprep.subr.bf16.mxu0 %v817
    %836 = vmatpush1.bf16.msra.mxu0 %v816
    %837 = vmatprep.subr.bf16.mxu0 %v819
    %838 = vmatpush1.bf16.msra.mxu0 %v818
    %839 = vmatprep.subr.bf16.mxu0 %v821
    %840 = vmatpush1.bf16.msra.mxu0 %v820
    %841 = vmatprep.subr.bf16.mxu0 %v823
    %842 = vmatpush1.bf16.msra.mxu0 %v822
    %843 = vmatprep.subr.bf16.mxu0 0
    %844 = vmatpush1.bf16.msra.mxu0 0
    %845 = vmatprep.subr.bf16.mxu0 0
    %846 = vmatpush1.bf16.msra.mxu0 0
    %847 = vmatprep.subr.bf16.mxu0 0
    %848 = vmatpush1.bf16.msra.mxu0 0
    %849 = vmatprep.subr.bf16.mxu0 0
    %850 = vmatpush1.bf16.msra.mxu0 0
    %851 = vmatprep.subr.bf16.mxu0 0
    %852 = vmatpush1.bf16.msra.mxu0 0
    %853 = vmatprep.subr.bf16.mxu0 0
    %854 = vmatpush1.bf16.msra.mxu0 0
    %855 = vmatprep.subr.bf16.mxu0 0
    %856 = vmatpush1.bf16.msra.mxu0 0
    %857 = vmatprep.subr.bf16.mxu0 0
    %858 = vmatpush1.bf16.msra.mxu0 0
    %859 = vmatprep.subr.bf16.mxu0 0
    %860 = vmatpush1.bf16.msra.mxu0 0
    %861 = vmatprep.subr.bf16.mxu0 0
    %862 = vmatpush1.bf16.msra.mxu0 0
    %863 = vmatprep.subr.bf16.mxu0 0
    %864 = vmatpush1.bf16.msra.mxu0 0
    %865 = vmatprep.subr.bf16.mxu0 0
    %866 = vmatpush1.bf16.msra.mxu0 0
    %867 = vmatprep.mubr.bf16.mxu0 0
    %868 = vmatmul.mubr.bf16.gmra.mrb[0].mxu0 %v833
    %v869 = vpop.f32.mrb[0].mxu0
    %v870 = vadd.f32 0.0, %v869
    %v871 = vpop.f32.mrb[0].mxu0
    %v872 = vadd.f32 0.0, %v871
    %v873 = vpop.f32.mrb[0].mxu0
    %v874 = vpop.f32.mrb[0].mxu0
    %875 = vdwg.mxu0
    %v877 = vrot.slane %v774, 1
    %v886 = vunpack.c.l.b16 %v775
    %v887 = vunpack.c.h.b16 %v775
    %v888 = vunpack.c.l.b16 %v776
    %v889 = vunpack.c.h.b16 %v776
    %v890 = vunpack.c.l.b16 %v777
    %v891 = vunpack.c.h.b16 %v777
    %v892 = vunpack.c.l.b16 %v778
    %v893 = vunpack.c.h.b16 %v778
    %v894 = vunpack.c.l.b16 %v779
    %v895 = vunpack.c.h.b16 %v779
    %v896 = vunpack.c.l.b16 %v780
    %v897 = vunpack.c.h.b16 %v780
    %v898 = vunpack.c.l.b16 %v781
    %v899 = vunpack.c.h.b16 %v781
    %v900 = vunpack.c.l.b16 %v782
    %v901 = vunpack.c.h.b16 %v782
    %v902 = vpack.c.b16 %v888, %v886
    %v903 = vpack.c.b16 %v889, %v887
    %v904 = vpack.c.b16 %v892, %v890
    %v905 = vpack.c.b16 %v893, %v891
    %v906 = vpack.c.b16 %v896, %v894
    %v907 = vpack.c.b16 %v897, %v895
    %v908 = vpack.c.b16 %v900, %v898
    %v909 = vpack.c.b16 %v901, %v899
    %v919 = vsel %vm323, %v877, 0
    %921 = vmatprep.subr.bf16.mxu0 %v903
    %922 = vmatpush1.bf16.msra.mxu0 %v902
    %923 = vmatprep.subr.bf16.mxu0 %v905
    %924 = vmatpush1.bf16.msra.mxu0 %v904
    %925 = vmatprep.subr.bf16.mxu0 %v907
    %926 = vmatpush1.bf16.msra.mxu0 %v906
    %927 = vmatprep.subr.bf16.mxu0 %v909
    %928 = vmatpush1.bf16.msra.mxu0 %v908
    %929 = vmatprep.subr.bf16.mxu0 0
    %930 = vmatpush1.bf16.msra.mxu0 0
    %931 = vmatprep.subr.bf16.mxu0 0
    %932 = vmatpush1.bf16.msra.mxu0 0
    %933 = vmatprep.subr.bf16.mxu0 0
    %934 = vmatpush1.bf16.msra.mxu0 0
    %935 = vmatprep.subr.bf16.mxu0 0
    %936 = vmatpush1.bf16.msra.mxu0 0
    %937 = vmatprep.subr.bf16.mxu0 0
    %938 = vmatpush1.bf16.msra.mxu0 0
    %939 = vmatprep.subr.bf16.mxu0 0
    %940 = vmatpush1.bf16.msra.mxu0 0
    %941 = vmatprep.subr.bf16.mxu0 0
    %942 = vmatpush1.bf16.msra.mxu0 0
    %943 = vmatprep.subr.bf16.mxu0 0
    %944 = vmatpush1.bf16.msra.mxu0 0
    %945 = vmatprep.subr.bf16.mxu0 0
    %946 = vmatpush1.bf16.msra.mxu0 0
    %947 = vmatprep.subr.bf16.mxu0 0
    %948 = vmatpush1.bf16.msra.mxu0 0
    %949 = vmatprep.subr.bf16.mxu0 0
    %950 = vmatpush1.bf16.msra.mxu0 0
    %951 = vmatprep.subr.bf16.mxu0 0
    %952 = vmatpush1.bf16.msra.mxu0 0
    %953 = vmatprep.mubr.bf16.mxu0 0
    %954 = vmatmul.mubr.bf16.gmra.mrb[0].mxu0 %v919
    %v955 = vpop.f32.mrb[0].mxu0
    %v956 = vadd.f32 %v870, %v955
    %v957 = vpop.f32.mrb[0].mxu0
    %v958 = vadd.f32 %v872, %v957
    %v959 = vpop.f32.mrb[0].mxu0
    %v960 = vpop.f32.mrb[0].mxu0
    %961 = vdwg.mxu0
    %v962 = vld [vmem:[#allocation15] sm:$0x3]
    %v964 = vlaneseq
    %v965 = vshrl.u32 %v964, 7
    %v966 = vsub.s32 0, %v965
    %v967 = vrot.slane %v962, %v966
    %v968 = vlaneseq
    %v969 = vshrl.u32 %v968, 7
    %v970 = vsub.s32 1, %v969
    %v971 = vrot.slane %v962, %v970
    %v974 = vadd.f32 %v956, %v967
    %v975 = vadd.f32 %v958, %v971
    %v976 = vxor.u32 %v974, 2147483648
    %v977 = vxor.u32 %v975, 2147483648
    %v978 = vmul.f32 %v976, 1.442695
    %v979 = vpow.pop %v978
    %v980 = vmul.f32 %v977, 1.442695
    %v981 = vpow.pop %v980
    %v982 = vadd.f32 %v979, 1.0
    %v983 = vadd.f32 %v981, 1.0
    %v984 = vrcp.pop %v982
    %v985 = vmul.f32 1.0, %v984
    %v986 = vrcp.pop %v983
    %v987 = vmul.f32 1.0, %v986
    %v988 = vtanh.pop %v975
    %v989 = vmul.f32 %v985, %v631
    %991 = vrot.lane.b32.xlu0 %v988, 64
    %v992 = vpop.permute.xlu0 %991
    %v994 = vmul.f32 %v985, %v992
    %996 = vrot.lane.b32.xlu0 %v994, 64
    %v997 = vpop.permute.xlu0 %996
    %v999 = vadd.f32 %v989, %v997
    %v1000 = vtanh.pop %v999
    %1002 = vrot.lane.b32.xlu0 %v1000, 64
    %v1003 = vpop.permute.xlu0 %1002
    %v1005 = vmul.f32 %v987, %v1003
    %s1006 = scalar_lea.vmem [#allocation21], 2
    %1007 = vst.msk [vmem:[%s1006] sm:$0x3] %vm638, %v1005
    %v1008 = vld [vmem:[#allocation2] sm:$0x4]
    %v1009 = vld [vmem:[#allocation2 + $0x8] sm:$0x4]
    %v1010 = vunpack.c.l.bf16 %v1008
    %v1011 = vunpack.c.l.bf16 %v1009
    %v1012 = vld [vmem:[#allocation9] sm:$0xff]
    %v1013 = vld [vmem:[#allocation9 + $0x8] sm:$0xff]
    %v1014 = vld [vmem:[#allocation9 + $0x10] sm:$0xff]
    %v1015 = vld [vmem:[#allocation9 + $0x18] sm:$0xff]
    %v1016 = vld [vmem:[#allocation9 + $0x20] sm:$0xff]
    %v1017 = vld [vmem:[#allocation9 + $0x28] sm:$0xff]
    %v1018 = vld [vmem:[#allocation9 + $0x30] sm:$0xff]
    %v1019 = vld [vmem:[#allocation9 + $0x38] sm:$0xff]
    %v1028 = vunpack.c.l.b16 %v1012
    %v1029 = vunpack.c.h.b16 %v1012
    %v1030 = vunpack.c.l.b16 %v1013
    %v1031 = vunpack.c.h.b16 %v1013
    %v1032 = vunpack.c.l.b16 %v1014
    %v1033 = vunpack.c.h.b16 %v1014
    %v1034 = vunpack.c.l.b16 %v1015
    %v1035 = vunpack.c.h.b16 %v1015
    %v1036 = vunpack.c.l.b16 %v1016
    %v1037 = vunpack.c.h.b16 %v1016
    %v1038 = vunpack.c.l.b16 %v1017
    %v1039 = vunpack.c.h.b16 %v1017
    %v1040 = vunpack.c.l.b16 %v1018
    %v1041 = vunpack.c.h.b16 %v1018
    %v1042 = vunpack.c.l.b16 %v1019
    %v1043 = vunpack.c.h.b16 %v1019
    %v1044 = vpack.c.b16 %v1030, %v1028
    %v1045 = vpack.c.b16 %v1031, %v1029
    %v1046 = vpack.c.b16 %v1034, %v1032
    %v1047 = vpack.c.b16 %v1035, %v1033
    %v1048 = vpack.c.b16 %v1038, %v1036
    %v1049 = vpack.c.b16 %v1039, %v1037
    %v1050 = vpack.c.b16 %v1042, %v1040
    %v1051 = vpack.c.b16 %v1043, %v1041
    %1060 = vmatprep.subr.bf16.mxu0 %v1045
    %1061 = vmatpush1.bf16.msra.mxu0 %v1044
    %1062 = vmatprep.subr.bf16.mxu0 %v1047
    %1063 = vmatpush1.bf16.msra.mxu0 %v1046
    %1064 = vmatprep.subr.bf16.mxu0 %v1049
    %1065 = vmatpush1.bf16.msra.mxu0 %v1048
    %1066 = vmatprep.subr.bf16.mxu0 %v1051
    %1067 = vmatpush1.bf16.msra.mxu0 %v1050
    %1068 = vmatprep.subr.bf16.mxu0 0
    %1069 = vmatpush1.bf16.msra.mxu0 0
    %1070 = vmatprep.subr.bf16.mxu0 0
    %1071 = vmatpush1.bf16.msra.mxu0 0
    %1072 = vmatprep.subr.bf16.mxu0 0
    %1073 = vmatpush1.bf16.msra.mxu0 0
    %1074 = vmatprep.subr.bf16.mxu0 0
    %1075 = vmatpush1.bf16.msra.mxu0 0
    %1076 = vmatprep.subr.bf16.mxu0 0
    %1077 = vmatpush1.bf16.msra.mxu0 0
    %1078 = vmatprep.subr.bf16.mxu0 0
    %1079 = vmatpush1.bf16.msra.mxu0 0
    %1080 = vmatprep.subr.bf16.mxu0 0
    %1081 = vmatpush1.bf16.msra.mxu0 0
    %1082 = vmatprep.subr.bf16.mxu0 0
    %1083 = vmatpush1.bf16.msra.mxu0 0
    %1084 = vmatprep.subr.bf16.mxu0 0
    %1085 = vmatpush1.bf16.msra.mxu0 0
    %1086 = vmatprep.subr.bf16.mxu0 0
    %1087 = vmatpush1.bf16.msra.mxu0 0
    %1088 = vmatprep.subr.bf16.mxu0 0
    %1089 = vmatpush1.bf16.msra.mxu0 0
    %1090 = vmatprep.subr.bf16.mxu0 0
    %1091 = vmatpush1.bf16.msra.mxu0 0
    %1092 = vmatprep.mubr.bf16.mxu0 0
    %1093 = vmatmul.mubr.bf16.gmra.mrb[0].mxu0 %v919
    %v1094 = vpop.f32.mrb[0].mxu0
    %v1095 = vadd.f32 0.0, %v1094
    %v1096 = vpop.f32.mrb[0].mxu0
    %v1097 = vadd.f32 0.0, %v1096
    %v1098 = vpop.f32.mrb[0].mxu0
    %v1099 = vpop.f32.mrb[0].mxu0
    %1100 = vdwg.mxu0
    %v1103 = vrot.slane %v1095, 4
    %v1104 = vrot.slane %v1097, 4
    %v1107 = vadd.f32 %v1010, %v1103
    %v1108 = vadd.f32 %v1011, %v1104
    %v1109 = vxor.u32 %v1107, 2147483648
    %v1110 = vxor.u32 %v1108, 2147483648
    %v1111 = vmul.f32 %v1109, 1.442695
    %v1112 = vpow.pop %v1111
    %v1113 = vmul.f32 %v1110, 1.442695
    %v1114 = vpow.pop %v1113
    %v1115 = vadd.f32 %v1112, 1.0
    %v1116 = vadd.f32 %v1114, 1.0
    %v1117 = vrcp.pop %v1115
    %v1118 = vmul.f32 1.0, %v1117
    %v1119 = vrcp.pop %v1116
    %v1120 = vmul.f32 1.0, %v1119
    %v1121 = vtanh.pop %v1108
    %v1123 = vrot.slane %v767, 6
    %v1125 = vmul.f32 %v1118, %v1123
    %1127 = vrot.lane.b32.xlu0 %v1121, 64
    %v1128 = vpop.permute.xlu0 %1127
    %v1130 = vmul.f32 %v1118, %v1128
    %1132 = vrot.lane.b32.xlu0 %v1130, 64
    %v1133 = vpop.permute.xlu0 %1132
    %v1135 = vadd.f32 %v1125, %v1133
    %v1136 = vtanh.pop %v1135
    %1138 = vrot.lane.b32.xlu0 %v1136, 64
    %v1139 = vpop.permute.xlu0 %1138
    %v1141 = vmul.f32 %v1120, %v1139
    %v1142 = vpack.c.bf16 %v1141, %v1141
    %v1143 = vld [vmem:[#allocation14] sm:$0xff]
    %v1144 = vld [vmem:[#allocation14 + $0x8] sm:$0xff]
    %v1145 = vld [vmem:[#allocation14 + $0x10] sm:$0xff]
    %v1146 = vld [vmem:[#allocation14 + $0x18] sm:$0xff]
    %v1147 = vld [vmem:[#allocation14 + $0x20] sm:$0xff]
    %v1148 = vld [vmem:[#allocation14 + $0x28] sm:$0xff]
    %v1149 = vld [vmem:[#allocation14 + $0x30] sm:$0xff]
    %v1150 = vld [vmem:[#allocation14 + $0x38] sm:$0xff]
    %v1151 = vpack.c.bf16 %v1005, %v1005
    %v1152 = vld [vmem:[#allocation17] sm:$0xff]
    %v1153 = vld [vmem:[#allocation17 + $0x8] sm:$0xff]
    %v1154 = vld [vmem:[#allocation17 + $0x10] sm:$0xff]
    %v1155 = vld [vmem:[#allocation17 + $0x18] sm:$0xff]
    %v1156 = vld [vmem:[#allocation17 + $0x20] sm:$0xff]
    %v1157 = vld [vmem:[#allocation17 + $0x28] sm:$0xff]
    %v1158 = vld [vmem:[#allocation17 + $0x30] sm:$0xff]
    %v1159 = vld [vmem:[#allocation17 + $0x38] sm:$0xff]
    %v1168 = vunpack.c.l.b16 %v1152
    %v1169 = vunpack.c.h.b16 %v1152
    %v1170 = vunpack.c.l.b16 %v1153
    %v1171 = vunpack.c.h.b16 %v1153
    %v1172 = vunpack.c.l.b16 %v1154
    %v1173 = vunpack.c.h.b16 %v1154
    %v1174 = vunpack.c.l.b16 %v1155
    %v1175 = vunpack.c.h.b16 %v1155
    %v1176 = vunpack.c.l.b16 %v1156
    %v1177 = vunpack.c.h.b16 %v1156
    %v1178 = vunpack.c.l.b16 %v1157
    %v1179 = vunpack.c.h.b16 %v1157
    %v1180 = vunpack.c.l.b16 %v1158
    %v1181 = vunpack.c.h.b16 %v1158
    %v1182 = vunpack.c.l.b16 %v1159
    %v1183 = vunpack.c.h.b16 %v1159
    %v1184 = vpack.c.b16 %v1170, %v1168
    %v1185 = vpack.c.b16 %v1171, %v1169
    %v1186 = vpack.c.b16 %v1174, %v1172
    %v1187 = vpack.c.b16 %v1175, %v1173
    %v1188 = vpack.c.b16 %v1178, %v1176
    %v1189 = vpack.c.b16 %v1179, %v1177
    %v1190 = vpack.c.b16 %v1182, %v1180
    %v1191 = vpack.c.b16 %v1183, %v1181
    %v1201 = vsel %vm323, %v1151, 0
    %1203 = vmatprep.subr.bf16.mxu0 %v1185
    %1204 = vmatpush1.bf16.msra.mxu0 %v1184
    %1205 = vmatprep.subr.bf16.mxu0 %v1187
    %1206 = vmatpush1.bf16.msra.mxu0 %v1186
    %1207 = vmatprep.subr.bf16.mxu0 %v1189
    %1208 = vmatpush1.bf16.msra.mxu0 %v1188
    %1209 = vmatprep.subr.bf16.mxu0 %v1191
    %1210 = vmatpush1.bf16.msra.mxu0 %v1190
    %1211 = vmatprep.subr.bf16.mxu0 0
    %1212 = vmatpush1.bf16.msra.mxu0 0
    %1213 = vmatprep.subr.bf16.mxu0 0
    %1214 = vmatpush1.bf16.msra.mxu0 0
    %1215 = vmatprep.subr.bf16.mxu0 0
    %1216 = vmatpush1.bf16.msra.mxu0 0
    %1217 = vmatprep.subr.bf16.mxu0 0
    %1218 = vmatpush1.bf16.msra.mxu0 0
    %1219 = vmatprep.subr.bf16.mxu0 0
    %1220 = vmatpush1.bf16.msra.mxu0 0
    %1221 = vmatprep.subr.bf16.mxu0 0
    %1222 = vmatpush1.bf16.msra.mxu0 0
    %1223 = vmatprep.subr.bf16.mxu0 0
    %1224 = vmatpush1.bf16.msra.mxu0 0
    %1225 = vmatprep.subr.bf16.mxu0 0
    %1226 = vmatpush1.bf16.msra.mxu0 0
    %1227 = vmatprep.subr.bf16.mxu0 0
    %1228 = vmatpush1.bf16.msra.mxu0 0
    %1229 = vmatprep.subr.bf16.mxu0 0
    %1230 = vmatpush1.bf16.msra.mxu0 0
    %1231 = vmatprep.subr.bf16.mxu0 0
    %1232 = vmatpush1.bf16.msra.mxu0 0
    %1233 = vmatprep.subr.bf16.mxu0 0
    %1234 = vmatpush1.bf16.msra.mxu0 0
    %1235 = vmatprep.mubr.bf16.mxu0 0
    %1236 = vmatmul.mubr.bf16.gmra.mrb[0].mxu0 %v1201
    %v1237 = vpop.f32.mrb[0].mxu0
    %v1238 = vadd.f32 0.0, %v1237
    %v1239 = vpop.f32.mrb[0].mxu0
    %v1240 = vadd.f32 0.0, %v1239
    %v1241 = vpop.f32.mrb[0].mxu0
    %v1242 = vpop.f32.mrb[0].mxu0
    %1243 = vdwg.mxu0
    %v1245 = vrot.slane %v1142, 2
    %v1254 = vunpack.c.l.b16 %v1143
    %v1255 = vunpack.c.h.b16 %v1143
    %v1256 = vunpack.c.l.b16 %v1144
    %v1257 = vunpack.c.h.b16 %v1144
    %v1258 = vunpack.c.l.b16 %v1145
    %v1259 = vunpack.c.h.b16 %v1145
    %v1260 = vunpack.c.l.b16 %v1146
    %v1261 = vunpack.c.h.b16 %v1146
    %v1262 = vunpack.c.l.b16 %v1147
    %v1263 = vunpack.c.h.b16 %v1147
    %v1264 = vunpack.c.l.b16 %v1148
    %v1265 = vunpack.c.h.b16 %v1148
    %v1266 = vunpack.c.l.b16 %v1149
    %v1267 = vunpack.c.h.b16 %v1149
    %v1268 = vunpack.c.l.b16 %v1150
    %v1269 = vunpack.c.h.b16 %v1150
    %v1270 = vpack.c.b16 %v1256, %v1254
    %v1271 = vpack.c.b16 %v1257, %v1255
    %v1272 = vpack.c.b16 %v1260, %v1258
    %v1273 = vpack.c.b16 %v1261, %v1259
    %v1274 = vpack.c.b16 %v1264, %v1262
    %v1275 = vpack.c.b16 %v1265, %v1263
    %v1276 = vpack.c.b16 %v1268, %v1266
    %v1277 = vpack.c.b16 %v1269, %v1267
    %v1287 = vsel %vm323, %v1245, 0
    %1289 = vmatprep.subr.bf16.mxu0 %v1271
    %1290 = vmatpush1.bf16.msra.mxu0 %v1270
    %1291 = vmatprep.subr.bf16.mxu0 %v1273
    %1292 = vmatpush1.bf16.msra.mxu0 %v1272
    %1293 = vmatprep.subr.bf16.mxu0 %v1275
    %1294 = vmatpush1.bf16.msra.mxu0 %v1274
    %1295 = vmatprep.subr.bf16.mxu0 %v1277
    %1296 = vmatpush1.bf16.msra.mxu0 %v1276
    %1297 = vmatprep.subr.bf16.mxu0 0
    %1298 = vmatpush1.bf16.msra.mxu0 0
    %1299 = vmatprep.subr.bf16.mxu0 0
    %1300 = vmatpush1.bf16.msra.mxu0 0
    %1301 = vmatprep.subr.bf16.mxu0 0
    %1302 = vmatpush1.bf16.msra.mxu0 0
    %1303 = vmatprep.subr.bf16.mxu0 0
    %1304 = vmatpush1.bf16.msra.mxu0 0
    %1305 = vmatprep.subr.bf16.mxu0 0
    %1306 = vmatpush1.bf16.msra.mxu0 0
    %1307 = vmatprep.subr.bf16.mxu0 0
    %1308 = vmatpush1.bf16.msra.mxu0 0
    %1309 = vmatprep.subr.bf16.mxu0 0
    %1310 = vmatpush1.bf16.msra.mxu0 0
    %1311 = vmatprep.subr.bf16.mxu0 0
    %1312 = vmatpush1.bf16.msra.mxu0 0
    %1313 = vmatprep.subr.bf16.mxu0 0
    %1314 = vmatpush1.bf16.msra.mxu0 0
    %1315 = vmatprep.subr.bf16.mxu0 0
    %1316 = vmatpush1.bf16.msra.mxu0 0
    %1317 = vmatprep.subr.bf16.mxu0 0
    %1318 = vmatpush1.bf16.msra.mxu0 0
    %1319 = vmatprep.subr.bf16.mxu0 0
    %1320 = vmatpush1.bf16.msra.mxu0 0
    %1321 = vmatprep.mubr.bf16.mxu0 0
    %1322 = vmatmul.mubr.bf16.gmra.mrb[0].mxu0 %v1287
    %v1323 = vpop.f32.mrb[0].mxu0
    %v1324 = vadd.f32 %v1238, %v1323
    %v1325 = vpop.f32.mrb[0].mxu0
    %v1326 = vadd.f32 %v1240, %v1325
    %v1327 = vpop.f32.mrb[0].mxu0
    %v1328 = vpop.f32.mrb[0].mxu0
    %1329 = vdwg.mxu0
    %v1330 = vld [vmem:[#allocation15] sm:$0x3]
    %v1332 = vlaneseq
    %v1333 = vshrl.u32 %v1332, 7
    %v1334 = vsub.s32 0, %v1333
    %v1335 = vrot.slane %v1330, %v1334
    %v1336 = vlaneseq
    %v1337 = vshrl.u32 %v1336, 7
    %v1338 = vsub.s32 1, %v1337
    %v1339 = vrot.slane %v1330, %v1338
    %v1342 = vadd.f32 %v1324, %v1335
    %v1343 = vadd.f32 %v1326, %v1339
    %v1344 = vxor.u32 %v1342, 2147483648
    %v1345 = vxor.u32 %v1343, 2147483648
    %v1346 = vmul.f32 %v1344, 1.442695
    %v1347 = vpow.pop %v1346
    %v1348 = vmul.f32 %v1345, 1.442695
    %v1349 = vpow.pop %v1348
    %v1350 = vadd.f32 %v1347, 1.0
    %v1351 = vadd.f32 %v1349, 1.0
    %v1352 = vrcp.pop %v1350
    %v1353 = vmul.f32 1.0, %v1352
    %v1354 = vrcp.pop %v1351
    %v1355 = vmul.f32 1.0, %v1354
    %v1356 = vtanh.pop %v1343
    %v1357 = vmul.f32 %v1353, %v999
    %1359 = vrot.lane.b32.xlu0 %v1356, 64
    %v1360 = vpop.permute.xlu0 %1359
    %v1362 = vmul.f32 %v1353, %v1360
    %1364 = vrot.lane.b32.xlu0 %v1362, 64
    %v1365 = vpop.permute.xlu0 %1364
    %v1367 = vadd.f32 %v1357, %v1365
    %v1368 = vtanh.pop %v1367
    %1370 = vrot.lane.b32.xlu0 %v1368, 64
    %v1371 = vpop.permute.xlu0 %1370
    %v1373 = vmul.f32 %v1355, %v1371
    %s1374 = scalar_lea.vmem [#allocation21], 4
    %1375 = vst.msk [vmem:[%s1374] sm:$0x3] %vm638, %v1373
    %v1376 = vld [vmem:[#allocation2] sm:$0x8]
    %v1377 = vld [vmem:[#allocation2 + $0x8] sm:$0x8]
    %v1378 = vunpack.c.l.bf16 %v1376
    %v1379 = vunpack.c.l.bf16 %v1377
    %v1380 = vld [vmem:[#allocation9] sm:$0xff]
    %v1381 = vld [vmem:[#allocation9 + $0x8] sm:$0xff]
    %v1382 = vld [vmem:[#allocation9 + $0x10] sm:$0xff]
    %v1383 = vld [vmem:[#allocation9 + $0x18] sm:$0xff]
    %v1384 = vld [vmem:[#allocation9 + $0x20] sm:$0xff]
    %v1385 = vld [vmem:[#allocation9 + $0x28] sm:$0xff]
    %v1386 = vld [vmem:[#allocation9 + $0x30] sm:$0xff]
    %v1387 = vld [vmem:[#allocation9 + $0x38] sm:$0xff]
    %v1396 = vunpack.c.l.b16 %v1380
    %v1397 = vunpack.c.h.b16 %v1380
    %v1398 = vunpack.c.l.b16 %v1381
    %v1399 = vunpack.c.h.b16 %v1381
    %v1400 = vunpack.c.l.b16 %v1382
    %v1401 = vunpack.c.h.b16 %v1382
    %v1402 = vunpack.c.l.b16 %v1383
    %v1403 = vunpack.c.h.b16 %v1383
    %v1404 = vunpack.c.l.b16 %v1384
    %v1405 = vunpack.c.h.b16 %v1384
    %v1406 = vunpack.c.l.b16 %v1385
    %v1407 = vunpack.c.h.b16 %v1385
    %v1408 = vunpack.c.l.b16 %v1386
    %v1409 = vunpack.c.h.b16 %v1386
    %v1410 = vunpack.c.l.b16 %v1387
    %v1411 = vunpack.c.h.b16 %v1387
    %v1412 = vpack.c.b16 %v1398, %v1396
    %v1413 = vpack.c.b16 %v1399, %v1397
    %v1414 = vpack.c.b16 %v1402, %v1400
    %v1415 = vpack.c.b16 %v1403, %v1401
    %v1416 = vpack.c.b16 %v1406, %v1404
    %v1417 = vpack.c.b16 %v1407, %v1405
    %v1418 = vpack.c.b16 %v1410, %v1408
    %v1419 = vpack.c.b16 %v1411, %v1409
    %1428 = vmatprep.subr.bf16.mxu0 %v1413
    %1429 = vmatpush1.bf16.msra.mxu0 %v1412
    %1430 = vmatprep.subr.bf16.mxu0 %v1415
    %1431 = vmatpush1.bf16.msra.mxu0 %v1414
    %1432 = vmatprep.subr.bf16.mxu0 %v1417
    %1433 = vmatpush1.bf16.msra.mxu0 %v1416
    %1434 = vmatprep.subr.bf16.mxu0 %v1419
    %1435 = vmatpush1.bf16.msra.mxu0 %v1418
    %1436 = vmatprep.subr.bf16.mxu0 0
    %1437 = vmatpush1.bf16.msra.mxu0 0
    %1438 = vmatprep.subr.bf16.mxu0 0
    %1439 = vmatpush1.bf16.msra.mxu0 0
    %1440 = vmatprep.subr.bf16.mxu0 0
    %1441 = vmatpush1.bf16.msra.mxu0 0
    %1442 = vmatprep.subr.bf16.mxu0 0
    %1443 = vmatpush1.bf16.msra.mxu0 0
    %1444 = vmatprep.subr.bf16.mxu0 0
    %1445 = vmatpush1.bf16.msra.mxu0 0
    %1446 = vmatprep.subr.bf16.mxu0 0
    %1447 = vmatpush1.bf16.msra.mxu0 0
    %1448 = vmatprep.subr.bf16.mxu0 0
    %1449 = vmatpush1.bf16.msra.mxu0 0
    %1450 = vmatprep.subr.bf16.mxu0 0
    %1451 = vmatpush1.bf16.msra.mxu0 0
    %1452 = vmatprep.subr.bf16.mxu0 0
    %1453 = vmatpush1.bf16.msra.mxu0 0
    %1454 = vmatprep.subr.bf16.mxu0 0
    %1455 = vmatpush1.bf16.msra.mxu0 0
    %1456 = vmatprep.subr.bf16.mxu0 0
    %1457 = vmatpush1.bf16.msra.mxu0 0
    %1458 = vmatprep.subr.bf16.mxu0 0
    %1459 = vmatpush1.bf16.msra.mxu0 0
    %1460 = vmatprep.mubr.bf16.mxu0 0
    %1461 = vmatmul.mubr.bf16.gmra.mrb[0].mxu0 %v1287
    %v1462 = vpop.f32.mrb[0].mxu0
    %v1463 = vadd.f32 0.0, %v1462
    %v1464 = vpop.f32.mrb[0].mxu0
    %v1465 = vadd.f32 0.0, %v1464
    %v1466 = vpop.f32.mrb[0].mxu0
    %v1467 = vpop.f32.mrb[0].mxu0
    %1468 = vdwg.mxu0
    %v1471 = vrot.slane %v1463, 2
    %v1472 = vrot.slane %v1465, 2
    %v1475 = vadd.f32 %v1378, %v1471
    %v1476 = vadd.f32 %v1379, %v1472
    %v1477 = vxor.u32 %v1475, 2147483648
    %v1478 = vxor.u32 %v1476, 2147483648
    %v1479 = vmul.f32 %v1477, 1.442695
    %v1480 = vpow.pop %v1479
    %v1481 = vmul.f32 %v1478, 1.442695
    %v1482 = vpow.pop %v1481
    %v1483 = vadd.f32 %v1480, 1.0
    %v1484 = vadd.f32 %v1482, 1.0
    %v1485 = vrcp.pop %v1483
    %v1486 = vmul.f32 1.0, %v1485
    %v1487 = vrcp.pop %v1484
    %v1488 = vmul.f32 1.0, %v1487
    %v1489 = vtanh.pop %v1476
    %v1491 = vrot.slane %v1135, 6
    %v1493 = vmul.f32 %v1486, %v1491
    %1495 = vrot.lane.b32.xlu0 %v1489, 64
    %v1496 = vpop.permute.xlu0 %1495
    %v1498 = vmul.f32 %v1486, %v1496
    %1500 = vrot.lane.b32.xlu0 %v1498, 64
    %v1501 = vpop.permute.xlu0 %1500
    %v1503 = vadd.f32 %v1493, %v1501
    %v1504 = vtanh.pop %v1503
    %1506 = vrot.lane.b32.xlu0 %v1504, 64
    %v1507 = vpop.permute.xlu0 %1506
    %v1509 = vmul.f32 %v1488, %v1507
    %v1510 = vpack.c.bf16 %v1509, %v1509
    %v1511 = vld [vmem:[#allocation14] sm:$0xff]
    %v1512 = vld [vmem:[#allocation14 + $0x8] sm:$0xff]
    %v1513 = vld [vmem:[#allocation14 + $0x10] sm:$0xff]
    %v1514 = vld [vmem:[#allocation14 + $0x18] sm:$0xff]
    %v1515 = vld [vmem:[#allocation14 + $0x20] sm:$0xff]
    %v1516 = vld [vmem:[#allocation14 + $0x28] sm:$0xff]
    %v1517 = vld [vmem:[#allocation14 + $0x30] sm:$0xff]
    %v1518 = vld [vmem:[#allocation14 + $0x38] sm:$0xff]
    %v1519 = vpack.c.bf16 %v1373, %v1373
    %v1520 = vld [vmem:[#allocation17] sm:$0xff]
    %v1521 = vld [vmem:[#allocation17 + $0x8] sm:$0xff]
    %v1522 = vld [vmem:[#allocation17 + $0x10] sm:$0xff]
    %v1523 = vld [vmem:[#allocation17 + $0x18] sm:$0xff]
    %v1524 = vld [vmem:[#allocation17 + $0x20] sm:$0xff]
    %v1525 = vld [vmem:[#allocation17 + $0x28] sm:$0xff]
    %v1526 = vld [vmem:[#allocation17 + $0x30] sm:$0xff]
    %v1527 = vld [vmem:[#allocation17 + $0x38] sm:$0xff]
    %v1536 = vunpack.c.l.b16 %v1520
    %v1537 = vunpack.c.h.b16 %v1520
    %v1538 = vunpack.c.l.b16 %v1521
    %v1539 = vunpack.c.h.b16 %v1521
    %v1540 = vunpack.c.l.b16 %v1522
    %v1541 = vunpack.c.h.b16 %v1522
    %v1542 = vunpack.c.l.b16 %v1523
    %v1543 = vunpack.c.h.b16 %v1523
    %v1544 = vunpack.c.l.b16 %v1524
    %v1545 = vunpack.c.h.b16 %v1524
    %v1546 = vunpack.c.l.b16 %v1525
    %v1547 = vunpack.c.h.b16 %v1525
    %v1548 = vunpack.c.l.b16 %v1526
    %v1549 = vunpack.c.h.b16 %v1526
    %v1550 = vunpack.c.l.b16 %v1527
    %v1551 = vunpack.c.h.b16 %v1527
    %v1552 = vpack.c.b16 %v1538, %v1536
    %v1553 = vpack.c.b16 %v1539, %v1537
    %v1554 = vpack.c.b16 %v1542, %v1540
    %v1555 = vpack.c.b16 %v1543, %v1541
    %v1556 = vpack.c.b16 %v1546, %v1544
    %v1557 = vpack.c.b16 %v1547, %v1545
    %v1558 = vpack.c.b16 %v1550, %v1548
    %v1559 = vpack.c.b16 %v1551, %v1549
    %v1569 = vsel %vm323, %v1519, 0
    %1571 = vmatprep.subr.bf16.mxu0 %v1553
    %1572 = vmatpush1.bf16.msra.mxu0 %v1552
    %1573 = vmatprep.subr.bf16.mxu0 %v1555
    %1574 = vmatpush1.bf16.msra.mxu0 %v1554
    %1575 = vmatprep.subr.bf16.mxu0 %v1557
    %1576 = vmatpush1.bf16.msra.mxu0 %v1556
    %1577 = vmatprep.subr.bf16.mxu0 %v1559
    %1578 = vmatpush1.bf16.msra.mxu0 %v1558
    %1579 = vmatprep.subr.bf16.mxu0 0
    %1580 = vmatpush1.bf16.msra.mxu0 0
    %1581 = vmatprep.subr.bf16.mxu0 0
    %1582 = vmatpush1.bf16.msra.mxu0 0
    %1583 = vmatprep.subr.bf16.mxu0 0
    %1584 = vmatpush1.bf16.msra.mxu0 0
    %1585 = vmatprep.subr.bf16.mxu0 0
    %1586 = vmatpush1.bf16.msra.mxu0 0
    %1587 = vmatprep.subr.bf16.mxu0 0
    %1588 = vmatpush1.bf16.msra.mxu0 0
    %1589 = vmatprep.subr.bf16.mxu0 0
    %1590 = vmatpush1.bf16.msra.mxu0 0
    %1591 = vmatprep.subr.bf16.mxu0 0
    %1592 = vmatpush1.bf16.msra.mxu0 0
    %1593 = vmatprep.subr.bf16.mxu0 0
    %1594 = vmatpush1.bf16.msra.mxu0 0
    %1595 = vmatprep.subr.bf16.mxu0 0
    %1596 = vmatpush1.bf16.msra.mxu0 0
    %1597 = vmatprep.subr.bf16.mxu0 0
    %1598 = vmatpush1.bf16.msra.mxu0 0
    %1599 = vmatprep.subr.bf16.mxu0 0
    %1600 = vmatpush1.bf16.msra.mxu0 0
    %1601 = vmatprep.subr.bf16.mxu0 0
    %1602 = vmatpush1.bf16.msra.mxu0 0
    %1603 = vmatprep.mubr.bf16.mxu0 0
    %1604 = vmatmul.mubr.bf16.gmra.mrb[0].mxu0 %v1569
    %v1605 = vpop.f32.mrb[0].mxu0
    %v1606 = vadd.f32 0.0, %v1605
    %v1607 = vpop.f32.mrb[0].mxu0
    %v1608 = vadd.f32 0.0, %v1607
    %v1609 = vpop.f32.mrb[0].mxu0
    %v1610 = vpop.f32.mrb[0].mxu0
    %1611 = vdwg.mxu0
    %v1613 = vrot.slane %v1510, 3
    %v1622 = vunpack.c.l.b16 %v1511
    %v1623 = vunpack.c.h.b16 %v1511
    %v1624 = vunpack.c.l.b16 %v1512
    %v1625 = vunpack.c.h.b16 %v1512
    %v1626 = vunpack.c.l.b16 %v1513
    %v1627 = vunpack.c.h.b16 %v1513
    %v1628 = vunpack.c.l.b16 %v1514
    %v1629 = vunpack.c.h.b16 %v1514
    %v1630 = vunpack.c.l.b16 %v1515
    %v1631 = vunpack.c.h.b16 %v1515
    %v1632 = vunpack.c.l.b16 %v1516
    %v1633 = vunpack.c.h.b16 %v1516
    %v1634 = vunpack.c.l.b16 %v1517
    %v1635 = vunpack.c.h.b16 %v1517
    %v1636 = vunpack.c.l.b16 %v1518
    %v1637 = vunpack.c.h.b16 %v1518
    %v1638 = vpack.c.b16 %v1624, %v1622
    %v1639 = vpack.c.b16 %v1625, %v1623
    %v1640 = vpack.c.b16 %v1628, %v1626
    %v1641 = vpack.c.b16 %v1629, %v1627
    %v1642 = vpack.c.b16 %v1632, %v1630
    %v1643 = vpack.c.b16 %v1633, %v1631
    %v1644 = vpack.c.b16 %v1636, %v1634
    %v1645 = vpack.c.b16 %v1637, %v1635
    %v1655 = vsel %vm323, %v1613, 0
    %1657 = vmatprep.subr.bf16.mxu0 %v1639
    %1658 = vmatpush1.bf16.msra.mxu0 %v1638
    %1659 = vmatprep.subr.bf16.mxu0 %v1641
    %1660 = vmatpush1.bf16.msra.mxu0 %v1640
    %1661 = vmatprep.subr.bf16.mxu0 %v1643
    %1662 = vmatpush1.bf16.msra.mxu0 %v1642
    %1663 = vmatprep.subr.bf16.mxu0 %v1645
    %1664 = vmatpush1.bf16.msra.mxu0 %v1644
    %1665 = vmatprep.subr.bf16.mxu0 0
    %1666 = vmatpush1.bf16.msra.mxu0 0
    %1667 = vmatprep.subr.bf16.mxu0 0
    %1668 = vmatpush1.bf16.msra.mxu0 0
    %1669 = vmatprep.subr.bf16.mxu0 0
    %1670 = vmatpush1.bf16.msra.mxu0 0
    %1671 = vmatprep.subr.bf16.mxu0 0
    %1672 = vmatpush1.bf16.msra.mxu0 0
    %1673 = vmatprep.subr.bf16.mxu0 0
    %1674 = vmatpush1.bf16.msra.mxu0 0
    %1675 = vmatprep.subr.bf16.mxu0 0
    %1676 = vmatpush1.bf16.msra.mxu0 0
    %1677 = vmatprep.subr.bf16.mxu0 0
    %1678 = vmatpush1.bf16.msra.mxu0 0
    %1679 = vmatprep.subr.bf16.mxu0 0
    %1680 = vmatpush1.bf16.msra.mxu0 0
    %1681 = vmatprep.subr.bf16.mxu0 0
    %1682 = vmatpush1.bf16.msra.mxu0 0
    %1683 = vmatprep.subr.bf16.mxu0 0
    %1684 = vmatpush1.bf16.msra.mxu0 0
    %1685 = vmatprep.subr.bf16.mxu0 0
    %1686 = vmatpush1.bf16.msra.mxu0 0
    %1687 = vmatprep.subr.bf16.mxu0 0
    %1688 = vmatpush1.bf16.msra.mxu0 0
    %1689 = vmatprep.mubr.bf16.mxu0 0
    %1690 = vmatmul.mubr.bf16.gmra.mrb[0].mxu0 %v1655
    %v1691 = vpop.f32.mrb[0].mxu0
    %v1692 = vadd.f32 %v1606, %v1691
    %v1693 = vpop.f32.mrb[0].mxu0
    %v1694 = vadd.f32 %v1608, %v1693
    %v1695 = vpop.f32.mrb[0].mxu0
    %v1696 = vpop.f32.mrb[0].mxu0
    %1697 = vdwg.mxu0
    %v1698 = vld [vmem:[#allocation15] sm:$0x3]
    %v1700 = vlaneseq
    %v1701 = vshrl.u32 %v1700, 7
    %v1702 = vsub.s32 0, %v1701
    %v1703 = vrot.slane %v1698, %v1702
    %v1704 = vlaneseq
    %v1705 = vshrl.u32 %v1704, 7
    %v1706 = vsub.s32 1, %v1705
    %v1707 = vrot.slane %v1698, %v1706
    %v1710 = vadd.f32 %v1692, %v1703
    %v1711 = vadd.f32 %v1694, %v1707
    %v1712 = vxor.u32 %v1710, 2147483648
    %v1713 = vxor.u32 %v1711, 2147483648
    %v1714 = vmul.f32 %v1712, 1.442695
    %v1715 = vpow.pop %v1714
    %v1716 = vmul.f32 %v1713, 1.442695
    %v1717 = vpow.pop %v1716
    %v1718 = vadd.f32 %v1715, 1.0
    %v1719 = vadd.f32 %v1717, 1.0
    %v1720 = vrcp.pop %v1718
    %v1721 = vmul.f32 1.0, %v1720
    %v1722 = vrcp.pop %v1719
    %v1723 = vmul.f32 1.0, %v1722
    %v1724 = vtanh.pop %v1711
    %v1725 = vmul.f32 %v1721, %v1367
    %1727 = vrot.lane.b32.xlu0 %v1724, 64
    %v1728 = vpop.permute.xlu0 %1727
    %v1730 = vmul.f32 %v1721, %v1728
    %1732 = vrot.lane.b32.xlu0 %v1730, 64
    %v1733 = vpop.permute.xlu0 %1732
    %v1735 = vadd.f32 %v1725, %v1733
    %v1736 = vtanh.pop %v1735
    %1738 = vrot.lane.b32.xlu0 %v1736, 64
    %v1739 = vpop.permute.xlu0 %1738
    %v1741 = vmul.f32 %v1723, %v1739
    %s1742 = scalar_lea.vmem [#allocation21], 6
    %1743 = vst.msk [vmem:[%s1742] sm:$0x3] %vm638, %v1741
    %v1744 = vld [vmem:[#allocation2] sm:$0x10]
    %v1745 = vld [vmem:[#allocation2 + $0x8] sm:$0x10]
    %v1748 = vrot.slane %v1744, 4
    %v1749 = vrot.slane %v1745, 4
    %v1752 = vunpack.c.l.bf16 %v1748
    %v1753 = vunpack.c.l.bf16 %v1749
    %v1754 = vld [vmem:[#allocation9] sm:$0xff]
    %v1755 = vld [vmem:[#allocation9 + $0x8] sm:$0xff]
    %v1756 = vld [vmem:[#allocation9 + $0x10] sm:$0xff]
    %v1757 = vld [vmem:[#allocation9 + $0x18] sm:$0xff]
    %v1758 = vld [vmem:[#allocation9 + $0x20] sm:$0xff]
    %v1759 = vld [vmem:[#allocation9 + $0x28] sm:$0xff]
    %v1760 = vld [vmem:[#allocation9 + $0x30] sm:$0xff]
    %v1761 = vld [vmem:[#allocation9 + $0x38] sm:$0xff]
    %v1770 = vunpack.c.l.b16 %v1754
    %v1771 = vunpack.c.h.b16 %v1754
    %v1772 = vunpack.c.l.b16 %v1755
    %v1773 = vunpack.c.h.b16 %v1755
    %v1774 = vunpack.c.l.b16 %v1756
    %v1775 = vunpack.c.h.b16 %v1756
    %v1776 = vunpack.c.l.b16 %v1757
    %v1777 = vunpack.c.h.b16 %v1757
    %v1778 = vunpack.c.l.b16 %v1758
    %v1779 = vunpack.c.h.b16 %v1758
    %v1780 = vunpack.c.l.b16 %v1759
    %v1781 = vunpack.c.h.b16 %v1759
    %v1782 = vunpack.c.l.b16 %v1760
    %v1783 = vunpack.c.h.b16 %v1760
    %v1784 = vunpack.c.l.b16 %v1761
    %v1785 = vunpack.c.h.b16 %v1761
    %v1786 = vpack.c.b16 %v1772, %v1770
    %v1787 = vpack.c.b16 %v1773, %v1771
    %v1788 = vpack.c.b16 %v1776, %v1774
    %v1789 = vpack.c.b16 %v1777, %v1775
    %v1790 = vpack.c.b16 %v1780, %v1778
    %v1791 = vpack.c.b16 %v1781, %v1779
    %v1792 = vpack.c.b16 %v1784, %v1782
    %v1793 = vpack.c.b16 %v1785, %v1783
    %1802 = vmatprep.subr.bf16.mxu0 %v1787
    %1803 = vmatpush1.bf16.msra.mxu0 %v1786
    %1804 = vmatprep.subr.bf16.mxu0 %v1789
    %1805 = vmatpush1.bf16.msra.mxu0 %v1788
    %1806 = vmatprep.subr.bf16.mxu0 %v1791
    %1807 = vmatpush1.bf16.msra.mxu0 %v1790
    %1808 = vmatprep.subr.bf16.mxu0 %v1793
    %1809 = vmatpush1.bf16.msra.mxu0 %v1792
    %1810 = vmatprep.subr.bf16.mxu0 0
    %1811 = vmatpush1.bf16.msra.mxu0 0
    %1812 = vmatprep.subr.bf16.mxu0 0
    %1813 = vmatpush1.bf16.msra.mxu0 0
    %1814 = vmatprep.subr.bf16.mxu0 0
    %1815 = vmatpush1.bf16.msra.mxu0 0
    %1816 = vmatprep.subr.bf16.mxu0 0
    %1817 = vmatpush1.bf16.msra.mxu0 0
    %1818 = vmatprep.subr.bf16.mxu0 0
    %1819 = vmatpush1.bf16.msra.mxu0 0
    %1820 = vmatprep.subr.bf16.mxu0 0
    %1821 = vmatpush1.bf16.msra.mxu0 0
    %1822 = vmatprep.subr.bf16.mxu0 0
    %1823 = vmatpush1.bf16.msra.mxu0 0
    %1824 = vmatprep.subr.bf16.mxu0 0
    %1825 = vmatpush1.bf16.msra.mxu0 0
    %1826 = vmatprep.subr.bf16.mxu0 0
    %1827 = vmatpush1.bf16.msra.mxu0 0
    %1828 = vmatprep.subr.bf16.mxu0 0
    %1829 = vmatpush1.bf16.msra.mxu0 0
    %1830 = vmatprep.subr.bf16.mxu0 0
    %1831 = vmatpush1.bf16.msra.mxu0 0
    %1832 = vmatprep.subr.bf16.mxu0 0
    %1833 = vmatpush1.bf16.msra.mxu0 0
    %1834 = vmatprep.mubr.bf16.mxu0 0
    %1835 = vmatmul.mubr.bf16.gmra.mrb[0].mxu0 %v1655
    %v1836 = vpop.f32.mrb[0].mxu0
    %v1837 = vadd.f32 0.0, %v1836
    %v1838 = vpop.f32.mrb[0].mxu0
    %v1839 = vadd.f32 0.0, %v1838
    %v1840 = vpop.f32.mrb[0].mxu0
    %v1841 = vpop.f32.mrb[0].mxu0
    %1842 = vdwg.mxu0
    %v1843 = vadd.f32 %v1752, %v1837
    %v1844 = vadd.f32 %v1753, %v1839
    %v1845 = vxor.u32 %v1843, 2147483648
    %v1846 = vxor.u32 %v1844, 2147483648
    %v1847 = vmul.f32 %v1845, 1.442695
    %v1848 = vpow.pop %v1847
    %v1849 = vmul.f32 %v1846, 1.442695
    %v1850 = vpow.pop %v1849
    %v1851 = vadd.f32 %v1848, 1.0
    %v1852 = vadd.f32 %v1850, 1.0
    %v1853 = vrcp.pop %v1851
    %v1854 = vmul.f32 1.0, %v1853
    %v1855 = vrcp.pop %v1852
    %v1856 = vmul.f32 1.0, %v1855
    %v1857 = vtanh.pop %v1844
    %v1859 = vrot.slane %v1503, 6
    %v1861 = vmul.f32 %v1854, %v1859
    %1863 = vrot.lane.b32.xlu0 %v1857, 64
    %v1864 = vpop.permute.xlu0 %1863
    %v1866 = vmul.f32 %v1854, %v1864
    %1868 = vrot.lane.b32.xlu0 %v1866, 64
    %v1869 = vpop.permute.xlu0 %1868
    %v1871 = vadd.f32 %v1861, %v1869
    %v1872 = vtanh.pop %v1871
    %1874 = vrot.lane.b32.xlu0 %v1872, 64
    %v1875 = vpop.permute.xlu0 %1874
    %v1877 = vmul.f32 %v1856, %v1875
    %v1878 = vpack.c.bf16 %v1877, %v1877
    %v1879 = vld [vmem:[#allocation14] sm:$0xff]
    %v1880 = vld [vmem:[#allocation14 + $0x8] sm:$0xff]
    %v1881 = vld [vmem:[#allocation14 + $0x10] sm:$0xff]
    %v1882 = vld [vmem:[#allocation14 + $0x18] sm:$0xff]
    %v1883 = vld [vmem:[#allocation14 + $0x20] sm:$0xff]
    %v1884 = vld [vmem:[#allocation14 + $0x28] sm:$0xff]
    %v1885 = vld [vmem:[#allocation14 + $0x30] sm:$0xff]
    %v1886 = vld [vmem:[#allocation14 + $0x38] sm:$0xff]
    %v1887 = vpack.c.bf16 %v1741, %v1741
    %v1888 = vld [vmem:[#allocation17] sm:$0xff]
    %v1889 = vld [vmem:[#allocation17 + $0x8] sm:$0xff]
    %v1890 = vld [vmem:[#allocation17 + $0x10] sm:$0xff]
    %v1891 = vld [vmem:[#allocation17 + $0x18] sm:$0xff]
    %v1892 = vld [vmem:[#allocation17 + $0x20] sm:$0xff]
    %v1893 = vld [vmem:[#allocation17 + $0x28] sm:$0xff]
    %v1894 = vld [vmem:[#allocation17 + $0x30] sm:$0xff]
    %v1895 = vld [vmem:[#allocation17 + $0x38] sm:$0xff]
    %v1904 = vunpack.c.l.b16 %v1888
    %v1905 = vunpack.c.h.b16 %v1888
    %v1906 = vunpack.c.l.b16 %v1889
    %v1907 = vunpack.c.h.b16 %v1889
    %v1908 = vunpack.c.l.b16 %v1890
    %v1909 = vunpack.c.h.b16 %v1890
    %v1910 = vunpack.c.l.b16 %v1891
    %v1911 = vunpack.c.h.b16 %v1891
    %v1912 = vunpack.c.l.b16 %v1892
    %v1913 = vunpack.c.h.b16 %v1892
    %v1914 = vunpack.c.l.b16 %v1893
    %v1915 = vunpack.c.h.b16 %v1893
    %v1916 = vunpack.c.l.b16 %v1894
    %v1917 = vunpack.c.h.b16 %v1894
    %v1918 = vunpack.c.l.b16 %v1895
    %v1919 = vunpack.c.h.b16 %v1895
    %v1920 = vpack.c.b16 %v1906, %v1904
    %v1921 = vpack.c.b16 %v1907, %v1905
    %v1922 = vpack.c.b16 %v1910, %v1908
    %v1923 = vpack.c.b16 %v1911, %v1909
    %v1924 = vpack.c.b16 %v1914, %v1912
    %v1925 = vpack.c.b16 %v1915, %v1913
    %v1926 = vpack.c.b16 %v1918, %v1916
    %v1927 = vpack.c.b16 %v1919, %v1917
    %v1937 = vsel %vm323, %v1887, 0
    %1939 = vmatprep.subr.bf16.mxu0 %v1921
    %1940 = vmatpush1.bf16.msra.mxu0 %v1920
    %1941 = vmatprep.subr.bf16.mxu0 %v1923
    %1942 = vmatpush1.bf16.msra.mxu0 %v1922
    %1943 = vmatprep.subr.bf16.mxu0 %v1925
    %1944 = vmatpush1.bf16.msra.mxu0 %v1924
    %1945 = vmatprep.subr.bf16.mxu0 %v1927
    %1946 = vmatpush1.bf16.msra.mxu0 %v1926
    %1947 = vmatprep.subr.bf16.mxu0 0
    %1948 = vmatpush1.bf16.msra.mxu0 0
    %1949 = vmatprep.subr.bf16.mxu0 0
    %1950 = vmatpush1.bf16.msra.mxu0 0
    %1951 = vmatprep.subr.bf16.mxu0 0
    %1952 = vmatpush1.bf16.msra.mxu0 0
    %1953 = vmatprep.subr.bf16.mxu0 0
    %1954 = vmatpush1.bf16.msra.mxu0 0
    %1955 = vmatprep.subr.bf16.mxu0 0
    %1956 = vmatpush1.bf16.msra.mxu0 0
    %1957 = vmatprep.subr.bf16.mxu0 0
    %1958 = vmatpush1.bf16.msra.mxu0 0
    %1959 = vmatprep.subr.bf16.mxu0 0
    %1960 = vmatpush1.bf16.msra.mxu0 0
    %1961 = vmatprep.subr.bf16.mxu0 0
    %1962 = vmatpush1.bf16.msra.mxu0 0
    %1963 = vmatprep.subr.bf16.mxu0 0
    %1964 = vmatpush1.bf16.msra.mxu0 0
    %1965 = vmatprep.subr.bf16.mxu0 0
    %1966 = vmatpush1.bf16.msra.mxu0 0
    %1967 = vmatprep.subr.bf16.mxu0 0
    %1968 = vmatpush1.bf16.msra.mxu0 0
    %1969 = vmatprep.subr.bf16.mxu0 0
    %1970 = vmatpush1.bf16.msra.mxu0 0
    %1971 = vmatprep.mubr.bf16.mxu0 0
    %1972 = vmatmul.mubr.bf16.gmra.mrb[0].mxu0 %v1937
    %v1973 = vpop.f32.mrb[0].mxu0
    %v1974 = vadd.f32 0.0, %v1973
    %v1975 = vpop.f32.mrb[0].mxu0
    %v1976 = vadd.f32 0.0, %v1975
    %v1977 = vpop.f32.mrb[0].mxu0
    %v1978 = vpop.f32.mrb[0].mxu0
    %1979 = vdwg.mxu0
    %v1988 = vunpack.c.l.b16 %v1879
    %v1989 = vunpack.c.h.b16 %v1879
    %v1990 = vunpack.c.l.b16 %v1880
    %v1991 = vunpack.c.h.b16 %v1880
    %v1992 = vunpack.c.l.b16 %v1881
    %v1993 = vunpack.c.h.b16 %v1881
    %v1994 = vunpack.c.l.b16 %v1882
    %v1995 = vunpack.c.h.b16 %v1882
    %v1996 = vunpack.c.l.b16 %v1883
    %v1997 = vunpack.c.h.b16 %v1883
    %v1998 = vunpack.c.l.b16 %v1884
    %v1999 = vunpack.c.h.b16 %v1884
    %v2000 = vunpack.c.l.b16 %v1885
    %v2001 = vunpack.c.h.b16 %v1885
    %v2002 = vunpack.c.l.b16 %v1886
    %v2003 = vunpack.c.h.b16 %v1886
    %v2004 = vpack.c.b16 %v1990, %v1988
    %v2005 = vpack.c.b16 %v1991, %v1989
    %v2006 = vpack.c.b16 %v1994, %v1992
    %v2007 = vpack.c.b16 %v1995, %v1993
    %v2008 = vpack.c.b16 %v1998, %v1996
    %v2009 = vpack.c.b16 %v1999, %v1997
    %v2010 = vpack.c.b16 %v2002, %v2000
    %v2011 = vpack.c.b16 %v2003, %v2001
    %v2021 = vsel %vm323, %v1878, 0
    %2023 = vmatprep.subr.bf16.mxu0 %v2005
    %2024 = vmatpush1.bf16.msra.mxu0 %v2004
    %2025 = vmatprep.subr.bf16.mxu0 %v2007
    %2026 = vmatpush1.bf16.msra.mxu0 %v2006
    %2027 = vmatprep.subr.bf16.mxu0 %v2009
    %2028 = vmatpush1.bf16.msra.mxu0 %v2008
    %2029 = vmatprep.subr.bf16.mxu0 %v2011
    %2030 = vmatpush1.bf16.msra.mxu0 %v2010
    %2031 = vmatprep.subr.bf16.mxu0 0
    %2032 = vmatpush1.bf16.msra.mxu0 0
    %2033 = vmatprep.subr.bf16.mxu0 0
    %2034 = vmatpush1.bf16.msra.mxu0 0
    %2035 = vmatprep.subr.bf16.mxu0 0
    %2036 = vmatpush1.bf16.msra.mxu0 0
    %2037 = vmatprep.subr.bf16.mxu0 0
    %2038 = vmatpush1.bf16.msra.mxu0 0
    %2039 = vmatprep.subr.bf16.mxu0 0
    %2040 = vmatpush1.bf16.msra.mxu0 0
    %2041 = vmatprep.subr.bf16.mxu0 0
    %2042 = vmatpush1.bf16.msra.mxu0 0
    %2043 = vmatprep.subr.bf16.mxu0 0
    %2044 = vmatpush1.bf16.msra.mxu0 0
    %2045 = vmatprep.subr.bf16.mxu0 0
    %2046 = vmatpush1.bf16.msra.mxu0 0
    %2047 = vmatprep.subr.bf16.mxu0 0
    %2048 = vmatpush1.bf16.msra.mxu0 0
    %2049 = vmatprep.subr.bf16.mxu0 0
    %2050 = vmatpush1.bf16.msra.mxu0 0
    %2051 = vmatprep.subr.bf16.mxu0 0
    %2052 = vmatpush1.bf16.msra.mxu0 0
    %2053 = vmatprep.subr.bf16.mxu0 0
    %2054 = vmatpush1.bf16.msra.mxu0 0
    %2055 = vmatprep.mubr.bf16.mxu0 0
    %2056 = vmatmul.mubr.bf16.gmra.mrb[0].mxu0 %v2021
    %v2057 = vpop.f32.mrb[0].mxu0
    %v2058 = vadd.f32 %v1974, %v2057
    %v2059 = vpop.f32.mrb[0].mxu0
    %v2060 = vadd.f32 %v1976, %v2059
    %v2061 = vpop.f32.mrb[0].mxu0
    %v2062 = vpop.f32.mrb[0].mxu0
    %2063 = vdwg.mxu0
    %v2064 = vld [vmem:[#allocation15] sm:$0x3]
    %v2066 = vlaneseq
    %v2067 = vshrl.u32 %v2066, 7
    %v2068 = vsub.s32 0, %v2067
    %v2069 = vrot.slane %v2064, %v2068
    %v2070 = vlaneseq
    %v2071 = vshrl.u32 %v2070, 7
    %v2072 = vsub.s32 1, %v2071
    %v2073 = vrot.slane %v2064, %v2072
    %v2076 = vadd.f32 %v2058, %v2069
    %v2077 = vadd.f32 %v2060, %v2073
    %v2078 = vxor.u32 %v2076, 2147483648
    %v2079 = vxor.u32 %v2077, 2147483648
    %v2080 = vmul.f32 %v2078, 1.442695
    %v2081 = vpow.pop %v2080
    %v2082 = vmul.f32 %v2079, 1.442695
    %v2083 = vpow.pop %v2082
    %v2084 = vadd.f32 %v2081, 1.0
    %v2085 = vadd.f32 %v2083, 1.0
    %v2086 = vrcp.pop %v2084
    %v2087 = vmul.f32 1.0, %v2086
    %v2088 = vrcp.pop %v2085
    %v2089 = vmul.f32 1.0, %v2088
    %v2090 = vtanh.pop %v2077
    %v2091 = vmul.f32 %v2087, %v1735
    %2093 = vrot.lane.b32.xlu0 %v2090, 64
    %v2094 = vpop.permute.xlu0 %2093
    %v2096 = vmul.f32 %v2087, %v2094
    %2098 = vrot.lane.b32.xlu0 %v2096, 64
    %v2099 = vpop.permute.xlu0 %2098
    %v2101 = vadd.f32 %v2091, %v2099
    %v2102 = vtanh.pop %v2101
    %2104 = vrot.lane.b32.xlu0 %v2102, 64
    %v2105 = vpop.permute.xlu0 %2104
    %v2107 = vmul.f32 %v2089, %v2105
    %s2108 = scalar_lea.vmem [#allocation21], 8
    %2109 = vst.msk [vmem:[%s2108] sm:$0x3] %vm638, %v2107
    %v2110 = vld [vmem:[#allocation2] sm:$0x20]
    %v2111 = vld [vmem:[#allocation2 + $0x8] sm:$0x20]
    %v2114 = vrot.slane %v2110, 4
    %v2115 = vrot.slane %v2111, 4
    %v2118 = vunpack.c.l.bf16 %v2114
    %v2119 = vunpack.c.l.bf16 %v2115
    %v2120 = vld [vmem:[#allocation9] sm:$0xff]
    %v2121 = vld [vmem:[#allocation9 + $0x8] sm:$0xff]
    %v2122 = vld [vmem:[#allocation9 + $0x10] sm:$0xff]
    %v2123 = vld [vmem:[#allocation9 + $0x18] sm:$0xff]
    %v2124 = vld [vmem:[#allocation9 + $0x20] sm:$0xff]
    %v2125 = vld [vmem:[#allocation9 + $0x28] sm:$0xff]
    %v2126 = vld [vmem:[#allocation9 + $0x30] sm:$0xff]
    %v2127 = vld [vmem:[#allocation9 + $0x38] sm:$0xff]
    %v2136 = vunpack.c.l.b16 %v2120
    %v2137 = vunpack.c.h.b16 %v2120
    %v2138 = vunpack.c.l.b16 %v2121
    %v2139 = vunpack.c.h.b16 %v2121
    %v2140 = vunpack.c.l.b16 %v2122
    %v2141 = vunpack.c.h.b16 %v2122
    %v2142 = vunpack.c.l.b16 %v2123
    %v2143 = vunpack.c.h.b16 %v2123
    %v2144 = vunpack.c.l.b16 %v2124
    %v2145 = vunpack.c.h.b16 %v2124
    %v2146 = vunpack.c.l.b16 %v2125
    %v2147 = vunpack.c.h.b16 %v2125
    %v2148 = vunpack.c.l.b16 %v2126
    %v2149 = vunpack.c.h.b16 %v2126
    %v2150 = vunpack.c.l.b16 %v2127
    %v2151 = vunpack.c.h.b16 %v2127
    %v2152 = vpack.c.b16 %v2138, %v2136
    %v2153 = vpack.c.b16 %v2139, %v2137
    %v2154 = vpack.c.b16 %v2142, %v2140
    %v2155 = vpack.c.b16 %v2143, %v2141
    %v2156 = vpack.c.b16 %v2146, %v2144
    %v2157 = vpack.c.b16 %v2147, %v2145
    %v2158 = vpack.c.b16 %v2150, %v2148
    %v2159 = vpack.c.b16 %v2151, %v2149
    %2168 = vmatprep.subr.bf16.mxu0 %v2153
    %2169 = vmatpush1.bf16.msra.mxu0 %v2152
    %2170 = vmatprep.subr.bf16.mxu0 %v2155
    %2171 = vmatpush1.bf16.msra.mxu0 %v2154
    %2172 = vmatprep.subr.bf16.mxu0 %v2157
    %2173 = vmatpush1.bf16.msra.mxu0 %v2156
    %2174 = vmatprep.subr.bf16.mxu0 %v2159
    %2175 = vmatpush1.bf16.msra.mxu0 %v2158
    %2176 = vmatprep.subr.bf16.mxu0 0
    %2177 = vmatpush1.bf16.msra.mxu0 0
    %2178 = vmatprep.subr.bf16.mxu0 0
    %2179 = vmatpush1.bf16.msra.mxu0 0
    %2180 = vmatprep.subr.bf16.mxu0 0
    %2181 = vmatpush1.bf16.msra.mxu0 0
    %2182 = vmatprep.subr.bf16.mxu0 0
    %2183 = vmatpush1.bf16.msra.mxu0 0
    %2184 = vmatprep.subr.bf16.mxu0 0
    %2185 = vmatpush1.bf16.msra.mxu0 0
    %2186 = vmatprep.subr.bf16.mxu0 0
    %2187 = vmatpush1.bf16.msra.mxu0 0
    %2188 = vmatprep.subr.bf16.mxu0 0
    %2189 = vmatpush1.bf16.msra.mxu0 0
    %2190 = vmatprep.subr.bf16.mxu0 0
    %2191 = vmatpush1.bf16.msra.mxu0 0
    %2192 = vmatprep.subr.bf16.mxu0 0
    %2193 = vmatpush1.bf16.msra.mxu0 0
    %2194 = vmatprep.subr.bf16.mxu0 0
    %2195 = vmatpush1.bf16.msra.mxu0 0
    %2196 = vmatprep.subr.bf16.mxu0 0
    %2197 = vmatpush1.bf16.msra.mxu0 0
    %2198 = vmatprep.subr.bf16.mxu0 0
    %2199 = vmatpush1.bf16.msra.mxu0 0
    %2200 = vmatprep.mubr.bf16.mxu0 0
    %2201 = vmatmul.mubr.bf16.gmra.mrb[0].mxu0 %v2021
    %v2202 = vpop.f32.mrb[0].mxu0
    %v2203 = vadd.f32 0.0, %v2202
    %v2204 = vpop.f32.mrb[0].mxu0
    %v2205 = vadd.f32 0.0, %v2204
    %v2206 = vpop.f32.mrb[0].mxu0
    %v2207 = vpop.f32.mrb[0].mxu0
    %2208 = vdwg.mxu0
    %v2211 = vrot.slane %v2203, 6
    %v2212 = vrot.slane %v2205, 6
    %v2215 = vadd.f32 %v2118, %v2211
    %v2216 = vadd.f32 %v2119, %v2212
    %v2217 = vxor.u32 %v2215, 2147483648
    %v2218 = vxor.u32 %v2216, 2147483648
    %v2219 = vmul.f32 %v2217, 1.442695
    %v2220 = vpow.pop %v2219
    %v2221 = vmul.f32 %v2218, 1.442695
    %v2222 = vpow.pop %v2221
    %v2223 = vadd.f32 %v2220, 1.0
    %v2224 = vadd.f32 %v2222, 1.0
    %v2225 = vrcp.pop %v2223
    %v2226 = vmul.f32 1.0, %v2225
    %v2227 = vrcp.pop %v2224
    %v2228 = vmul.f32 1.0, %v2227
    %v2229 = vtanh.pop %v2216
    %v2231 = vrot.slane %v1871, 6
    %v2233 = vmul.f32 %v2226, %v2231
    %2235 = vrot.lane.b32.xlu0 %v2229, 64
    %v2236 = vpop.permute.xlu0 %2235
    %v2238 = vmul.f32 %v2226, %v2236
    %2240 = vrot.lane.b32.xlu0 %v2238, 64
    %v2241 = vpop.permute.xlu0 %2240
    %v2243 = vadd.f32 %v2233, %v2241
    %v2244 = vtanh.pop %v2243
    %2246 = vrot.lane.b32.xlu0 %v2244, 64
    %v2247 = vpop.permute.xlu0 %2246
    %v2249 = vmul.f32 %v2228, %v2247
    %v2250 = vpack.c.bf16 %v2249, %v2249
    %v2251 = vld [vmem:[#allocation14] sm:$0xff]
    %v2252 = vld [vmem:[#allocation14 + $0x8] sm:$0xff]
    %v2253 = vld [vmem:[#allocation14 + $0x10] sm:$0xff]
    %v2254 = vld [vmem:[#allocation14 + $0x18] sm:$0xff]
    %v2255 = vld [vmem:[#allocation14 + $0x20] sm:$0xff]
    %v2256 = vld [vmem:[#allocation14 + $0x28] sm:$0xff]
    %v2257 = vld [vmem:[#allocation14 + $0x30] sm:$0xff]
    %v2258 = vld [vmem:[#allocation14 + $0x38] sm:$0xff]
    %v2259 = vpack.c.bf16 %v2107, %v2107
    %v2260 = vld [vmem:[#allocation17] sm:$0xff]
    %v2261 = vld [vmem:[#allocation17 + $0x8] sm:$0xff]
    %v2262 = vld [vmem:[#allocation17 + $0x10] sm:$0xff]
    %v2263 = vld [vmem:[#allocation17 + $0x18] sm:$0xff]
    %v2264 = vld [vmem:[#allocation17 + $0x20] sm:$0xff]
    %v2265 = vld [vmem:[#allocation17 + $0x28] sm:$0xff]
    %v2266 = vld [vmem:[#allocation17 + $0x30] sm:$0xff]
    %v2267 = vld [vmem:[#allocation17 + $0x38] sm:$0xff]
    %v2276 = vunpack.c.l.b16 %v2260
    %v2277 = vunpack.c.h.b16 %v2260
    %v2278 = vunpack.c.l.b16 %v2261
    %v2279 = vunpack.c.h.b16 %v2261
    %v2280 = vunpack.c.l.b16 %v2262
    %v2281 = vunpack.c.h.b16 %v2262
    %v2282 = vunpack.c.l.b16 %v2263
    %v2283 = vunpack.c.h.b16 %v2263
    %v2284 = vunpack.c.l.b16 %v2264
    %v2285 = vunpack.c.h.b16 %v2264
    %v2286 = vunpack.c.l.b16 %v2265
    %v2287 = vunpack.c.h.b16 %v2265
    %v2288 = vunpack.c.l.b16 %v2266
    %v2289 = vunpack.c.h.b16 %v2266
    %v2290 = vunpack.c.l.b16 %v2267
    %v2291 = vunpack.c.h.b16 %v2267
    %v2292 = vpack.c.b16 %v2278, %v2276
    %v2293 = vpack.c.b16 %v2279, %v2277
    %v2294 = vpack.c.b16 %v2282, %v2280
    %v2295 = vpack.c.b16 %v2283, %v2281
    %v2296 = vpack.c.b16 %v2286, %v2284
    %v2297 = vpack.c.b16 %v2287, %v2285
    %v2298 = vpack.c.b16 %v2290, %v2288
    %v2299 = vpack.c.b16 %v2291, %v2289
    %v2309 = vsel %vm323, %v2259, 0
    %2311 = vmatprep.subr.bf16.mxu0 %v2293
    %2312 = vmatpush1.bf16.msra.mxu0 %v2292
    %2313 = vmatprep.subr.bf16.mxu0 %v2295
    %2314 = vmatpush1.bf16.msra.mxu0 %v2294
    %2315 = vmatprep.subr.bf16.mxu0 %v2297
    %2316 = vmatpush1.bf16.msra.mxu0 %v2296
    %2317 = vmatprep.subr.bf16.mxu0 %v2299
    %2318 = vmatpush1.bf16.msra.mxu0 %v2298
    %2319 = vmatprep.subr.bf16.mxu0 0
    %2320 = vmatpush1.bf16.msra.mxu0 0
    %2321 = vmatprep.subr.bf16.mxu0 0
    %2322 = vmatpush1.bf16.msra.mxu0 0
    %2323 = vmatprep.subr.bf16.mxu0 0
    %2324 = vmatpush1.bf16.msra.mxu0 0
    %2325 = vmatprep.subr.bf16.mxu0 0
    %2326 = vmatpush1.bf16.msra.mxu0 0
    %2327 = vmatprep.subr.bf16.mxu0 0
    %2328 = vmatpush1.bf16.msra.mxu0 0
    %2329 = vmatprep.subr.bf16.mxu0 0
    %2330 = vmatpush1.bf16.msra.mxu0 0
    %2331 = vmatprep.subr.bf16.mxu0 0
    %2332 = vmatpush1.bf16.msra.mxu0 0
    %2333 = vmatprep.subr.bf16.mxu0 0
    %2334 = vmatpush1.bf16.msra.mxu0 0
    %2335 = vmatprep.subr.bf16.mxu0 0
    %2336 = vmatpush1.bf16.msra.mxu0 0
    %2337 = vmatprep.subr.bf16.mxu0 0
    %2338 = vmatpush1.bf16.msra.mxu0 0
    %2339 = vmatprep.subr.bf16.mxu0 0
    %2340 = vmatpush1.bf16.msra.mxu0 0
    %2341 = vmatprep.subr.bf16.mxu0 0
    %2342 = vmatpush1.bf16.msra.mxu0 0
    %2343 = vmatprep.mubr.bf16.mxu0 0
    %2344 = vmatmul.mubr.bf16.gmra.mrb[0].mxu0 %v2309
    %v2345 = vpop.f32.mrb[0].mxu0
    %v2346 = vadd.f32 0.0, %v2345
    %v2347 = vpop.f32.mrb[0].mxu0
    %v2348 = vadd.f32 0.0, %v2347
    %v2349 = vpop.f32.mrb[0].mxu0
    %v2350 = vpop.f32.mrb[0].mxu0
    %2351 = vdwg.mxu0
    %v2353 = vrot.slane %v2250, 1
    %v2362 = vunpack.c.l.b16 %v2251
    %v2363 = vunpack.c.h.b16 %v2251
    %v2364 = vunpack.c.l.b16 %v2252
    %v2365 = vunpack.c.h.b16 %v2252
    %v2366 = vunpack.c.l.b16 %v2253
    %v2367 = vunpack.c.h.b16 %v2253
    %v2368 = vunpack.c.l.b16 %v2254
    %v2369 = vunpack.c.h.b16 %v2254
    %v2370 = vunpack.c.l.b16 %v2255
    %v2371 = vunpack.c.h.b16 %v2255
    %v2372 = vunpack.c.l.b16 %v2256
    %v2373 = vunpack.c.h.b16 %v2256
    %v2374 = vunpack.c.l.b16 %v2257
    %v2375 = vunpack.c.h.b16 %v2257
    %v2376 = vunpack.c.l.b16 %v2258
    %v2377 = vunpack.c.h.b16 %v2258
    %v2378 = vpack.c.b16 %v2364, %v2362
    %v2379 = vpack.c.b16 %v2365, %v2363
    %v2380 = vpack.c.b16 %v2368, %v2366
    %v2381 = vpack.c.b16 %v2369, %v2367
    %v2382 = vpack.c.b16 %v2372, %v2370
    %v2383 = vpack.c.b16 %v2373, %v2371
    %v2384 = vpack.c.b16 %v2376, %v2374
    %v2385 = vpack.c.b16 %v2377, %v2375
    %v2395 = vsel %vm323, %v2353, 0
    %2397 = vmatprep.subr.bf16.mxu0 %v2379
    %2398 = vmatpush1.bf16.msra.mxu0 %v2378
    %2399 = vmatprep.subr.bf16.mxu0 %v2381
    %2400 = vmatpush1.bf16.msra.mxu0 %v2380
    %2401 = vmatprep.subr.bf16.mxu0 %v2383
    %2402 = vmatpush1.bf16.msra.mxu0 %v2382
    %2403 = vmatprep.subr.bf16.mxu0 %v2385
    %2404 = vmatpush1.bf16.msra.mxu0 %v2384
    %2405 = vmatprep.subr.bf16.mxu0 0
    %2406 = vmatpush1.bf16.msra.mxu0 0
    %2407 = vmatprep.subr.bf16.mxu0 0
    %2408 = vmatpush1.bf16.msra.mxu0 0
    %2409 = vmatprep.subr.bf16.mxu0 0
    %2410 = vmatpush1.bf16.msra.mxu0 0
    %2411 = vmatprep.subr.bf16.mxu0 0
    %2412 = vmatpush1.bf16.msra.mxu0 0
    %2413 = vmatprep.subr.bf16.mxu0 0
    %2414 = vmatpush1.bf16.msra.mxu0 0
    %2415 = vmatprep.subr.bf16.mxu0 0
    %2416 = vmatpush1.bf16.msra.mxu0 0
    %2417 = vmatprep.subr.bf16.mxu0 0
    %2418 = vmatpush1.bf16.msra.mxu0 0
    %2419 = vmatprep.subr.bf16.mxu0 0
    %2420 = vmatpush1.bf16.msra.mxu0 0
    %2421 = vmatprep.subr.bf16.mxu0 0
    %2422 = vmatpush1.bf16.msra.mxu0 0
    %2423 = vmatprep.subr.bf16.mxu0 0
    %2424 = vmatpush1.bf16.msra.mxu0 0
    %2425 = vmatprep.subr.bf16.mxu0 0
    %2426 = vmatpush1.bf16.msra.mxu0 0
    %2427 = vmatprep.subr.bf16.mxu0 0
    %2428 = vmatpush1.bf16.msra.mxu0 0
    %2429 = vmatprep.mubr.bf16.mxu0 0
    %2430 = vmatmul.mubr.bf16.gmra.mrb[0].mxu0 %v2395
    %v2431 = vpop.f32.mrb[0].mxu0
    %v2432 = vadd.f32 %v2346, %v2431
    %v2433 = vpop.f32.mrb[0].mxu0
    %v2434 = vadd.f32 %v2348, %v2433
    %v2435 = vpop.f32.mrb[0].mxu0
    %v2436 = vpop.f32.mrb[0].mxu0
    %2437 = vdwg.mxu0
    %v2438 = vld [vmem:[#allocation15] sm:$0x3]
    %v2440 = vlaneseq
    %v2441 = vshrl.u32 %v2440, 7
    %v2442 = vsub.s32 0, %v2441
    %v2443 = vrot.slane %v2438, %v2442
    %v2444 = vlaneseq
    %v2445 = vshrl.u32 %v2444, 7
    %v2446 = vsub.s32 1, %v2445
    %v2447 = vrot.slane %v2438, %v2446
    %v2450 = vadd.f32 %v2432, %v2443
    %v2451 = vadd.f32 %v2434, %v2447
    %v2452 = vxor.u32 %v2450, 2147483648
    %v2453 = vxor.u32 %v2451, 2147483648
    %v2454 = vmul.f32 %v2452, 1.442695
    %v2455 = vpow.pop %v2454
    %v2456 = vmul.f32 %v2453, 1.442695
    %v2457 = vpow.pop %v2456
    %v2458 = vadd.f32 %v2455, 1.0
    %v2459 = vadd.f32 %v2457, 1.0
    %v2460 = vrcp.pop %v2458
    %v2461 = vmul.f32 1.0, %v2460
    %v2462 = vrcp.pop %v2459
    %v2463 = vmul.f32 1.0, %v2462
    %v2464 = vtanh.pop %v2451
    %v2465 = vmul.f32 %v2461, %v2101
    %2467 = vrot.lane.b32.xlu0 %v2464, 64
    %v2468 = vpop.permute.xlu0 %2467
    %v2470 = vmul.f32 %v2461, %v2468
    %2472 = vrot.lane.b32.xlu0 %v2470, 64
    %v2473 = vpop.permute.xlu0 %2472
    %v2475 = vadd.f32 %v2465, %v2473
    %v2476 = vtanh.pop %v2475
    %2478 = vrot.lane.b32.xlu0 %v2476, 64
    %v2479 = vpop.permute.xlu0 %2478
    %v2481 = vmul.f32 %v2463, %v2479
    %s2482 = scalar_lea.vmem [#allocation21], 10
    %2483 = vst.msk [vmem:[%s2482] sm:$0x3] %vm638, %v2481
    %v2484 = vld [vmem:[#allocation2] sm:$0x40]
    %v2485 = vld [vmem:[#allocation2 + $0x8] sm:$0x40]
    %v2488 = vrot.slane %v2484, 4
    %v2489 = vrot.slane %v2485, 4
    %v2492 = vunpack.c.l.bf16 %v2488
    %v2493 = vunpack.c.l.bf16 %v2489
    %v2494 = vld [vmem:[#allocation9] sm:$0xff]
    %v2495 = vld [vmem:[#allocation9 + $0x8] sm:$0xff]
    %v2496 = vld [vmem:[#allocation9 + $0x10] sm:$0xff]
    %v2497 = vld [vmem:[#allocation9 + $0x18] sm:$0xff]
    %v2498 = vld [vmem:[#allocation9 + $0x20] sm:$0xff]
    %v2499 = vld [vmem:[#allocation9 + $0x28] sm:$0xff]
    %v2500 = vld [vmem:[#allocation9 + $0x30] sm:$0xff]
    %v2501 = vld [vmem:[#allocation9 + $0x38] sm:$0xff]
    %v2510 = vunpack.c.l.b16 %v2494
    %v2511 = vunpack.c.h.b16 %v2494
    %v2512 = vunpack.c.l.b16 %v2495
    %v2513 = vunpack.c.h.b16 %v2495
    %v2514 = vunpack.c.l.b16 %v2496
    %v2515 = vunpack.c.h.b16 %v2496
    %v2516 = vunpack.c.l.b16 %v2497
    %v2517 = vunpack.c.h.b16 %v2497
    %v2518 = vunpack.c.l.b16 %v2498
    %v2519 = vunpack.c.h.b16 %v2498
    %v2520 = vunpack.c.l.b16 %v2499
    %v2521 = vunpack.c.h.b16 %v2499
    %v2522 = vunpack.c.l.b16 %v2500
    %v2523 = vunpack.c.h.b16 %v2500
    %v2524 = vunpack.c.l.b16 %v2501
    %v2525 = vunpack.c.h.b16 %v2501
    %v2526 = vpack.c.b16 %v2512, %v2510
    %v2527 = vpack.c.b16 %v2513, %v2511
    %v2528 = vpack.c.b16 %v2516, %v2514
    %v2529 = vpack.c.b16 %v2517, %v2515
    %v2530 = vpack.c.b16 %v2520, %v2518
    %v2531 = vpack.c.b16 %v2521, %v2519
    %v2532 = vpack.c.b16 %v2524, %v2522
    %v2533 = vpack.c.b16 %v2525, %v2523
    %2542 = vmatprep.subr.bf16.mxu0 %v2527
    %2543 = vmatpush1.bf16.msra.mxu0 %v2526
    %2544 = vmatprep.subr.bf16.mxu0 %v2529
    %2545 = vmatpush1.bf16.msra.mxu0 %v2528
    %2546 = vmatprep.subr.bf16.mxu0 %v2531
    %2547 = vmatpush1.bf16.msra.mxu0 %v2530
    %2548 = vmatprep.subr.bf16.mxu0 %v2533
    %2549 = vmatpush1.bf16.msra.mxu0 %v2532
    %2550 = vmatprep.subr.bf16.mxu0 0
    %2551 = vmatpush1.bf16.msra.mxu0 0
    %2552 = vmatprep.subr.bf16.mxu0 0
    %2553 = vmatpush1.bf16.msra.mxu0 0
    %2554 = vmatprep.subr.bf16.mxu0 0
    %2555 = vmatpush1.bf16.msra.mxu0 0
    %2556 = vmatprep.subr.bf16.mxu0 0
    %2557 = vmatpush1.bf16.msra.mxu0 0
    %2558 = vmatprep.subr.bf16.mxu0 0
    %2559 = vmatpush1.bf16.msra.mxu0 0
    %2560 = vmatprep.subr.bf16.mxu0 0
    %2561 = vmatpush1.bf16.msra.mxu0 0
    %2562 = vmatprep.subr.bf16.mxu0 0
    %2563 = vmatpush1.bf16.msra.mxu0 0
    %2564 = vmatprep.subr.bf16.mxu0 0
    %2565 = vmatpush1.bf16.msra.mxu0 0
    %2566 = vmatprep.subr.bf16.mxu0 0
    %2567 = vmatpush1.bf16.msra.mxu0 0
    %2568 = vmatprep.subr.bf16.mxu0 0
    %2569 = vmatpush1.bf16.msra.mxu0 0
    %2570 = vmatprep.subr.bf16.mxu0 0
    %2571 = vmatpush1.bf16.msra.mxu0 0
    %2572 = vmatprep.subr.bf16.mxu0 0
    %2573 = vmatpush1.bf16.msra.mxu0 0
    %2574 = vmatprep.mubr.bf16.mxu0 0
    %2575 = vmatmul.mubr.bf16.gmra.mrb[0].mxu0 %v2395
    %v2576 = vpop.f32.mrb[0].mxu0
    %v2577 = vadd.f32 0.0, %v2576
    %v2578 = vpop.f32.mrb[0].mxu0
    %v2579 = vadd.f32 0.0, %v2578
    %v2580 = vpop.f32.mrb[0].mxu0
    %v2581 = vpop.f32.mrb[0].mxu0
    %2582 = vdwg.mxu0
    %v2585 = vrot.slane %v2577, 4
    %v2586 = vrot.slane %v2579, 4
    %v2589 = vadd.f32 %v2492, %v2585
    %v2590 = vadd.f32 %v2493, %v2586
    %v2591 = vxor.u32 %v2589, 2147483648
    %v2592 = vxor.u32 %v2590, 2147483648
    %v2593 = vmul.f32 %v2591, 1.442695
    %v2594 = vpow.pop %v2593
    %v2595 = vmul.f32 %v2592, 1.442695
    %v2596 = vpow.pop %v2595
    %v2597 = vadd.f32 %v2594, 1.0
    %v2598 = vadd.f32 %v2596, 1.0
    %v2599 = vrcp.pop %v2597
    %v2600 = vmul.f32 1.0, %v2599
    %v2601 = vrcp.pop %v2598
    %v2602 = vmul.f32 1.0, %v2601
    %v2603 = vtanh.pop %v2590
    %v2605 = vrot.slane %v2243, 6
    %v2607 = vmul.f32 %v2600, %v2605
    %2609 = vrot.lane.b32.xlu0 %v2603, 64
    %v2610 = vpop.permute.xlu0 %2609
    %v2612 = vmul.f32 %v2600, %v2610
    %2614 = vrot.lane.b32.xlu0 %v2612, 64
    %v2615 = vpop.permute.xlu0 %2614
    %v2617 = vadd.f32 %v2607, %v2615
    %v2618 = vtanh.pop %v2617
    %2620 = vrot.lane.b32.xlu0 %v2618, 64
    %v2621 = vpop.permute.xlu0 %2620
    %v2623 = vmul.f32 %v2602, %v2621
    %v2624 = vpack.c.bf16 %v2623, %v2623
    %v2625 = vld [vmem:[#allocation14] sm:$0xff]
    %v2626 = vld [vmem:[#allocation14 + $0x8] sm:$0xff]
    %v2627 = vld [vmem:[#allocation14 + $0x10] sm:$0xff]
    %v2628 = vld [vmem:[#allocation14 + $0x18] sm:$0xff]
    %v2629 = vld [vmem:[#allocation14 + $0x20] sm:$0xff]
    %v2630 = vld [vmem:[#allocation14 + $0x28] sm:$0xff]
    %v2631 = vld [vmem:[#allocation14 + $0x30] sm:$0xff]
    %v2632 = vld [vmem:[#allocation14 + $0x38] sm:$0xff]
    %v2633 = vpack.c.bf16 %v2481, %v2481
    %v2634 = vld [vmem:[#allocation17] sm:$0xff]
    %v2635 = vld [vmem:[#allocation17 + $0x8] sm:$0xff]
    %v2636 = vld [vmem:[#allocation17 + $0x10] sm:$0xff]
    %v2637 = vld [vmem:[#allocation17 + $0x18] sm:$0xff]
    %v2638 = vld [vmem:[#allocation17 + $0x20] sm:$0xff]
    %v2639 = vld [vmem:[#allocation17 + $0x28] sm:$0xff]
    %v2640 = vld [vmem:[#allocation17 + $0x30] sm:$0xff]
    %v2641 = vld [vmem:[#allocation17 + $0x38] sm:$0xff]
    %v2650 = vunpack.c.l.b16 %v2634
    %v2651 = vunpack.c.h.b16 %v2634
    %v2652 = vunpack.c.l.b16 %v2635
    %v2653 = vunpack.c.h.b16 %v2635
    %v2654 = vunpack.c.l.b16 %v2636
    %v2655 = vunpack.c.h.b16 %v2636
    %v2656 = vunpack.c.l.b16 %v2637
    %v2657 = vunpack.c.h.b16 %v2637
    %v2658 = vunpack.c.l.b16 %v2638
    %v2659 = vunpack.c.h.b16 %v2638
    %v2660 = vunpack.c.l.b16 %v2639
    %v2661 = vunpack.c.h.b16 %v2639
    %v2662 = vunpack.c.l.b16 %v2640
    %v2663 = vunpack.c.h.b16 %v2640
    %v2664 = vunpack.c.l.b16 %v2641
    %v2665 = vunpack.c.h.b16 %v2641
    %v2666 = vpack.c.b16 %v2652, %v2650
    %v2667 = vpack.c.b16 %v2653, %v2651
    %v2668 = vpack.c.b16 %v2656, %v2654
    %v2669 = vpack.c.b16 %v2657, %v2655
    %v2670 = vpack.c.b16 %v2660, %v2658
    %v2671 = vpack.c.b16 %v2661, %v2659
    %v2672 = vpack.c.b16 %v2664, %v2662
    %v2673 = vpack.c.b16 %v2665, %v2663
    %v2683 = vsel %vm323, %v2633, 0
    %2685 = vmatprep.subr.bf16.mxu0 %v2667
    %2686 = vmatpush1.bf16.msra.mxu0 %v2666
    %2687 = vmatprep.subr.bf16.mxu0 %v2669
    %2688 = vmatpush1.bf16.msra.mxu0 %v2668
    %2689 = vmatprep.subr.bf16.mxu0 %v2671
    %2690 = vmatpush1.bf16.msra.mxu0 %v2670
    %2691 = vmatprep.subr.bf16.mxu0 %v2673
    %2692 = vmatpush1.bf16.msra.mxu0 %v2672
    %2693 = vmatprep.subr.bf16.mxu0 0
    %2694 = vmatpush1.bf16.msra.mxu0 0
    %2695 = vmatprep.subr.bf16.mxu0 0
    %2696 = vmatpush1.bf16.msra.mxu0 0
    %2697 = vmatprep.subr.bf16.mxu0 0
    %2698 = vmatpush1.bf16.msra.mxu0 0
    %2699 = vmatprep.subr.bf16.mxu0 0
    %2700 = vmatpush1.bf16.msra.mxu0 0
    %2701 = vmatprep.subr.bf16.mxu0 0
    %2702 = vmatpush1.bf16.msra.mxu0 0
    %2703 = vmatprep.subr.bf16.mxu0 0
    %2704 = vmatpush1.bf16.msra.mxu0 0
    %2705 = vmatprep.subr.bf16.mxu0 0
    %2706 = vmatpush1.bf16.msra.mxu0 0
    %2707 = vmatprep.subr.bf16.mxu0 0
    %2708 = vmatpush1.bf16.msra.mxu0 0
    %2709 = vmatprep.subr.bf16.mxu0 0
    %2710 = vmatpush1.bf16.msra.mxu0 0
    %2711 = vmatprep.subr.bf16.mxu0 0
    %2712 = vmatpush1.bf16.msra.mxu0 0
    %2713 = vmatprep.subr.bf16.mxu0 0
    %2714 = vmatpush1.bf16.msra.mxu0 0
    %2715 = vmatprep.subr.bf16.mxu0 0
    %2716 = vmatpush1.bf16.msra.mxu0 0
    %2717 = vmatprep.mubr.bf16.mxu0 0
    %2718 = vmatmul.mubr.bf16.gmra.mrb[0].mxu0 %v2683
    %v2719 = vpop.f32.mrb[0].mxu0
    %v2720 = vadd.f32 0.0, %v2719
    %v2721 = vpop.f32.mrb[0].mxu0
    %v2722 = vadd.f32 0.0, %v2721
    %v2723 = vpop.f32.mrb[0].mxu0
    %v2724 = vpop.f32.mrb[0].mxu0
    %2725 = vdwg.mxu0
    %v2727 = vrot.slane %v2624, 2
    %v2736 = vunpack.c.l.b16 %v2625
    %v2737 = vunpack.c.h.b16 %v2625
    %v2738 = vunpack.c.l.b16 %v2626
    %v2739 = vunpack.c.h.b16 %v2626
    %v2740 = vunpack.c.l.b16 %v2627
    %v2741 = vunpack.c.h.b16 %v2627
    %v2742 = vunpack.c.l.b16 %v2628
    %v2743 = vunpack.c.h.b16 %v2628
    %v2744 = vunpack.c.l.b16 %v2629
    %v2745 = vunpack.c.h.b16 %v2629
    %v2746 = vunpack.c.l.b16 %v2630
    %v2747 = vunpack.c.h.b16 %v2630
    %v2748 = vunpack.c.l.b16 %v2631
    %v2749 = vunpack.c.h.b16 %v2631
    %v2750 = vunpack.c.l.b16 %v2632
    %v2751 = vunpack.c.h.b16 %v2632
    %v2752 = vpack.c.b16 %v2738, %v2736
    %v2753 = vpack.c.b16 %v2739, %v2737
    %v2754 = vpack.c.b16 %v2742, %v2740
    %v2755 = vpack.c.b16 %v2743, %v2741
    %v2756 = vpack.c.b16 %v2746, %v2744
    %v2757 = vpack.c.b16 %v2747, %v2745
    %v2758 = vpack.c.b16 %v2750, %v2748
    %v2759 = vpack.c.b16 %v2751, %v2749
    %v2769 = vsel %vm323, %v2727, 0
    %2771 = vmatprep.subr.bf16.mxu0 %v2753
    %2772 = vmatpush1.bf16.msra.mxu0 %v2752
    %2773 = vmatprep.subr.bf16.mxu0 %v2755
    %2774 = vmatpush1.bf16.msra.mxu0 %v2754
    %2775 = vmatprep.subr.bf16.mxu0 %v2757
    %2776 = vmatpush1.bf16.msra.mxu0 %v2756
    %2777 = vmatprep.subr.bf16.mxu0 %v2759
    %2778 = vmatpush1.bf16.msra.mxu0 %v2758
    %2779 = vmatprep.subr.bf16.mxu0 0
    %2780 = vmatpush1.bf16.msra.mxu0 0
    %2781 = vmatprep.subr.bf16.mxu0 0
    %2782 = vmatpush1.bf16.msra.mxu0 0
    %2783 = vmatprep.subr.bf16.mxu0 0
    %2784 = vmatpush1.bf16.msra.mxu0 0
    %2785 = vmatprep.subr.bf16.mxu0 0
    %2786 = vmatpush1.bf16.msra.mxu0 0
    %2787 = vmatprep.subr.bf16.mxu0 0
    %2788 = vmatpush1.bf16.msra.mxu0 0
    %2789 = vmatprep.subr.bf16.mxu0 0
    %2790 = vmatpush1.bf16.msra.mxu0 0
    %2791 = vmatprep.subr.bf16.mxu0 0
    %2792 = vmatpush1.bf16.msra.mxu0 0
    %2793 = vmatprep.subr.bf16.mxu0 0
    %2794 = vmatpush1.bf16.msra.mxu0 0
    %2795 = vmatprep.subr.bf16.mxu0 0
    %2796 = vmatpush1.bf16.msra.mxu0 0
    %2797 = vmatprep.subr.bf16.mxu0 0
    %2798 = vmatpush1.bf16.msra.mxu0 0
    %2799 = vmatprep.subr.bf16.mxu0 0
    %2800 = vmatpush1.bf16.msra.mxu0 0
    %2801 = vmatprep.subr.bf16.mxu0 0
    %2802 = vmatpush1.bf16.msra.mxu0 0
    %2803 = vmatprep.mubr.bf16.mxu0 0
    %2804 = vmatmul.mubr.bf16.gmra.mrb[0].mxu0 %v2769
    %v2805 = vpop.f32.mrb[0].mxu0
    %v2806 = vadd.f32 %v2720, %v2805
    %v2807 = vpop.f32.mrb[0].mxu0
    %v2808 = vadd.f32 %v2722, %v2807
    %v2809 = vpop.f32.mrb[0].mxu0
    %v2810 = vpop.f32.mrb[0].mxu0
    %2811 = vdwg.mxu0
    %v2812 = vld [vmem:[#allocation15] sm:$0x3]
    %v2814 = vlaneseq
    %v2815 = vshrl.u32 %v2814, 7
    %v2816 = vsub.s32 0, %v2815
    %v2817 = vrot.slane %v2812, %v2816
    %v2818 = vlaneseq
    %v2819 = vshrl.u32 %v2818, 7
    %v2820 = vsub.s32 1, %v2819
    %v2821 = vrot.slane %v2812, %v2820
    %v2824 = vadd.f32 %v2806, %v2817
    %v2825 = vadd.f32 %v2808, %v2821
    %v2826 = vxor.u32 %v2824, 2147483648
    %v2827 = vxor.u32 %v2825, 2147483648
    %v2828 = vmul.f32 %v2826, 1.442695
    %v2829 = vpow.pop %v2828
    %v2830 = vmul.f32 %v2827, 1.442695
    %v2831 = vpow.pop %v2830
    %v2832 = vadd.f32 %v2829, 1.0
    %v2833 = vadd.f32 %v2831, 1.0
    %v2834 = vrcp.pop %v2832
    %v2835 = vmul.f32 1.0, %v2834
    %v2836 = vrcp.pop %v2833
    %v2837 = vmul.f32 1.0, %v2836
    %v2838 = vtanh.pop %v2825
    %v2839 = vmul.f32 %v2835, %v2475
    %2841 = vrot.lane.b32.xlu0 %v2838, 64
    %v2842 = vpop.permute.xlu0 %2841
    %v2844 = vmul.f32 %v2835, %v2842
    %2846 = vrot.lane.b32.xlu0 %v2844, 64
    %v2847 = vpop.permute.xlu0 %2846
    %v2849 = vadd.f32 %v2839, %v2847
    %v2850 = vtanh.pop %v2849
    %2852 = vrot.lane.b32.xlu0 %v2850, 64
    %v2853 = vpop.permute.xlu0 %2852
    %v2855 = vmul.f32 %v2837, %v2853
    %s2856 = scalar_lea.vmem [#allocation21], 12
    %2857 = vst.msk [vmem:[%s2856] sm:$0x3] %vm638, %v2855
    %v2858 = vld [vmem:[#allocation2] sm:$0x80]
    %v2859 = vld [vmem:[#allocation2 + $0x8] sm:$0x80]
    %v2862 = vrot.slane %v2858, 4
    %v2863 = vrot.slane %v2859, 4
    %v2866 = vunpack.c.l.bf16 %v2862
    %v2867 = vunpack.c.l.bf16 %v2863
    %v2868 = vld [vmem:[#allocation9] sm:$0xff]
    %v2869 = vld [vmem:[#allocation9 + $0x8] sm:$0xff]
    %v2870 = vld [vmem:[#allocation9 + $0x10] sm:$0xff]
    %v2871 = vld [vmem:[#allocation9 + $0x18] sm:$0xff]
    %v2872 = vld [vmem:[#allocation9 + $0x20] sm:$0xff]
    %v2873 = vld [vmem:[#allocation9 + $0x28] sm:$0xff]
    %v2874 = vld [vmem:[#allocation9 + $0x30] sm:$0xff]
    %v2875 = vld [vmem:[#allocation9 + $0x38] sm:$0xff]
    %v2884 = vunpack.c.l.b16 %v2868
    %v2885 = vunpack.c.h.b16 %v2868
    %v2886 = vunpack.c.l.b16 %v2869
    %v2887 = vunpack.c.h.b16 %v2869
    %v2888 = vunpack.c.l.b16 %v2870
    %v2889 = vunpack.c.h.b16 %v2870
    %v2890 = vunpack.c.l.b16 %v2871
    %v2891 = vunpack.c.h.b16 %v2871
    %v2892 = vunpack.c.l.b16 %v2872
    %v2893 = vunpack.c.h.b16 %v2872
    %v2894 = vunpack.c.l.b16 %v2873
    %v2895 = vunpack.c.h.b16 %v2873
    %v2896 = vunpack.c.l.b16 %v2874
    %v2897 = vunpack.c.h.b16 %v2874
    %v2898 = vunpack.c.l.b16 %v2875
    %v2899 = vunpack.c.h.b16 %v2875
    %v2900 = vpack.c.b16 %v2886, %v2884
    %v2901 = vpack.c.b16 %v2887, %v2885
    %v2902 = vpack.c.b16 %v2890, %v2888
    %v2903 = vpack.c.b16 %v2891, %v2889
    %v2904 = vpack.c.b16 %v2894, %v2892
    %v2905 = vpack.c.b16 %v2895, %v2893
    %v2906 = vpack.c.b16 %v2898, %v2896
    %v2907 = vpack.c.b16 %v2899, %v2897
    %2916 = vmatprep.subr.bf16.mxu0 %v2901
    %2917 = vmatpush1.bf16.msra.mxu0 %v2900
    %2918 = vmatprep.subr.bf16.mxu0 %v2903
    %2919 = vmatpush1.bf16.msra.mxu0 %v2902
    %2920 = vmatprep.subr.bf16.mxu0 %v2905
    %2921 = vmatpush1.bf16.msra.mxu0 %v2904
    %2922 = vmatprep.subr.bf16.mxu0 %v2907
    %2923 = vmatpush1.bf16.msra.mxu0 %v2906
    %2924 = vmatprep.subr.bf16.mxu0 0
    %2925 = vmatpush1.bf16.msra.mxu0 0
    %2926 = vmatprep.subr.bf16.mxu0 0
    %2927 = vmatpush1.bf16.msra.mxu0 0
    %2928 = vmatprep.subr.bf16.mxu0 0
    %2929 = vmatpush1.bf16.msra.mxu0 0
    %2930 = vmatprep.subr.bf16.mxu0 0
    %2931 = vmatpush1.bf16.msra.mxu0 0
    %2932 = vmatprep.subr.bf16.mxu0 0
    %2933 = vmatpush1.bf16.msra.mxu0 0
    %2934 = vmatprep.subr.bf16.mxu0 0
    %2935 = vmatpush1.bf16.msra.mxu0 0
    %2936 = vmatprep.subr.bf16.mxu0 0
    %2937 = vmatpush1.bf16.msra.mxu0 0
    %2938 = vmatprep.subr.bf16.mxu0 0
    %2939 = vmatpush1.bf16.msra.mxu0 0
    %2940 = vmatprep.subr.bf16.mxu0 0
    %2941 = vmatpush1.bf16.msra.mxu0 0
    %2942 = vmatprep.subr.bf16.mxu0 0
    %2943 = vmatpush1.bf16.msra.mxu0 0
    %2944 = vmatprep.subr.bf16.mxu0 0
    %2945 = vmatpush1.bf16.msra.mxu0 0
    %2946 = vmatprep.subr.bf16.mxu0 0
    %2947 = vmatpush1.bf16.msra.mxu0 0
    %2948 = vmatprep.mubr.bf16.mxu0 0
    %2949 = vmatmul.mubr.bf16.gmra.mrb[0].mxu0 %v2769
    %v2950 = vpop.f32.mrb[0].mxu0
    %v2951 = vadd.f32 0.0, %v2950
    %v2952 = vpop.f32.mrb[0].mxu0
    %v2953 = vadd.f32 0.0, %v2952
    %v2954 = vpop.f32.mrb[0].mxu0
    %v2955 = vpop.f32.mrb[0].mxu0
    %2956 = vdwg.mxu0
    %v2959 = vrot.slane %v2951, 2
    %v2960 = vrot.slane %v2953, 2
    %v2963 = vadd.f32 %v2866, %v2959
    %v2964 = vadd.f32 %v2867, %v2960
    %v2965 = vxor.u32 %v2963, 2147483648
    %v2966 = vxor.u32 %v2964, 2147483648
    %v2967 = vmul.f32 %v2965, 1.442695
    %v2968 = vpow.pop %v2967
    %v2969 = vmul.f32 %v2966, 1.442695
    %v2970 = vpow.pop %v2969
    %v2971 = vadd.f32 %v2968, 1.0
    %v2972 = vadd.f32 %v2970, 1.0
    %v2973 = vrcp.pop %v2971
    %v2974 = vmul.f32 1.0, %v2973
    %v2975 = vrcp.pop %v2972
    %v2976 = vmul.f32 1.0, %v2975
    %v2977 = vtanh.pop %v2964
    %v2979 = vrot.slane %v2617, 6
    %v2981 = vmul.f32 %v2974, %v2979
    %2983 = vrot.lane.b32.xlu0 %v2977, 64
    %v2984 = vpop.permute.xlu0 %2983
    %v2986 = vmul.f32 %v2974, %v2984
    %2988 = vrot.lane.b32.xlu0 %v2986, 64
    %v2989 = vpop.permute.xlu0 %2988
    %v2991 = vadd.f32 %v2981, %v2989
    %v2992 = vtanh.pop %v2991
    %2994 = vrot.lane.b32.xlu0 %v2992, 64
    %v2995 = vpop.permute.xlu0 %2994
    %v2997 = vmul.f32 %v2976, %v2995
    %v2998 = vpack.c.bf16 %v2997, %v2997
    %v2999 = vld [vmem:[#allocation14] sm:$0xff]
    %v3000 = vld [vmem:[#allocation14 + $0x8] sm:$0xff]
    %v3001 = vld [vmem:[#allocation14 + $0x10] sm:$0xff]
    %v3002 = vld [vmem:[#allocation14 + $0x18] sm:$0xff]
    %v3003 = vld [vmem:[#allocation14 + $0x20] sm:$0xff]
    %v3004 = vld [vmem:[#allocation14 + $0x28] sm:$0xff]
    %v3005 = vld [vmem:[#allocation14 + $0x30] sm:$0xff]
    %v3006 = vld [vmem:[#allocation14 + $0x38] sm:$0xff]
    %v3007 = vpack.c.bf16 %v2855, %v2855
    %v3008 = vld [vmem:[#allocation17] sm:$0xff]
    %v3009 = vld [vmem:[#allocation17 + $0x8] sm:$0xff]
    %v3010 = vld [vmem:[#allocation17 + $0x10] sm:$0xff]
    %v3011 = vld [vmem:[#allocation17 + $0x18] sm:$0xff]
    %v3012 = vld [vmem:[#allocation17 + $0x20] sm:$0xff]
    %v3013 = vld [vmem:[#allocation17 + $0x28] sm:$0xff]
    %v3014 = vld [vmem:[#allocation17 + $0x30] sm:$0xff]
    %v3015 = vld [vmem:[#allocation17 + $0x38] sm:$0xff]
    %v3024 = vunpack.c.l.b16 %v3008
    %v3025 = vunpack.c.h.b16 %v3008
    %v3026 = vunpack.c.l.b16 %v3009
    %v3027 = vunpack.c.h.b16 %v3009
    %v3028 = vunpack.c.l.b16 %v3010
    %v3029 = vunpack.c.h.b16 %v3010
    %v3030 = vunpack.c.l.b16 %v3011
    %v3031 = vunpack.c.h.b16 %v3011
    %v3032 = vunpack.c.l.b16 %v3012
    %v3033 = vunpack.c.h.b16 %v3012
    %v3034 = vunpack.c.l.b16 %v3013
    %v3035 = vunpack.c.h.b16 %v3013
    %v3036 = vunpack.c.l.b16 %v3014
    %v3037 = vunpack.c.h.b16 %v3014
    %v3038 = vunpack.c.l.b16 %v3015
    %v3039 = vunpack.c.h.b16 %v3015
    %v3040 = vpack.c.b16 %v3026, %v3024
    %v3041 = vpack.c.b16 %v3027, %v3025
    %v3042 = vpack.c.b16 %v3030, %v3028
    %v3043 = vpack.c.b16 %v3031, %v3029
    %v3044 = vpack.c.b16 %v3034, %v3032
    %v3045 = vpack.c.b16 %v3035, %v3033
    %v3046 = vpack.c.b16 %v3038, %v3036
    %v3047 = vpack.c.b16 %v3039, %v3037
    %v3057 = vsel %vm323, %v3007, 0
    %3059 = vmatprep.subr.bf16.mxu0 %v3041
    %3060 = vmatpush1.bf16.msra.mxu0 %v3040
    %3061 = vmatprep.subr.bf16.mxu0 %v3043
    %3062 = vmatpush1.bf16.msra.mxu0 %v3042
    %3063 = vmatprep.subr.bf16.mxu0 %v3045
    %3064 = vmatpush1.bf16.msra.mxu0 %v3044
    %3065 = vmatprep.subr.bf16.mxu0 %v3047
    %3066 = vmatpush1.bf16.msra.mxu0 %v3046
    %3067 = vmatprep.subr.bf16.mxu0 0
    %3068 = vmatpush1.bf16.msra.mxu0 0
    %3069 = vmatprep.subr.bf16.mxu0 0
    %3070 = vmatpush1.bf16.msra.mxu0 0
    %3071 = vmatprep.subr.bf16.mxu0 0
    %3072 = vmatpush1.bf16.msra.mxu0 0
    %3073 = vmatprep.subr.bf16.mxu0 0
    %3074 = vmatpush1.bf16.msra.mxu0 0
    %3075 = vmatprep.subr.bf16.mxu0 0
    %3076 = vmatpush1.bf16.msra.mxu0 0
    %3077 = vmatprep.subr.bf16.mxu0 0
    %3078 = vmatpush1.bf16.msra.mxu0 0
    %3079 = vmatprep.subr.bf16.mxu0 0
    %3080 = vmatpush1.bf16.msra.mxu0 0
    %3081 = vmatprep.subr.bf16.mxu0 0
    %3082 = vmatpush1.bf16.msra.mxu0 0
    %3083 = vmatprep.subr.bf16.mxu0 0
    %3084 = vmatpush1.bf16.msra.mxu0 0
    %3085 = vmatprep.subr.bf16.mxu0 0
    %3086 = vmatpush1.bf16.msra.mxu0 0
    %3087 = vmatprep.subr.bf16.mxu0 0
    %3088 = vmatpush1.bf16.msra.mxu0 0
    %3089 = vmatprep.subr.bf16.mxu0 0
    %3090 = vmatpush1.bf16.msra.mxu0 0
    %3091 = vmatprep.mubr.bf16.mxu0 0
    %3092 = vmatmul.mubr.bf16.gmra.mrb[0].mxu0 %v3057
    %v3093 = vpop.f32.mrb[0].mxu0
    %v3094 = vadd.f32 0.0, %v3093
    %v3095 = vpop.f32.mrb[0].mxu0
    %v3096 = vadd.f32 0.0, %v3095
    %v3097 = vpop.f32.mrb[0].mxu0
    %v3098 = vpop.f32.mrb[0].mxu0
    %3099 = vdwg.mxu0
    %v3101 = vrot.slane %v2998, 3
    %v3110 = vunpack.c.l.b16 %v2999
    %v3111 = vunpack.c.h.b16 %v2999
    %v3112 = vunpack.c.l.b16 %v3000
    %v3113 = vunpack.c.h.b16 %v3000
    %v3114 = vunpack.c.l.b16 %v3001
    %v3115 = vunpack.c.h.b16 %v3001
    %v3116 = vunpack.c.l.b16 %v3002
    %v3117 = vunpack.c.h.b16 %v3002
    %v3118 = vunpack.c.l.b16 %v3003
    %v3119 = vunpack.c.h.b16 %v3003
    %v3120 = vunpack.c.l.b16 %v3004
    %v3121 = vunpack.c.h.b16 %v3004
    %v3122 = vunpack.c.l.b16 %v3005
    %v3123 = vunpack.c.h.b16 %v3005
    %v3124 = vunpack.c.l.b16 %v3006
    %v3125 = vunpack.c.h.b16 %v3006
    %v3126 = vpack.c.b16 %v3112, %v3110
    %v3127 = vpack.c.b16 %v3113, %v3111
    %v3128 = vpack.c.b16 %v3116, %v3114
    %v3129 = vpack.c.b16 %v3117, %v3115
    %v3130 = vpack.c.b16 %v3120, %v3118
    %v3131 = vpack.c.b16 %v3121, %v3119
    %v3132 = vpack.c.b16 %v3124, %v3122
    %v3133 = vpack.c.b16 %v3125, %v3123
    %v3143 = vsel %vm323, %v3101, 0
    %3145 = vmatprep.subr.bf16.mxu0 %v3127
    %3146 = vmatpush1.bf16.msra.mxu0 %v3126
    %3147 = vmatprep.subr.bf16.mxu0 %v3129
    %3148 = vmatpush1.bf16.msra.mxu0 %v3128
    %3149 = vmatprep.subr.bf16.mxu0 %v3131
    %3150 = vmatpush1.bf16.msra.mxu0 %v3130
    %3151 = vmatprep.subr.bf16.mxu0 %v3133
    %3152 = vmatpush1.bf16.msra.mxu0 %v3132
    %3153 = vmatprep.subr.bf16.mxu0 0
    %3154 = vmatpush1.bf16.msra.mxu0 0
    %3155 = vmatprep.subr.bf16.mxu0 0
    %3156 = vmatpush1.bf16.msra.mxu0 0
    %3157 = vmatprep.subr.bf16.mxu0 0
    %3158 = vmatpush1.bf16.msra.mxu0 0
    %3159 = vmatprep.subr.bf16.mxu0 0
    %3160 = vmatpush1.bf16.msra.mxu0 0
    %3161 = vmatprep.subr.bf16.mxu0 0
    %3162 = vmatpush1.bf16.msra.mxu0 0
    %3163 = vmatprep.subr.bf16.mxu0 0
    %3164 = vmatpush1.bf16.msra.mxu0 0
    %3165 = vmatprep.subr.bf16.mxu0 0
    %3166 = vmatpush1.bf16.msra.mxu0 0
    %3167 = vmatprep.subr.bf16.mxu0 0
    %3168 = vmatpush1.bf16.msra.mxu0 0
    %3169 = vmatprep.subr.bf16.mxu0 0
    %3170 = vmatpush1.bf16.msra.mxu0 0
    %3171 = vmatprep.subr.bf16.mxu0 0
    %3172 = vmatpush1.bf16.msra.mxu0 0
    %3173 = vmatprep.subr.bf16.mxu0 0
    %3174 = vmatpush1.bf16.msra.mxu0 0
    %3175 = vmatprep.subr.bf16.mxu0 0
    %3176 = vmatpush1.bf16.msra.mxu0 0
    %3177 = vmatprep.mubr.bf16.mxu0 0
    %3178 = vmatmul.mubr.bf16.gmra.mrb[0].mxu0 %v3143
    %v3179 = vpop.f32.mrb[0].mxu0
    %v3180 = vadd.f32 %v3094, %v3179
    %v3181 = vpop.f32.mrb[0].mxu0
    %v3182 = vadd.f32 %v3096, %v3181
    %v3183 = vpop.f32.mrb[0].mxu0
    %v3184 = vpop.f32.mrb[0].mxu0
    %3185 = vdwg.mxu0
    %v3186 = vld [vmem:[#allocation15] sm:$0x3]
    %v3188 = vlaneseq
    %v3189 = vshrl.u32 %v3188, 7
    %v3190 = vsub.s32 0, %v3189
    %v3191 = vrot.slane %v3186, %v3190
    %v3192 = vlaneseq
    %v3193 = vshrl.u32 %v3192, 7
    %v3194 = vsub.s32 1, %v3193
    %v3195 = vrot.slane %v3186, %v3194
    %v3198 = vadd.f32 %v3180, %v3191
    %v3199 = vadd.f32 %v3182, %v3195
    %v3200 = vxor.u32 %v3198, 2147483648
    %v3201 = vxor.u32 %v3199, 2147483648
    %v3202 = vmul.f32 %v3200, 1.442695
    %v3203 = vpow.pop %v3202
    %v3204 = vmul.f32 %v3201, 1.442695
    %v3205 = vpow.pop %v3204
    %v3206 = vadd.f32 %v3203, 1.0
    %v3207 = vadd.f32 %v3205, 1.0
    %v3208 = vrcp.pop %v3206
    %v3209 = vmul.f32 1.0, %v3208
    %v3210 = vrcp.pop %v3207
    %v3211 = vmul.f32 1.0, %v3210
    %v3212 = vtanh.pop %v3199
    %v3213 = vmul.f32 %v3209, %v2849
    %3215 = vrot.lane.b32.xlu0 %v3212, 64
    %v3216 = vpop.permute.xlu0 %3215
    %v3218 = vmul.f32 %v3209, %v3216
    %3220 = vrot.lane.b32.xlu0 %v3218, 64
    %v3221 = vpop.permute.xlu0 %3220
    %v3223 = vadd.f32 %v3213, %v3221
    %v3224 = vtanh.pop %v3223
    %3226 = vrot.lane.b32.xlu0 %v3224, 64
    %v3227 = vpop.permute.xlu0 %3226
    %v3229 = vmul.f32 %v3211, %v3227
    %s3230 = scalar_lea.vmem [#allocation21], 14
    %3231 = vst.msk [vmem:[%s3230] sm:$0x3] %vm638, %v3229
    %vm3232 = vcmask 523270
    %3233 = vst.msk [vmem:[#allocation22 - $0x6] sm:$0xc0] %vm3232, %v2997
    %3235 = vrot.lane.b32.xlu0 %v2991, 64
    %v3236 = vpop.permute.xlu0 %3235
    %3238 = vst.msk [vmem:[#allocation24 - $0x6] sm:$0xc0] %vm3232, %v3236
    %3239 = vst.msk [vmem:[#allocation25] sm:$0x3] %vm638, %v3229
    %3241 = vrot.lane.b32.xlu0 %v3223, 64
    %v3242 = vpop.permute.xlu0 %3241
    %3244 = vst.msk [vmem:[#allocation27] sm:$0x3] %vm638, %v3242
    // Predicated region
    $region90: #{tpu_custom_call.1} parent=1 // pred_check
      _
    $region91: #{tpu_custom_call.1} parent=1 // pred_check_branch
      %3246 = sbr.rel (0) target = $region93
    $region92: #{tpu_custom_call.1} parent=1 // pred_region
      %s3248 = ssub.s32 256, 256
      %3249 = vsyncadd [#allocation5], %s3248
      %s3250 = sshll.u32 [#allocation21], 4
      %s3251 = int_to_ptr.vmem [resolvable:$true] %s3250
      %3256 = dma.vmem_to_hbm [thread:$0]  %s3251, 256, %s11, [#allocation5], 32, 32, 2
    $region93: #{tpu_custom_call.1} parent=1 // pred_fallthru
      _
    // Predicated region
    $region94: #{tpu_custom_call.1} parent=1 // pred_check
      _
    $region95: #{tpu_custom_call.1} parent=1 // pred_check_branch
      %3258 = sbr.rel (0) target = $region97
    $region96: #{tpu_custom_call.1} parent=1 // pred_region
      %s3260 = ssub.s32 32, 32
      %3261 = vsyncadd [#allocation23], %s3260
      %s3263 = sshll.u32 [#allocation22], 4
      %s3264 = int_to_ptr.vmem [resolvable:$true] %s3263
      %3266 = dma.vmem_to_hbm [thread:$0]  %s3264, 32, %s12, [#allocation23]
    $region97: #{tpu_custom_call.1} parent=1 // pred_fallthru
      _
    // Predicated region
    $region98: #{tpu_custom_call.1} parent=1 // pred_check
      _
    $region99: #{tpu_custom_call.1} parent=1 // pred_check_branch
      %3268 = sbr.rel (0) target = $region101
    $region100: #{tpu_custom_call.1} parent=1 // pred_region
      %s3270 = ssub.s32 32, 32
      %3271 = vsyncadd [#allocation23], %s3270
      %s3273 = sshll.u32 [#allocation24], 4
      %s3274 = int_to_ptr.vmem [resolvable:$true] %s3273
      %3276 = dma.vmem_to_hbm [thread:$0]  %s3274, 32, %s13, [#allocation23]
    $region101: #{tpu_custom_call.1} parent=1 // pred_fallthru
      _
    // Predicated region
    $region102: #{tpu_custom_call.1} parent=1 // pred_check
      _
    $region103: #{tpu_custom_call.1} parent=1 // pred_check_branch
      %3278 = sbr.rel (0) target = $region105
    $region104: #{tpu_custom_call.1} parent=1 // pred_region
      %s3280 = ssub.s32 32, 32
      %3281 = vsyncadd [#allocation26], %s3280
      %s3283 = sshll.u32 [#allocation25], 4
      %s3284 = int_to_ptr.vmem [resolvable:$true] %s3283
      %3286 = dma.vmem_to_hbm [thread:$0]  %s3284, 32, %s14, [#allocation26]
    $region105: #{tpu_custom_call.1} parent=1 // pred_fallthru
      _
    // Predicated region
    $region106: #{tpu_custom_call.1} parent=1 // pred_check
      _
    $region107: #{tpu_custom_call.1} parent=1 // pred_check_branch
      %3288 = sbr.rel (0) target = $region109
    $region108: #{tpu_custom_call.1} parent=1 // pred_region
      %s3290 = ssub.s32 32, 32
      %3291 = vsyncadd [#allocation26], %s3290
      %s3293 = sshll.u32 [#allocation27], 4
      %s3294 = int_to_ptr.vmem [resolvable:$true] %s3293
      %3296 = dma.vmem_to_hbm [thread:$0]  %s3294, 32, %s15, [#allocation26]
    $region109: #{tpu_custom_call.1} parent=1 // pred_fallthru
      _
    // Predicated region
    $region110: #{tpu_custom_call.1} parent=1 // pred_check
      _
    $region111: #{tpu_custom_call.1} parent=1 // pred_check_branch
      %3298 = sbr.rel (0) target = $region113
    $region112: #{tpu_custom_call.1} parent=1 // pred_region
      %3299 = dma.done [#allocation5], 256
    $region113: #{tpu_custom_call.1} parent=1 // pred_fallthru
      _
    // Predicated region
    $region114: #{tpu_custom_call.1} parent=1 // pred_check
      _
    $region115: #{tpu_custom_call.1} parent=1 // pred_check_branch
      %3301 = sbr.rel (0) target = $region117
    $region116: #{tpu_custom_call.1} parent=1 // pred_region
      %3302 = dma.done [#allocation23], 32
    $region117: #{tpu_custom_call.1} parent=1 // pred_fallthru
      _
    // Predicated region
    $region118: #{tpu_custom_call.1} parent=1 // pred_check
      _
    $region119: #{tpu_custom_call.1} parent=1 // pred_check_branch
      %3304 = sbr.rel (0) target = $region121
    $region120: #{tpu_custom_call.1} parent=1 // pred_region
      %3305 = dma.done [#allocation23], 32
    $region121: #{tpu_custom_call.1} parent=1 // pred_fallthru
      _
    // Predicated region
    $region122: #{tpu_custom_call.1} parent=1 // pred_check
      _
    $region123: #{tpu_custom_call.1} parent=1 // pred_check_branch
      %3307 = sbr.rel (0) target = $region125
    $region124: #{tpu_custom_call.1} parent=1 // pred_region
      %3308 = dma.done [#allocation26], 32
    $region125: #{tpu_custom_call.1} parent=1 // pred_fallthru
      _
    // Predicated region
    $region126: #{tpu_custom_call.1} parent=1 // pred_check
      _
    $region127: #{tpu_custom_call.1} parent=1 // pred_check_branch
      %3310 = sbr.rel (0) target = $region129
    $region128: #{tpu_custom_call.1} parent=1 // pred_region
      %3311 = dma.done [#allocation26], 32
    $region129: #{tpu_custom_call.1} parent=1 // pred_fallthru
      _
    %3312 = vsyncpa [#allocation4], 1
    %3313 = vsyncpa [#allocation7], 1
    %3314 = vsyncpa [#allocation10], 1
    %3315 = vsyncpa [#allocation13], 1
    %3316 = vsyncpa [#allocation16], 1
    %3317 = vsyncpa [#allocation19], 1
    %3318 = vsyncpa [#allocation5], 1
    %3319 = vsyncpa [#allocation23], 1
    %3320 = vsyncpa [#allocation26], 1

</llo_original>
